<compile_context>
chip_gen: v7x
topology: tpu7x:2x2x1
jax: 0.10.0
libtpu: 0.0.40
codegen_flags: <defaults>
</compile_context>

<pallas_src>
import math

import jax
import jax.numpy as jnp
from jax.experimental import pallas as pl
from jax.experimental.pallas import tpu as pltpu

BLOCKSIZE = 64    # -> in = 128, hidden = 256/128, out = 64 (padded to 128 lanes)
BATCH = 1024      # many 64-bit blocks fed at once (amortizes overhead + weights)
TM = 256          # batch tile: fills the MXU M dimension on v6e/v7x


def _acos(x):
    # arccos via Abramowitz & Stegun 4.4.45 polynomial, |err| <= 2e-8
    # (below f32 ulp at pi/2); avoids relying on a lax.acos Mosaic lowering.
    a = jnp.abs(x)
    p = jnp.float32(-0.0012624911)
    p = p * a + jnp.float32(0.0066700901)
    p = p * a - jnp.float32(0.0170881256)
    p = p * a + jnp.float32(0.0308918810)
    p = p * a - jnp.float32(0.0501743046)
    p = p * a + jnp.float32(0.0889789874)
    p = p * a - jnp.float32(0.2145988016)
    p = p * a + jnp.float32(1.5707963050)
    r = jnp.sqrt(jnp.maximum(1.0 - a, 0.0)) * p
    return jnp.where(x < 0, jnp.float32(math.pi) - r, r)


def keyholder_kernel(flag_ref, x_ref, w1_ref, b1_ref, w2_ref, b2_ref,
                     w3_ref, b3_ref, o_ref):
    x = x_ref[...]                                  # (TM, 2*blocksize) f32
    t = 1.0 - 2.0 * x                               # 1 - mul(inputs, 2)

    # squash() as a per-row scale (two (TM,1) reciprocals instead of two
    # full-width divides); inf guard comes precomputed over the whole tensor.
    sn = jnp.sum(t * t, axis=-1, keepdims=True)     # (TM, 1) squared norm
    sqrt_sn = jnp.sqrt(sn)
    denom = (1.0 + sn) * sqrt_sn
    inv_sqrt = pl.reciprocal(sqrt_sn, approx=True)
    inv_denom = pl.reciprocal(denom, approx=True)
    scale = jnp.where(flag_ref[...] > 0.5, inv_sqrt, sn * inv_denom)  # (TM,1)
    squashed = t * scale

    h = _acos(squashed)                             # f32 elementwise path

    # Three Linear+ReLU layers: bf16 operands, f32 MXU accumulation.
    h = jnp.dot(h.astype(jnp.bfloat16), w1_ref[...],
                preferred_element_type=jnp.float32) + b1_ref[...]
    h = jnp.maximum(h, 0.0)
    h = jnp.dot(h.astype(jnp.bfloat16), w2_ref[...],
                preferred_element_type=jnp.float32) + b2_ref[...]
    h = jnp.maximum(h, 0.0)
    h = jnp.dot(h.astype(jnp.bfloat16), w3_ref[...],
                preferred_element_type=jnp.float32) + b3_ref[...]
    h = jnp.maximum(h, 0.0)

    o_ref[...] = (1.0 - jnp.cos(h)) * 0.5           # div(1 - cos(x), 2)


def keyholder_forward(x, params, *, tm=TM):
    w1, b1, w2, b2, w3, b3 = params
    b, d_in = x.shape
    blocksize = w3.shape[1]
    d_h1 = w1.shape[1]
    d_h2 = w2.shape[1]
    d_out = 128 * pl.cdiv(blocksize, 128)           # lane-dense output width

    # Whole-tensor isinf(denom) guard (matches PyTorch per-forward semantics
    # even though the kernel tiles the batch).
    t = 1.0 - 2.0 * x
    sn = jnp.sum(t * t, axis=-1, keepdims=True)
    flag = jnp.any(jnp.isinf((1.0 + sn) * jnp.sqrt(sn)))
    flag = flag.astype(jnp.float32).reshape(1, 1)

    # Pad batch to a multiple of the tile (zero rows are benign: sn = d_in).
    bp = tm * pl.cdiv(b, tm)
    x_in = jnp.pad(x, ((0, bp - b), (0, 0))) if bp != b else x

    # Pad fc3 to 128 output lanes (zeros), slice back after the kernel.
    pad_n = d_out - blocksize
    w3p = jnp.pad(w3, ((0, 0), (0, pad_n))) if pad_n else w3
    b3p = jnp.pad(b3, ((0, 0), (0, pad_n))) if pad_n else b3

    # bf16 weight storage (halves weight HBM traffic, native MXU rate).
    w1b = w1.astype(jnp.bfloat16)
    w2b = w2.astype(jnp.bfloat16)
    w3b = w3p.astype(jnp.bfloat16)

    grid = (bp // tm,)
    flops = 2 * bp * (d_in * d_h1 + d_h1 * d_h2 + d_h2 * d_out) + 12 * bp * d_in
    transcendentals = bp * (2 * d_in + d_out + 4)
    bytes_accessed = (x_in.size * 4 + w1b.size * 2 + w2b.size * 2 + w3b.size * 2
                      + b1.size * 4 + b2.size * 4 + b3p.size * 4
                      + bp * d_out * 4 + 4)

    out = pl.pallas_call(
        keyholder_kernel,
        out_shape=jax.ShapeDtypeStruct((bp, d_out), jnp.float32),
        grid=grid,
        in_specs=[
            pl.BlockSpec((1, 1), lambda i: (0, 0)),         # global inf flag
            pl.BlockSpec((tm, d_in), lambda i: (i, 0)),     # x batch tile
            pl.BlockSpec((d_in, d_h1), lambda i: (0, 0)),   # w1 (resident)
            pl.BlockSpec((1, d_h1), lambda i: (0, 0)),      # b1
            pl.BlockSpec((d_h1, d_h2), lambda i: (0, 0)),   # w2
            pl.BlockSpec((1, d_h2), lambda i: (0, 0)),      # b2
            pl.BlockSpec((d_h2, d_out), lambda i: (0, 0)),  # w3 (padded)
            pl.BlockSpec((1, d_out), lambda i: (0, 0)),     # b3 (padded)
        ],
        out_specs=pl.BlockSpec((tm, d_out), lambda i: (i, 0)),
        compiler_params=pltpu.CompilerParams(
            dimension_semantics=("parallel",)),             # v7x: 2 TCs
        cost_estimate=pl.CostEstimate(flops=flops,
                                      transcendentals=transcendentals,
                                      bytes_accessed=bytes_accessed),
    )(flag, x_in, w1b, b1, w2b, b2, w3b, b3p)

    return out[:b, :blocksize]


def init_params(key, blocksize):
    # Deterministic init mimicking nn.Linear's U(-1/sqrt(fan_in), 1/sqrt(fan_in)).
    dims = [(2 * blocksize, 4 * blocksize),
            (4 * blocksize, 2 * blocksize),
            (2 * blocksize, blocksize)]
    params = []
    for din, dout in dims:
        kw, kb, key = jax.random.split(key, 3)
        bound = 1.0 / math.sqrt(din)
        w = jax.random.uniform(kw, (din, dout), jnp.float32, -bound, bound)
        b = jax.random.uniform(kb, (1, dout), jnp.float32, -bound, bound)
        params += [w, b]
    return tuple(params)


def reference_f32(x, params):
    # Pure-JAX f32 reference of the PyTorch forward (original semantics).
    w1, b1, w2, b2, w3, b3 = params
    t = 1.0 - 2.0 * x
    sn = jnp.sum(t * t, axis=-1, keepdims=True)
    denom = (1.0 + sn) * jnp.sqrt(sn)
    squashed = jnp.where(jnp.any(jnp.isinf(denom)),
                         t / jnp.sqrt(sn), sn * t / denom)
    h = jnp.arccos(squashed)
    hi = jax.lax.Precision.HIGHEST
    h = jax.nn.relu(jnp.dot(h, w1, precision=hi) + b1)
    h = jax.nn.relu(jnp.dot(h, w2, precision=hi) + b2)
    h = jax.nn.relu(jnp.dot(h, w3, precision=hi) + b3)
    return (1.0 - jnp.cos(h)) / 2.0


def reference_bf16(x, params):
    # Same math but mirrors the kernel's bf16 matmul operands / f32 accumulation.
    w1, b1, w2, b2, w3, b3 = params
    t = 1.0 - 2.0 * x
    sn = jnp.sum(t * t, axis=-1, keepdims=True)
    sqrt_sn = jnp.sqrt(sn)
    denom = (1.0 + sn) * sqrt_sn
    scale = jnp.where(jnp.any(jnp.isinf(denom)), 1.0 / sqrt_sn, sn / denom)
    h = jnp.arccos(t * scale)

    def lin(a, w, b):
        return jnp.dot(a.astype(jnp.bfloat16), w.astype(jnp.bfloat16),
                       preferred_element_type=jnp.float32) + b

    h = jax.nn.relu(lin(h, w1, b1))
    h = jax.nn.relu(lin(h, w2, b2))
    h = jax.nn.relu(lin(h, w3, b3))
    return (1.0 - jnp.cos(h)) / 2.0


if __name__ == "__main__":
    key = jax.random.PRNGKey(0)
    kx, kp = jax.random.split(key)
    x = jax.random.uniform(kx, (BATCH, 2 * BLOCKSIZE), jnp.float32)
    params = init_params(kp, BLOCKSIZE)

    fwd = jax.jit(keyholder_forward)
    out = jax.block_until_ready(fwd(x, params))

    assert out.shape == (BATCH, BLOCKSIZE), out.shape
    assert bool(jnp.all(jnp.isfinite(out)))

    # Kernel correctness vs a reference with identical bf16 matmul casting.
    ref_b = reference_bf16(x, params)
    assert bool(jnp.allclose(out, ref_b, atol=1e-2, rtol=1e-2)), \
        float(jnp.max(jnp.abs(out - ref_b)))

    # Semantics vs the original full-f32 module (loose: bf16 weight storage).
    ref_f = reference_f32(x, params)
    assert bool(jnp.allclose(out, ref_f, atol=5e-2, rtol=5e-2)), \
        float(jnp.max(jnp.abs(out - ref_f)))

    print("KERNEL_OK")
</pallas_src>

<mosaic_0001>
module attributes {stable_mosaic.version = 11 : i64} {
  func.func @keyholder_kernel(%arg0: i32, %arg1: memref<1x1xf32, #tpu.memory_space<vmem>>, %arg2: memref<256x128xf32, #tpu.memory_space<vmem>>, %arg3: memref<128x256xbf16, #tpu.memory_space<vmem>>, %arg4: memref<1x256xf32, #tpu.memory_space<vmem>>, %arg5: memref<256x128xbf16, #tpu.memory_space<vmem>>, %arg6: memref<1x128xf32, #tpu.memory_space<vmem>>, %arg7: memref<128x128xbf16, #tpu.memory_space<vmem>>, %arg8: memref<1x128xf32, #tpu.memory_space<vmem>>, %arg9: memref<256x128xf32, #tpu.memory_space<vmem>>) attributes {dimension_semantics = [#tpu.dimension_semantics<parallel>], iteration_bounds = array<i64: 4>, scalar_prefetch = 0 : i64, scratch_operands = 0 : i64, tpu.core_type = #tpu.core_type<tc>, window_params = [{pipeline_mode = #tpu.pipeline_mode<synchronous>, transform_indices = @transform_0, window_bounds = array<i64: 1, 1>}, {transform_indices = @transform_1, window_bounds = array<i64: 256, 128>}, {pipeline_mode = #tpu.pipeline_mode<synchronous>, transform_indices = @transform_2, window_bounds = array<i64: 128, 256>}, {pipeline_mode = #tpu.pipeline_mode<synchronous>, transform_indices = @transform_3, window_bounds = array<i64: 1, 256>}, {pipeline_mode = #tpu.pipeline_mode<synchronous>, transform_indices = @transform_4, window_bounds = array<i64: 256, 128>}, {pipeline_mode = #tpu.pipeline_mode<synchronous>, transform_indices = @transform_5, window_bounds = array<i64: 1, 128>}, {pipeline_mode = #tpu.pipeline_mode<synchronous>, transform_indices = @transform_6, window_bounds = array<i64: 128, 128>}, {pipeline_mode = #tpu.pipeline_mode<synchronous>, transform_indices = @transform_7, window_bounds = array<i64: 1, 128>}, {transform_indices = @transform_8, window_bounds = array<i64: 256, 128>}]} {
    %c0 = arith.constant 0 : index
    %c0_0 = arith.constant 0 : index
    %0 = vector.load %arg2[%c0, %c0_0] : memref<256x128xf32, #tpu.memory_space<vmem>>, vector<256x128xf32>
    %cst = arith.constant 2.000000e+00 : f32
    %1 = vector.broadcast %cst : f32 to vector<256x128xf32>
    %2 = arith.mulf %1, %0 : vector<256x128xf32>
    %cst_1 = arith.constant 1.000000e+00 : f32
    %3 = vector.broadcast %cst_1 : f32 to vector<256x128xf32>
    %4 = arith.subf %3, %2 : vector<256x128xf32>
    %5 = arith.mulf %4, %4 : vector<256x128xf32>
    %cst_2 = arith.constant dense<0.000000e+00> : vector<256xf32>
    %6 = vector.multi_reduction <add>, %5, %cst_2 [1] : vector<256x128xf32> to vector<256xf32>
    %7 = vector.shape_cast %6 : vector<256xf32> to vector<256x1xf32>
    %8 = math.sqrt %7 : vector<256x1xf32>
    %cst_3 = arith.constant 1.000000e+00 : f32
    %9 = vector.broadcast %cst_3 : f32 to vector<256x1xf32>
    %10 = arith.addf %9, %7 : vector<256x1xf32>
    %11 = arith.mulf %10, %8 : vector<256x1xf32>
    %12 = tpu.reciprocal %8 {approx = true} : vector<256x1xf32> -> vector<256x1xf32>
    %13 = tpu.reciprocal %11 {approx = true} : vector<256x1xf32> -> vector<256x1xf32>
    %c0_4 = arith.constant 0 : index
    %c0_5 = arith.constant 0 : index
    %14 = vector.load %arg1[%c0_4, %c0_5] : memref<1x1xf32, #tpu.memory_space<vmem>>, vector<1x1xf32>
    %cst_6 = arith.constant 5.000000e-01 : f32
    %15 = vector.broadcast %cst_6 : f32 to vector<1x1xf32>
    %16 = arith.cmpf ogt, %14, %15 : vector<1x1xf32>
    %17 = arith.mulf %7, %13 : vector<256x1xf32>
    %18 = vector.shape_cast %16 : vector<1x1xi1> to vector<1x1xi1>
    %19 = vector.broadcast %18 : vector<1x1xi1> to vector<256x1xi1>
    %20 = arith.select %19, %12, %17 : vector<256x1xi1>, vector<256x1xf32>
    %21 = vector.broadcast %20 : vector<256x1xf32> to vector<256x128xf32>
    %22 = arith.mulf %4, %21 : vector<256x128xf32>
    %23 = math.absf %22 : vector<256x128xf32>
    %cst_7 = arith.constant -0.0012624911 : f32
    %24 = vector.broadcast %cst_7 : f32 to vector<256x128xf32>
    %25 = arith.mulf %24, %23 : vector<256x128xf32>
    %cst_8 = arith.constant 6.670090e-03 : f32
    %26 = vector.broadcast %cst_8 : f32 to vector<256x128xf32>
    %27 = arith.addf %25, %26 : vector<256x128xf32>
    %28 = arith.mulf %27, %23 : vector<256x128xf32>
    %cst_9 = arith.constant 0.0170881264 : f32
    %29 = vector.broadcast %cst_9 : f32 to vector<256x128xf32>
    %30 = arith.subf %28, %29 : vector<256x128xf32>
    %31 = arith.mulf %30, %23 : vector<256x128xf32>
    %cst_10 = arith.constant 0.0308918804 : f32
    %32 = vector.broadcast %cst_10 : f32 to vector<256x128xf32>
    %33 = arith.addf %31, %32 : vector<256x128xf32>
    %34 = arith.mulf %33, %23 : vector<256x128xf32>
    %cst_11 = arith.constant 0.0501743034 : f32
    %35 = vector.broadcast %cst_11 : f32 to vector<256x128xf32>
    %36 = arith.subf %34, %35 : vector<256x128xf32>
    %37 = arith.mulf %36, %23 : vector<256x128xf32>
    %cst_12 = arith.constant 0.0889789909 : f32
    %38 = vector.broadcast %cst_12 : f32 to vector<256x128xf32>
    %39 = arith.addf %37, %38 : vector<256x128xf32>
    %40 = arith.mulf %39, %23 : vector<256x128xf32>
    %cst_13 = arith.constant 0.214598805 : f32
    %41 = vector.broadcast %cst_13 : f32 to vector<256x128xf32>
    %42 = arith.subf %40, %41 : vector<256x128xf32>
    %43 = arith.mulf %42, %23 : vector<256x128xf32>
    %cst_14 = arith.constant 1.57079625 : f32
    %44 = vector.broadcast %cst_14 : f32 to vector<256x128xf32>
    %45 = arith.addf %43, %44 : vector<256x128xf32>
    %cst_15 = arith.constant 1.000000e+00 : f32
    %46 = vector.broadcast %cst_15 : f32 to vector<256x128xf32>
    %47 = arith.subf %46, %23 : vector<256x128xf32>
    %cst_16 = arith.constant 0.000000e+00 : f32
    %48 = vector.broadcast %cst_16 : f32 to vector<256x128xf32>
    %49 = arith.maximumf %47, %48 : vector<256x128xf32>
    %50 = math.sqrt %49 : vector<256x128xf32>
    %51 = arith.mulf %50, %45 : vector<256x128xf32>
    %cst_17 = arith.constant 0.000000e+00 : f32
    %52 = vector.broadcast %cst_17 : f32 to vector<256x128xf32>
    %53 = arith.cmpf olt, %22, %52 : vector<256x128xf32>
    %cst_18 = arith.constant 3.14159274 : f32
    %54 = vector.broadcast %cst_18 : f32 to vector<256x128xf32>
    %55 = arith.subf %54, %51 : vector<256x128xf32>
    %56 = arith.select %53, %55, %51 : vector<256x128xi1>, vector<256x128xf32>
    %57 = arith.truncf %56 : vector<256x128xf32> to vector<256x128xbf16>
    %c0_19 = arith.constant 0 : index
    %c0_20 = arith.constant 0 : index
    %58 = vector.load %arg3[%c0_19, %c0_20] : memref<128x256xbf16, #tpu.memory_space<vmem>>, vector<128x256xbf16>
    %cst_21 = arith.constant dense<0.000000e+00> : vector<256x256xf32>
    %59 = tpu.matmul %57, %58, %cst_21 {dimension_numbers = #tpu.dot_dimension_numbers<[1], [0], [0], [1], [0, 0, 1, 1], [], []>} : vector<256x128xbf16>, vector<128x256xbf16>, vector<256x256xf32> -> vector<256x256xf32>
    %c0_22 = arith.constant 0 : index
    %c0_23 = arith.constant 0 : index
    %60 = vector.load %arg4[%c0_22, %c0_23] : memref<1x256xf32, #tpu.memory_space<vmem>>, vector<1x256xf32>
    %61 = vector.broadcast %60 : vector<1x256xf32> to vector<256x256xf32>
    %62 = arith.addf %59, %61 : vector<256x256xf32>
    %cst_24 = arith.constant 0.000000e+00 : f32
    %63 = vector.broadcast %cst_24 : f32 to vector<256x256xf32>
    %64 = arith.maximumf %62, %63 : vector<256x256xf32>
    %65 = arith.truncf %64 : vector<256x256xf32> to vector<256x256xbf16>
    %c0_25 = arith.constant 0 : index
    %c0_26 = arith.constant 0 : index
    %66 = vector.load %arg5[%c0_25, %c0_26] : memref<256x128xbf16, #tpu.memory_space<vmem>>, vector<256x128xbf16>
    %cst_27 = arith.constant dense<0.000000e+00> : vector<256x128xf32>
    %67 = tpu.matmul %65, %66, %cst_27 {dimension_numbers = #tpu.dot_dimension_numbers<[1], [0], [0], [1], [0, 0, 1, 1], [], []>} : vector<256x256xbf16>, vector<256x128xbf16>, vector<256x128xf32> -> vector<256x128xf32>
    %c0_28 = arith.constant 0 : index
    %c0_29 = arith.constant 0 : index
    %68 = vector.load %arg6[%c0_28, %c0_29] : memref<1x128xf32, #tpu.memory_space<vmem>>, vector<1x128xf32>
    %69 = vector.broadcast %68 : vector<1x128xf32> to vector<256x128xf32>
    %70 = arith.addf %67, %69 : vector<256x128xf32>
    %cst_30 = arith.constant 0.000000e+00 : f32
    %71 = vector.broadcast %cst_30 : f32 to vector<256x128xf32>
    %72 = arith.maximumf %70, %71 : vector<256x128xf32>
    %73 = arith.truncf %72 : vector<256x128xf32> to vector<256x128xbf16>
    %c0_31 = arith.constant 0 : index
    %c0_32 = arith.constant 0 : index
    %74 = vector.load %arg7[%c0_31, %c0_32] : memref<128x128xbf16, #tpu.memory_space<vmem>>, vector<128x128xbf16>
    %cst_33 = arith.constant dense<0.000000e+00> : vector<256x128xf32>
    %75 = tpu.matmul %73, %74, %cst_33 {dimension_numbers = #tpu.dot_dimension_numbers<[1], [0], [0], [1], [0, 0, 1, 1], [], []>} : vector<256x128xbf16>, vector<128x128xbf16>, vector<256x128xf32> -> vector<256x128xf32>
    %c0_34 = arith.constant 0 : index
    %c0_35 = arith.constant 0 : index
    %76 = vector.load %arg8[%c0_34, %c0_35] : memref<1x128xf32, #tpu.memory_space<vmem>>, vector<1x128xf32>
    %77 = vector.broadcast %76 : vector<1x128xf32> to vector<256x128xf32>
    %78 = arith.addf %75, %77 : vector<256x128xf32>
    %cst_36 = arith.constant 0.000000e+00 : f32
    %79 = vector.broadcast %cst_36 : f32 to vector<256x128xf32>
    %80 = arith.maximumf %78, %79 : vector<256x128xf32>
    %81 = math.cos %80 : vector<256x128xf32>
    %cst_37 = arith.constant 1.000000e+00 : f32
    %82 = vector.broadcast %cst_37 : f32 to vector<256x128xf32>
    %83 = arith.subf %82, %81 : vector<256x128xf32>
    %cst_38 = arith.constant 5.000000e-01 : f32
    %84 = vector.broadcast %cst_38 : f32 to vector<256x128xf32>
    %85 = arith.mulf %83, %84 : vector<256x128xf32>
    %c0_39 = arith.constant 0 : index
    %c0_40 = arith.constant 0 : index
    %86 = vector.load %arg9[%c0_39, %c0_40] : memref<256x128xf32, #tpu.memory_space<vmem>>, vector<256x128xf32>
    tpu.vector_store %arg9[%c0_39, %c0_40], %85 {strides = array<i32>} : memref<256x128xf32, #tpu.memory_space<vmem>>, vector<256x128xf32>,
    return
  }
  func.func @transform_0(%arg0: i32) -> (i32, i32) {
    %c0_i32 = arith.constant 0 : i32
    %c0_i32_0 = arith.constant 0 : i32
    %c0_i32_1 = arith.constant 0 : i32
    return %c0_i32, %c0_i32_0 : i32, i32
  }
  func.func @transform_1(%arg0: i32) -> (i32, i32) {
    %c0_i32 = arith.constant 0 : i32
    %c0_i32_0 = arith.constant 0 : i32
    return %arg0, %c0_i32 : i32, i32
  }
  func.func @transform_2(%arg0: i32) -> (i32, i32) {
    %c0_i32 = arith.constant 0 : i32
    %c0_i32_0 = arith.constant 0 : i32
    %c0_i32_1 = arith.constant 0 : i32
    return %c0_i32, %c0_i32_0 : i32, i32
  }
  func.func @transform_3(%arg0: i32) -> (i32, i32) {
    %c0_i32 = arith.constant 0 : i32
    %c0_i32_0 = arith.constant 0 : i32
    %c0_i32_1 = arith.constant 0 : i32
    return %c0_i32, %c0_i32_0 : i32, i32
  }
  func.func @transform_4(%arg0: i32) -> (i32, i32) {
    %c0_i32 = arith.constant 0 : i32
    %c0_i32_0 = arith.constant 0 : i32
    %c0_i32_1 = arith.constant 0 : i32
    return %c0_i32, %c0_i32_0 : i32, i32
  }
  func.func @transform_5(%arg0: i32) -> (i32, i32) {
    %c0_i32 = arith.constant 0 : i32
    %c0_i32_0 = arith.constant 0 : i32
    %c0_i32_1 = arith.constant 0 : i32
    return %c0_i32, %c0_i32_0 : i32, i32
  }
  func.func @transform_6(%arg0: i32) -> (i32, i32) {
    %c0_i32 = arith.constant 0 : i32
    %c0_i32_0 = arith.constant 0 : i32
    %c0_i32_1 = arith.constant 0 : i32
    return %c0_i32, %c0_i32_0 : i32, i32
  }
  func.func @transform_7(%arg0: i32) -> (i32, i32) {
    %c0_i32 = arith.constant 0 : i32
    %c0_i32_0 = arith.constant 0 : i32
    %c0_i32_1 = arith.constant 0 : i32
    return %c0_i32, %c0_i32_0 : i32, i32
  }
  func.func @transform_8(%arg0: i32) -> (i32, i32) {
    %c0_i32 = arith.constant 0 : i32
    %c0_i32_0 = arith.constant 0 : i32
    return %arg0, %c0_i32 : i32, i32
  }
}

</mosaic_0001>

<llo_original>
// kernel: keyholder_forward.1
$region0: #{keyholder_forward.1}
  #allocation0 [shape = 'u32[]', space=smem, size = 0x4, offset = 0x4, fixed_abs, tag = 'smem constant byte address 0x4 - core index']
  #allocation1 [shape = 'u32[144,128]{1,0:T(1,128)}', space=vmem, size = 0x12000, scoped, tag = 'internal scratch']
  #allocation2 [shape = 'f32[1,1]{1,0:T(1,128)S(1)}', space=vmem, size = 0x200, scoped, tag = 'scoped memory for keyholder_forward.1']
  %s0 = inlined_call_operand.<no memory space> [shape: f32[1,1], index: 0, kind: input, shape index: {}]
  %s1 = inlined_call_operand.vmem [shape: f32[1024,128], index: 1, kind: input, shape index: {}]
  %s2 = inlined_call_operand.vmem [shape: bf16[128,256], index: 2, kind: input, shape index: {}]
  %s3 = inlined_call_operand.vmem [shape: f32[1,256], index: 3, kind: input, shape index: {}]
  %s4 = inlined_call_operand.vmem [shape: bf16[256,128], index: 4, kind: input, shape index: {}]
  %s5 = inlined_call_operand.vmem [shape: f32[1,128], index: 5, kind: input, shape index: {}]
  %s6 = inlined_call_operand.vmem [shape: bf16[128,128], index: 6, kind: input, shape index: {}]
  %s7 = inlined_call_operand.vmem [shape: f32[1,128], index: 7, kind: input, shape index: {}]
  %s8 = inlined_call_operand.vmem [shape: f32[1024,128], index: 8, kind: output, shape index: {}]
  %s9 = sld [smem:[#allocation0]]
  $region65: #{keyholder_forward.1} parent=0
    _
  %s11 = ssub.s32 1, %s9
  %s12 = scalar_select 0, %s11, %s9
  %v13 = vstv %s0
  %14 = vst [vmem:[#allocation2] sm:$0x1] %v13
  loop: start=0, step=1, limit=6
  $region2: #{keyholder_forward.1} parent=0 // loop_pre_header
    _
  $region3: #{keyholder_forward.1} parent=0 // loop_header
    %s16 = sphi 0, %s20
    %p17 = scmp.ge.s32.totalorder %s16, 6
    %s24 = sphi 0, %s24
    %s26 = sphi 0, %s24
    %s27 = sphi 0, %s26
    %s41 = sphi 0, %s27
    %s47 = sphi 0, %s49
    %s50 = sphi 0, %s47
    %s51 = sphi 0, %s50
    %s67 = sphi 0, %s51
    %s71 = sphi 0, %s71
    %s73 = sphi 0, %s71
    %s74 = sphi 0, %s73
    %s88 = sphi 0, %s74
    %s92 = sphi 0, %s92
    %s94 = sphi 0, %s92
    %s95 = sphi 0, %s94
    %s109 = sphi 0, %s95
    %s113 = sphi 0, %s113
    %s115 = sphi 0, %s113
    %s116 = sphi 0, %s115
    %s130 = sphi 0, %s116
    %s134 = sphi 0, %s134
    %s136 = sphi 0, %s134
    %s137 = sphi 0, %s136
    %s151 = sphi 0, %s137
    %s155 = sphi 0, %s155
    %s157 = sphi 0, %s155
    %s158 = sphi 0, %s157
    %s172 = sphi 0, %s158
    %s176 = sphi 0, %s176
    %s178 = sphi 0, %s176
    %s179 = sphi 0, %s178
    %s193 = sphi 0, %s179
    %s199 = sphi 0, %s201
    %s202 = sphi 0, %s199
    %s203 = sphi 0, %s202
    %s219 = sphi 0, %s203
  $region4: #{keyholder_forward.1} parent=0 // loop_header_branch
    %19 = sbr.rel (%p17) target = $region8
  $region5: #{keyholder_forward.1} parent=0 // loop_body
    %s21 = ssub.s32 %s16, 1
    %s22 = ssub.s32 %s16, 2
    %s23 = sadd.s32 %s16, 1
    %s25 = sadd.s32 %s24, 1
    %p28 = scmp.eq.s32.totalorder %s16, 3
    %p29 = scmp.ne.s32.totalorder %s24, %s26
    %p30 = scmp.eq.s32.totalorder %s16, 0
    %p31 = por %p29, %p30
    %p32 = scmp.ne.s32.totalorder %s24, %s26
    %p33 = scmp.eq.s32.totalorder %s21, 3
    %p34 = por %p32, %p33
    %p35 = scmp.ne.s32.totalorder %s26, %s27
    %p36 = scmp.eq.s32.totalorder %s21, 0
    %p37 = por %p35, %p36
    %p38 = scmp.ne.s32.totalorder %s26, %s27
    %p39 = scmp.eq.s32.totalorder %s22, 3
    %p40 = por %p38, %p39
    %p42 = scmp.ne.s32.totalorder %s27, %s41
    %p43 = scmp.eq.s32.totalorder %s22, 0
    %p44 = por %p42, %p43
    %s45 = ssub.s32 %s16, %s23
    %p46 = scmp.eq.s32.totalorder %s45, 0
    %s48 = sadd.s32 %s47, 1
    %s49 = scalar_select %p46, %s47, %s48
    %p52 = pneg %p46
    %p53 = scmp.eq.s32.totalorder %s16, 3
    %p54 = por %p52, %p53
    %p55 = scmp.ne.s32.totalorder %s47, %s50
    %p56 = scmp.eq.s32.totalorder %s16, 0
    %p57 = por %p55, %p56
    %p58 = scmp.ne.s32.totalorder %s47, %s50
    %p59 = scmp.eq.s32.totalorder %s21, 3
    %p60 = por %p58, %p59
    %p61 = scmp.ne.s32.totalorder %s50, %s51
    %p62 = scmp.eq.s32.totalorder %s21, 0
    %p63 = por %p61, %p62
    %p64 = scmp.ne.s32.totalorder %s50, %s51
    %p65 = scmp.eq.s32.totalorder %s22, 3
    %p66 = por %p64, %p65
    %p68 = scmp.ne.s32.totalorder %s51, %s67
    %p69 = scmp.eq.s32.totalorder %s22, 0
    %p70 = por %p68, %p69
    %s72 = sadd.s32 %s71, 1
    %p75 = scmp.eq.s32.totalorder %s16, 3
    %p76 = scmp.ne.s32.totalorder %s71, %s73
    %p77 = scmp.eq.s32.totalorder %s16, 0
    %p78 = por %p76, %p77
    %p79 = scmp.ne.s32.totalorder %s71, %s73
    %p80 = scmp.eq.s32.totalorder %s21, 3
    %p81 = por %p79, %p80
    %p82 = scmp.ne.s32.totalorder %s73, %s74
    %p83 = scmp.eq.s32.totalorder %s21, 0
    %p84 = por %p82, %p83
    %p85 = scmp.ne.s32.totalorder %s73, %s74
    %p86 = scmp.eq.s32.totalorder %s22, 3
    %p87 = por %p85, %p86
    %p89 = scmp.ne.s32.totalorder %s74, %s88
    %p90 = scmp.eq.s32.totalorder %s22, 0
    %p91 = por %p89, %p90
    %s93 = sadd.s32 %s92, 1
    %p96 = scmp.eq.s32.totalorder %s16, 3
    %p97 = scmp.ne.s32.totalorder %s92, %s94
    %p98 = scmp.eq.s32.totalorder %s16, 0
    %p99 = por %p97, %p98
    %p100 = scmp.ne.s32.totalorder %s92, %s94
    %p101 = scmp.eq.s32.totalorder %s21, 3
    %p102 = por %p100, %p101
    %p103 = scmp.ne.s32.totalorder %s94, %s95
    %p104 = scmp.eq.s32.totalorder %s21, 0
    %p105 = por %p103, %p104
    %p106 = scmp.ne.s32.totalorder %s94, %s95
    %p107 = scmp.eq.s32.totalorder %s22, 3
    %p108 = por %p106, %p107
    %p110 = scmp.ne.s32.totalorder %s95, %s109
    %p111 = scmp.eq.s32.totalorder %s22, 0
    %p112 = por %p110, %p111
    %s114 = sadd.s32 %s113, 1
    %p117 = scmp.eq.s32.totalorder %s16, 3
    %p118 = scmp.ne.s32.totalorder %s113, %s115
    %p119 = scmp.eq.s32.totalorder %s16, 0
    %p120 = por %p118, %p119
    %p121 = scmp.ne.s32.totalorder %s113, %s115
    %p122 = scmp.eq.s32.totalorder %s21, 3
    %p123 = por %p121, %p122
    %p124 = scmp.ne.s32.totalorder %s115, %s116
    %p125 = scmp.eq.s32.totalorder %s21, 0
    %p126 = por %p124, %p125
    %p127 = scmp.ne.s32.totalorder %s115, %s116
    %p128 = scmp.eq.s32.totalorder %s22, 3
    %p129 = por %p127, %p128
    %p131 = scmp.ne.s32.totalorder %s116, %s130
    %p132 = scmp.eq.s32.totalorder %s22, 0
    %p133 = por %p131, %p132
    %s135 = sadd.s32 %s134, 1
    %p138 = scmp.eq.s32.totalorder %s16, 3
    %p139 = scmp.ne.s32.totalorder %s134, %s136
    %p140 = scmp.eq.s32.totalorder %s16, 0
    %p141 = por %p139, %p140
    %p142 = scmp.ne.s32.totalorder %s134, %s136
    %p143 = scmp.eq.s32.totalorder %s21, 3
    %p144 = por %p142, %p143
    %p145 = scmp.ne.s32.totalorder %s136, %s137
    %p146 = scmp.eq.s32.totalorder %s21, 0
    %p147 = por %p145, %p146
    %p148 = scmp.ne.s32.totalorder %s136, %s137
    %p149 = scmp.eq.s32.totalorder %s22, 3
    %p150 = por %p148, %p149
    %p152 = scmp.ne.s32.totalorder %s137, %s151
    %p153 = scmp.eq.s32.totalorder %s22, 0
    %p154 = por %p152, %p153
    %s156 = sadd.s32 %s155, 1
    %p159 = scmp.eq.s32.totalorder %s16, 3
    %p160 = scmp.ne.s32.totalorder %s155, %s157
    %p161 = scmp.eq.s32.totalorder %s16, 0
    %p162 = por %p160, %p161
    %p163 = scmp.ne.s32.totalorder %s155, %s157
    %p164 = scmp.eq.s32.totalorder %s21, 3
    %p165 = por %p163, %p164
    %p166 = scmp.ne.s32.totalorder %s157, %s158
    %p167 = scmp.eq.s32.totalorder %s21, 0
    %p168 = por %p166, %p167
    %p169 = scmp.ne.s32.totalorder %s157, %s158
    %p170 = scmp.eq.s32.totalorder %s22, 3
    %p171 = por %p169, %p170
    %p173 = scmp.ne.s32.totalorder %s158, %s172
    %p174 = scmp.eq.s32.totalorder %s22, 0
    %p175 = por %p173, %p174
    %s177 = sadd.s32 %s176, 1
    %p180 = scmp.eq.s32.totalorder %s16, 3
    %p181 = scmp.ne.s32.totalorder %s176, %s178
    %p182 = scmp.eq.s32.totalorder %s16, 0
    %p183 = por %p181, %p182
    %p184 = scmp.ne.s32.totalorder %s176, %s178
    %p185 = scmp.eq.s32.totalorder %s21, 3
    %p186 = por %p184, %p185
    %p187 = scmp.ne.s32.totalorder %s178, %s179
    %p188 = scmp.eq.s32.totalorder %s21, 0
    %p189 = por %p187, %p188
    %p190 = scmp.ne.s32.totalorder %s178, %s179
    %p191 = scmp.eq.s32.totalorder %s22, 3
    %p192 = por %p190, %p191
    %p194 = scmp.ne.s32.totalorder %s179, %s193
    %p195 = scmp.eq.s32.totalorder %s22, 0
    %p196 = por %p194, %p195
    %s197 = ssub.s32 %s16, %s23
    %p198 = scmp.eq.s32.totalorder %s197, 0
    %s200 = sadd.s32 %s199, 1
    %s201 = scalar_select %p198, %s199, %s200
    %p204 = pneg %p198
    %p205 = scmp.eq.s32.totalorder %s16, 3
    %p206 = por %p204, %p205
    %p207 = scmp.ne.s32.totalorder %s199, %s202
    %p208 = scmp.eq.s32.totalorder %s16, 0
    %p209 = por %p207, %p208
    %p210 = scmp.ne.s32.totalorder %s199, %s202
    %p211 = scmp.eq.s32.totalorder %s21, 3
    %p212 = por %p210, %p211
    %p213 = scmp.ne.s32.totalorder %s202, %s203
    %p214 = scmp.eq.s32.totalorder %s21, 0
    %p215 = por %p213, %p214
    %p216 = scmp.ne.s32.totalorder %s202, %s203
    %p217 = scmp.eq.s32.totalorder %s22, 3
    %p218 = por %p216, %p217
    %p220 = scmp.ne.s32.totalorder %s203, %s219
    %p221 = scmp.eq.s32.totalorder %s22, 0
    %p222 = por %p220, %p221
    %p223 = scmp.le.s32.totalorder 1, %s16
    %p224 = scmp.lt.s32.totalorder %s16, 5
    %p225 = pnand %p223, %p224
    %p226 = pneg %p225
    // Predicated region
    $region9: #{keyholder_forward.1} parent=5 // pred_check
      _
    $region10: #{keyholder_forward.1} parent=5 // pred_check_branch
      %228 = sbr.rel (%p225) target = $region12
    $region11: #{keyholder_forward.1} parent=5 // pred_region
      %s229 = ssub.s32 %s16, 1
      // Predicated region
      $region13: #{keyholder_forward.1} parent=11 // pred_check
        %p230 = pneg %p37
      $region14: #{keyholder_forward.1} parent=11 // pred_check_branch
        %232 = sbr.rel (%p230) target = $region16
      $region15: #{keyholder_forward.1} parent=11 // pred_region
        _
      $region16: #{keyholder_forward.1} parent=11 // pred_fallthru
        _
      // Predicated region
      $region17: #{keyholder_forward.1} parent=11 // pred_check
        %p233 = pneg %p84
      $region18: #{keyholder_forward.1} parent=11 // pred_check_branch
        %235 = sbr.rel (%p233) target = $region20
      $region19: #{keyholder_forward.1} parent=11 // pred_region
        _
      $region20: #{keyholder_forward.1} parent=11 // pred_fallthru
        _
      // Predicated region
      $region21: #{keyholder_forward.1} parent=11 // pred_check
        %p236 = pneg %p105
      $region22: #{keyholder_forward.1} parent=11 // pred_check_branch
        %238 = sbr.rel (%p236) target = $region24
      $region23: #{keyholder_forward.1} parent=11 // pred_region
        _
      $region24: #{keyholder_forward.1} parent=11 // pred_fallthru
        _
      // Predicated region
      $region25: #{keyholder_forward.1} parent=11 // pred_check
        %p239 = pneg %p126
      $region26: #{keyholder_forward.1} parent=11 // pred_check_branch
        %241 = sbr.rel (%p239) target = $region28
      $region27: #{keyholder_forward.1} parent=11 // pred_region
        _
      $region28: #{keyholder_forward.1} parent=11 // pred_fallthru
        _
      // Predicated region
      $region29: #{keyholder_forward.1} parent=11 // pred_check
        %p242 = pneg %p147
      $region30: #{keyholder_forward.1} parent=11 // pred_check_branch
        %244 = sbr.rel (%p242) target = $region32
      $region31: #{keyholder_forward.1} parent=11 // pred_region
        _
      $region32: #{keyholder_forward.1} parent=11 // pred_fallthru
        _
      // Predicated region
      $region33: #{keyholder_forward.1} parent=11 // pred_check
        %p245 = pneg %p168
      $region34: #{keyholder_forward.1} parent=11 // pred_check_branch
        %247 = sbr.rel (%p245) target = $region36
      $region35: #{keyholder_forward.1} parent=11 // pred_region
        _
      $region36: #{keyholder_forward.1} parent=11 // pred_fallthru
        _
      // Predicated region
      $region37: #{keyholder_forward.1} parent=11 // pred_check
        %p248 = pneg %p189
      $region38: #{keyholder_forward.1} parent=11 // pred_check_branch
        %250 = sbr.rel (%p248) target = $region40
      $region39: #{keyholder_forward.1} parent=11 // pred_region
        _
      $region40: #{keyholder_forward.1} parent=11 // pred_fallthru
        _
    $region12: #{keyholder_forward.1} parent=5 // pred_fallthru
      _
    %p251 = scmp.lt.s32.totalorder %s16, 4
    // Predicated region
    $region41: #{keyholder_forward.1} parent=5 // pred_check
      %p252 = pneg %p251
    $region42: #{keyholder_forward.1} parent=5 // pred_check_branch
      %254 = sbr.rel (%p252) target = $region44
    $region43: #{keyholder_forward.1} parent=5 // pred_region
      // Predicated region
      $region45: #{keyholder_forward.1} parent=43 // pred_check
        %p255 = pneg %p57
      $region46: #{keyholder_forward.1} parent=43 // pred_check_branch
        %257 = sbr.rel (%p255) target = $region48
      $region47: #{keyholder_forward.1} parent=43 // pred_region
        %s258 = smul.u32 32, %s16
        %p259 = scmp.lt.s32.totalorder %s258, 127
        %s260 = scalar_select %p259, %s258, 127
        %s261 = smul.addr %s260, 8
        %s262 = scalar_lea.vmem %s1, %s261
        %s263 = smul.u32 32, %s16
      $region48: #{keyholder_forward.1} parent=43 // pred_fallthru
        _
    $region44: #{keyholder_forward.1} parent=5 // pred_fallthru
      _
    %p264 = scmp.le.s32.totalorder 1, %s16
    %p265 = scmp.lt.s32.totalorder %s16, 5
    %p266 = pnand %p264, %p265
    %p267 = pneg %p266
    // Predicated region
    $region49: #{keyholder_forward.1} parent=5 // pred_check
      _
    $region50: #{keyholder_forward.1} parent=5 // pred_check_branch
      %269 = sbr.rel (%p266) target = $region52
    $region51: #{keyholder_forward.1} parent=5 // pred_region
      %s270 = ssub.s32 %s16, 1
      %p271 = pneg %p37
      %p272 = pneg %p34
      %s273 = smul.u32 32, %s21
      %p274 = scmp.lt.s32.totalorder %s273, 127
      %s275 = scalar_select %p274, %s273, 127
      %s276 = smul.addr %s275, 8
      %s277 = scalar_lea.vmem %s1, %s276
      %p278 = pneg %p63
      %p279 = pneg %p60
      %p280 = pneg %p84
      %p281 = pneg %p81
      %p282 = pneg %p105
      %p283 = pneg %p102
      %p284 = pneg %p126
      %p285 = pneg %p123
      %p286 = pneg %p147
      %p287 = pneg %p144
      %p288 = pneg %p168
      %p289 = pneg %p165
      %p290 = pneg %p189
      %p291 = pneg %p186
      %p292 = pneg %p215
      %p293 = pneg %p212
      %s294 = smul.u32 32, %s21
      %p295 = scmp.lt.s32.totalorder %s294, 127
      %s296 = scalar_select %p295, %s294, 127
      %s297 = smul.addr %s296, 8
      %s298 = scalar_lea.vmem %s8, %s297
      %s299 = smul.u32 32, %s21
      %p300 = scmp.lt.s32.totalorder %s299, 127
      %s301 = scalar_select %p300, %s299, 127
      %s302 = smul.addr %s301, 8
      %s303 = scalar_lea.vmem %s1, %s302
      %s304 = smul.u32 32, %s21
      %s305 = smul.u32 32, %s21
      %p306 = scmp.lt.s32.totalorder %s305, 127
      %s307 = scalar_select %p306, %s305, 127
      %s308 = smul.addr %s307, 8
      %s309 = scalar_lea.vmem %s8, %s308
      %s310 = smul.u32 32, %s21
      %v312 = vld [vmem:[%s303] sm:$0xff]
      %v313 = vld [vmem:[%s303 + $0x8] sm:$0xff]
      %v314 = vld [vmem:[%s303 + $0x10] sm:$0xff]
      %v315 = vld [vmem:[%s303 + $0x18] sm:$0xff]
      %v316 = vld [vmem:[%s303 + $0x20] sm:$0xff]
      %v317 = vld [vmem:[%s303 + $0x28] sm:$0xff]
      %v318 = vld [vmem:[%s303 + $0x30] sm:$0xff]
      %v319 = vld [vmem:[%s303 + $0x38] sm:$0xff]
      %v320 = vld [vmem:[%s303 + $0x40] sm:$0xff]
      %v321 = vld [vmem:[%s303 + $0x48] sm:$0xff]
      %v322 = vld [vmem:[%s303 + $0x50] sm:$0xff]
      %v323 = vld [vmem:[%s303 + $0x58] sm:$0xff]
      %v324 = vld [vmem:[%s303 + $0x60] sm:$0xff]
      %v325 = vld [vmem:[%s303 + $0x68] sm:$0xff]
      %v326 = vld [vmem:[%s303 + $0x70] sm:$0xff]
      %v327 = vld [vmem:[%s303 + $0x78] sm:$0xff]
      %v328 = vld [vmem:[%s303 + $0x80] sm:$0xff]
      %v329 = vld [vmem:[%s303 + $0x88] sm:$0xff]
      %v330 = vld [vmem:[%s303 + $0x90] sm:$0xff]
      %v331 = vld [vmem:[%s303 + $0x98] sm:$0xff]
      %v332 = vld [vmem:[%s303 + $0xa0] sm:$0xff]
      %v333 = vld [vmem:[%s303 + $0xa8] sm:$0xff]
      %v334 = vld [vmem:[%s303 + $0xb0] sm:$0xff]
      %v335 = vld [vmem:[%s303 + $0xb8] sm:$0xff]
      %v336 = vld [vmem:[%s303 + $0xc0] sm:$0xff]
      %v337 = vld [vmem:[%s303 + $0xc8] sm:$0xff]
      %v338 = vld [vmem:[%s303 + $0xd0] sm:$0xff]
      %v339 = vld [vmem:[%s303 + $0xd8] sm:$0xff]
      %v340 = vld [vmem:[%s303 + $0xe0] sm:$0xff]
      %v341 = vld [vmem:[%s303 + $0xe8] sm:$0xff]
      %v342 = vld [vmem:[%s303 + $0xf0] sm:$0xff]
      %v343 = vld [vmem:[%s303 + $0xf8] sm:$0xff]
      %v344 = vmul.f32 %v312, 2.0
      %v345 = vmul.f32 %v313, 2.0
      %v346 = vmul.f32 %v314, 2.0
      %v347 = vmul.f32 %v315, 2.0
      %v348 = vmul.f32 %v316, 2.0
      %v349 = vmul.f32 %v317, 2.0
      %v350 = vmul.f32 %v318, 2.0
      %v351 = vmul.f32 %v319, 2.0
      %v352 = vmul.f32 %v320, 2.0
      %v353 = vmul.f32 %v321, 2.0
      %v354 = vmul.f32 %v322, 2.0
      %v355 = vmul.f32 %v323, 2.0
      %v356 = vmul.f32 %v324, 2.0
      %v357 = vmul.f32 %v325, 2.0
      %v358 = vmul.f32 %v326, 2.0
      %v359 = vmul.f32 %v327, 2.0
      %v360 = vmul.f32 %v328, 2.0
      %v361 = vmul.f32 %v329, 2.0
      %v362 = vmul.f32 %v330, 2.0
      %v363 = vmul.f32 %v331, 2.0
      %v364 = vmul.f32 %v332, 2.0
      %v365 = vmul.f32 %v333, 2.0
      %v366 = vmul.f32 %v334, 2.0
      %v367 = vmul.f32 %v335, 2.0
      %v368 = vmul.f32 %v336, 2.0
      %v369 = vmul.f32 %v337, 2.0
      %v370 = vmul.f32 %v338, 2.0
      %v371 = vmul.f32 %v339, 2.0
      %v372 = vmul.f32 %v340, 2.0
      %v373 = vmul.f32 %v341, 2.0
      %v374 = vmul.f32 %v342, 2.0
      %v375 = vmul.f32 %v343, 2.0
      %v376 = vsub.f32 1.0, %v344
      %v377 = vsub.f32 1.0, %v345
      %v378 = vsub.f32 1.0, %v346
      %v379 = vsub.f32 1.0, %v347
      %v380 = vsub.f32 1.0, %v348
      %v381 = vsub.f32 1.0, %v349
      %v382 = vsub.f32 1.0, %v350
      %v383 = vsub.f32 1.0, %v351
      %v384 = vsub.f32 1.0, %v352
      %v385 = vsub.f32 1.0, %v353
      %v386 = vsub.f32 1.0, %v354
      %v387 = vsub.f32 1.0, %v355
      %v388 = vsub.f32 1.0, %v356
      %v389 = vsub.f32 1.0, %v357
      %v390 = vsub.f32 1.0, %v358
      %v391 = vsub.f32 1.0, %v359
      %v392 = vsub.f32 1.0, %v360
      %v393 = vsub.f32 1.0, %v361
      %v394 = vsub.f32 1.0, %v362
      %v395 = vsub.f32 1.0, %v363
      %v396 = vsub.f32 1.0, %v364
      %v397 = vsub.f32 1.0, %v365
      %v398 = vsub.f32 1.0, %v366
      %v399 = vsub.f32 1.0, %v367
      %v400 = vsub.f32 1.0, %v368
      %v401 = vsub.f32 1.0, %v369
      %v402 = vsub.f32 1.0, %v370
      %v403 = vsub.f32 1.0, %v371
      %v404 = vsub.f32 1.0, %v372
      %v405 = vsub.f32 1.0, %v373
      %v406 = vsub.f32 1.0, %v374
      %v407 = vsub.f32 1.0, %v375
      %v408 = vmul.f32 %v376, %v376
      %v409 = vmul.f32 %v377, %v377
      %v410 = vmul.f32 %v378, %v378
      %v411 = vmul.f32 %v379, %v379
      %v412 = vmul.f32 %v380, %v380
      %v413 = vmul.f32 %v381, %v381
      %v414 = vmul.f32 %v382, %v382
      %v415 = vmul.f32 %v383, %v383
      %v416 = vmul.f32 %v384, %v384
      %v417 = vmul.f32 %v385, %v385
      %v418 = vmul.f32 %v386, %v386
      %v419 = vmul.f32 %v387, %v387
      %v420 = vmul.f32 %v388, %v388
      %v421 = vmul.f32 %v389, %v389
      %v422 = vmul.f32 %v390, %v390
      %v423 = vmul.f32 %v391, %v391
      %v424 = vmul.f32 %v392, %v392
      %v425 = vmul.f32 %v393, %v393
      %v426 = vmul.f32 %v394, %v394
      %v427 = vmul.f32 %v395, %v395
      %v428 = vmul.f32 %v396, %v396
      %v429 = vmul.f32 %v397, %v397
      %v430 = vmul.f32 %v398, %v398
      %v431 = vmul.f32 %v399, %v399
      %v432 = vmul.f32 %v400, %v400
      %v433 = vmul.f32 %v401, %v401
      %v434 = vmul.f32 %v402, %v402
      %v435 = vmul.f32 %v403, %v403
      %v436 = vmul.f32 %v404, %v404
      %v437 = vmul.f32 %v405, %v405
      %v438 = vmul.f32 %v406, %v406
      %v439 = vmul.f32 %v407, %v407
      %440 = vadd.xlane.f32.xlu0 %v408
      %v441 = vpop.xlane.xlu0 %440
      %442 = vadd.xlane.f32.xlu0 %v409
      %v443 = vpop.xlane.xlu0 %442
      %444 = vadd.xlane.f32.xlu0 %v410
      %v445 = vpop.xlane.xlu0 %444
      %446 = vadd.xlane.f32.xlu0 %v411
      %v447 = vpop.xlane.xlu0 %446
      %448 = vadd.xlane.f32.xlu0 %v412
      %v449 = vpop.xlane.xlu0 %448
      %450 = vadd.xlane.f32.xlu0 %v413
      %v451 = vpop.xlane.xlu0 %450
      %452 = vadd.xlane.f32.xlu0 %v414
      %v453 = vpop.xlane.xlu0 %452
      %454 = vadd.xlane.f32.xlu0 %v415
      %v455 = vpop.xlane.xlu0 %454
      %456 = vadd.xlane.f32.xlu0 %v416
      %v457 = vpop.xlane.xlu0 %456
      %458 = vadd.xlane.f32.xlu0 %v417
      %v459 = vpop.xlane.xlu0 %458
      %460 = vadd.xlane.f32.xlu0 %v418
      %v461 = vpop.xlane.xlu0 %460
      %462 = vadd.xlane.f32.xlu0 %v419
      %v463 = vpop.xlane.xlu0 %462
      %464 = vadd.xlane.f32.xlu0 %v420
      %v465 = vpop.xlane.xlu0 %464
      %466 = vadd.xlane.f32.xlu0 %v421
      %v467 = vpop.xlane.xlu0 %466
      %468 = vadd.xlane.f32.xlu0 %v422
      %v469 = vpop.xlane.xlu0 %468
      %470 = vadd.xlane.f32.xlu0 %v423
      %v471 = vpop.xlane.xlu0 %470
      %472 = vadd.xlane.f32.xlu0 %v424
      %v473 = vpop.xlane.xlu0 %472
      %474 = vadd.xlane.f32.xlu0 %v425
      %v475 = vpop.xlane.xlu0 %474
      %476 = vadd.xlane.f32.xlu0 %v426
      %v477 = vpop.xlane.xlu0 %476
      %478 = vadd.xlane.f32.xlu0 %v427
      %v479 = vpop.xlane.xlu0 %478
      %480 = vadd.xlane.f32.xlu0 %v428
      %v481 = vpop.xlane.xlu0 %480
      %482 = vadd.xlane.f32.xlu0 %v429
      %v483 = vpop.xlane.xlu0 %482
      %484 = vadd.xlane.f32.xlu0 %v430
      %v485 = vpop.xlane.xlu0 %484
      %486 = vadd.xlane.f32.xlu0 %v431
      %v487 = vpop.xlane.xlu0 %486
      %488 = vadd.xlane.f32.xlu0 %v432
      %v489 = vpop.xlane.xlu0 %488
      %490 = vadd.xlane.f32.xlu0 %v433
      %v491 = vpop.xlane.xlu0 %490
      %492 = vadd.xlane.f32.xlu0 %v434
      %v493 = vpop.xlane.xlu0 %492
      %494 = vadd.xlane.f32.xlu0 %v435
      %v495 = vpop.xlane.xlu0 %494
      %496 = vadd.xlane.f32.xlu0 %v436
      %v497 = vpop.xlane.xlu0 %496
      %498 = vadd.xlane.f32.xlu0 %v437
      %v499 = vpop.xlane.xlu0 %498
      %500 = vadd.xlane.f32.xlu0 %v438
      %v501 = vpop.xlane.xlu0 %500
      %502 = vadd.xlane.f32.xlu0 %v439
      %v503 = vpop.xlane.xlu0 %502
      %v504 = vrsqrt.pop %v441
      %v505 = vmul.f32 %v441, %v504
      %vm506 = vcmp.eq.f32.partialorder %v441, inf
      %v507 = vsel %vm506, %v441, %v505
      %vm508 = vcmp.eq.f32.partialorder %v441, 0.0
      %v509 = vand.u32 %v441, 2147483648
      %v510 = vsel %vm508, %v509, %v507
      %v511 = vrsqrt.pop %v443
      %v512 = vmul.f32 %v443, %v511
      %vm513 = vcmp.eq.f32.partialorder %v443, inf
      %v514 = vsel %vm513, %v443, %v512
      %vm515 = vcmp.eq.f32.partialorder %v443, 0.0
      %v516 = vand.u32 %v443, 2147483648
      %v517 = vsel %vm515, %v516, %v514
      %v518 = vrsqrt.pop %v445
      %v519 = vmul.f32 %v445, %v518
      %vm520 = vcmp.eq.f32.partialorder %v445, inf
      %v521 = vsel %vm520, %v445, %v519
      %vm522 = vcmp.eq.f32.partialorder %v445, 0.0
      %v523 = vand.u32 %v445, 2147483648
      %v524 = vsel %vm522, %v523, %v521
      %v525 = vrsqrt.pop %v447
      %v526 = vmul.f32 %v447, %v525
      %vm527 = vcmp.eq.f32.partialorder %v447, inf
      %v528 = vsel %vm527, %v447, %v526
      %vm529 = vcmp.eq.f32.partialorder %v447, 0.0
      %v530 = vand.u32 %v447, 2147483648
      %v531 = vsel %vm529, %v530, %v528
      %v532 = vrsqrt.pop %v449
      %v533 = vmul.f32 %v449, %v532
      %vm534 = vcmp.eq.f32.partialorder %v449, inf
      %v535 = vsel %vm534, %v449, %v533
      %vm536 = vcmp.eq.f32.partialorder %v449, 0.0
      %v537 = vand.u32 %v449, 2147483648
      %v538 = vsel %vm536, %v537, %v535
      %v539 = vrsqrt.pop %v451
      %v540 = vmul.f32 %v451, %v539
      %vm541 = vcmp.eq.f32.partialorder %v451, inf
      %v542 = vsel %vm541, %v451, %v540
      %vm543 = vcmp.eq.f32.partialorder %v451, 0.0
      %v544 = vand.u32 %v451, 2147483648
      %v545 = vsel %vm543, %v544, %v542
      %v546 = vrsqrt.pop %v453
      %v547 = vmul.f32 %v453, %v546
      %vm548 = vcmp.eq.f32.partialorder %v453, inf
      %v549 = vsel %vm548, %v453, %v547
      %vm550 = vcmp.eq.f32.partialorder %v453, 0.0
      %v551 = vand.u32 %v453, 2147483648
      %v552 = vsel %vm550, %v551, %v549
      %v553 = vrsqrt.pop %v455
      %v554 = vmul.f32 %v455, %v553
      %vm555 = vcmp.eq.f32.partialorder %v455, inf
      %v556 = vsel %vm555, %v455, %v554
      %vm557 = vcmp.eq.f32.partialorder %v455, 0.0
      %v558 = vand.u32 %v455, 2147483648
      %v559 = vsel %vm557, %v558, %v556
      %v560 = vrsqrt.pop %v457
      %v561 = vmul.f32 %v457, %v560
      %vm562 = vcmp.eq.f32.partialorder %v457, inf
      %v563 = vsel %vm562, %v457, %v561
      %vm564 = vcmp.eq.f32.partialorder %v457, 0.0
      %v565 = vand.u32 %v457, 2147483648
      %v566 = vsel %vm564, %v565, %v563
      %v567 = vrsqrt.pop %v459
      %v568 = vmul.f32 %v459, %v567
      %vm569 = vcmp.eq.f32.partialorder %v459, inf
      %v570 = vsel %vm569, %v459, %v568
      %vm571 = vcmp.eq.f32.partialorder %v459, 0.0
      %v572 = vand.u32 %v459, 2147483648
      %v573 = vsel %vm571, %v572, %v570
      %v574 = vrsqrt.pop %v461
      %v575 = vmul.f32 %v461, %v574
      %vm576 = vcmp.eq.f32.partialorder %v461, inf
      %v577 = vsel %vm576, %v461, %v575
      %vm578 = vcmp.eq.f32.partialorder %v461, 0.0
      %v579 = vand.u32 %v461, 2147483648
      %v580 = vsel %vm578, %v579, %v577
      %v581 = vrsqrt.pop %v463
      %v582 = vmul.f32 %v463, %v581
      %vm583 = vcmp.eq.f32.partialorder %v463, inf
      %v584 = vsel %vm583, %v463, %v582
      %vm585 = vcmp.eq.f32.partialorder %v463, 0.0
      %v586 = vand.u32 %v463, 2147483648
      %v587 = vsel %vm585, %v586, %v584
      %v588 = vrsqrt.pop %v465
      %v589 = vmul.f32 %v465, %v588
      %vm590 = vcmp.eq.f32.partialorder %v465, inf
      %v591 = vsel %vm590, %v465, %v589
      %vm592 = vcmp.eq.f32.partialorder %v465, 0.0
      %v593 = vand.u32 %v465, 2147483648
      %v594 = vsel %vm592, %v593, %v591
      %v595 = vrsqrt.pop %v467
      %v596 = vmul.f32 %v467, %v595
      %vm597 = vcmp.eq.f32.partialorder %v467, inf
      %v598 = vsel %vm597, %v467, %v596
      %vm599 = vcmp.eq.f32.partialorder %v467, 0.0
      %v600 = vand.u32 %v467, 2147483648
      %v601 = vsel %vm599, %v600, %v598
      %v602 = vrsqrt.pop %v469
      %v603 = vmul.f32 %v469, %v602
      %vm604 = vcmp.eq.f32.partialorder %v469, inf
      %v605 = vsel %vm604, %v469, %v603
      %vm606 = vcmp.eq.f32.partialorder %v469, 0.0
      %v607 = vand.u32 %v469, 2147483648
      %v608 = vsel %vm606, %v607, %v605
      %v609 = vrsqrt.pop %v471
      %v610 = vmul.f32 %v471, %v609
      %vm611 = vcmp.eq.f32.partialorder %v471, inf
      %v612 = vsel %vm611, %v471, %v610
      %vm613 = vcmp.eq.f32.partialorder %v471, 0.0
      %v614 = vand.u32 %v471, 2147483648
      %v615 = vsel %vm613, %v614, %v612
      %v616 = vrsqrt.pop %v473
      %v617 = vmul.f32 %v473, %v616
      %vm618 = vcmp.eq.f32.partialorder %v473, inf
      %v619 = vsel %vm618, %v473, %v617
      %vm620 = vcmp.eq.f32.partialorder %v473, 0.0
      %v621 = vand.u32 %v473, 2147483648
      %v622 = vsel %vm620, %v621, %v619
      %v623 = vrsqrt.pop %v475
      %v624 = vmul.f32 %v475, %v623
      %vm625 = vcmp.eq.f32.partialorder %v475, inf
      %v626 = vsel %vm625, %v475, %v624
      %vm627 = vcmp.eq.f32.partialorder %v475, 0.0
      %v628 = vand.u32 %v475, 2147483648
      %v629 = vsel %vm627, %v628, %v626
      %v630 = vrsqrt.pop %v477
      %v631 = vmul.f32 %v477, %v630
      %vm632 = vcmp.eq.f32.partialorder %v477, inf
      %v633 = vsel %vm632, %v477, %v631
      %vm634 = vcmp.eq.f32.partialorder %v477, 0.0
      %v635 = vand.u32 %v477, 2147483648
      %v636 = vsel %vm634, %v635, %v633
      %v637 = vrsqrt.pop %v479
      %v638 = vmul.f32 %v479, %v637
      %vm639 = vcmp.eq.f32.partialorder %v479, inf
      %v640 = vsel %vm639, %v479, %v638
      %vm641 = vcmp.eq.f32.partialorder %v479, 0.0
      %v642 = vand.u32 %v479, 2147483648
      %v643 = vsel %vm641, %v642, %v640
      %v644 = vrsqrt.pop %v481
      %v645 = vmul.f32 %v481, %v644
      %vm646 = vcmp.eq.f32.partialorder %v481, inf
      %v647 = vsel %vm646, %v481, %v645
      %vm648 = vcmp.eq.f32.partialorder %v481, 0.0
      %v649 = vand.u32 %v481, 2147483648
      %v650 = vsel %vm648, %v649, %v647
      %v651 = vrsqrt.pop %v483
      %v652 = vmul.f32 %v483, %v651
      %vm653 = vcmp.eq.f32.partialorder %v483, inf
      %v654 = vsel %vm653, %v483, %v652
      %vm655 = vcmp.eq.f32.partialorder %v483, 0.0
      %v656 = vand.u32 %v483, 2147483648
      %v657 = vsel %vm655, %v656, %v654
      %v658 = vrsqrt.pop %v485
      %v659 = vmul.f32 %v485, %v658
      %vm660 = vcmp.eq.f32.partialorder %v485, inf
      %v661 = vsel %vm660, %v485, %v659
      %vm662 = vcmp.eq.f32.partialorder %v485, 0.0
      %v663 = vand.u32 %v485, 2147483648
      %v664 = vsel %vm662, %v663, %v661
      %v665 = vrsqrt.pop %v487
      %v666 = vmul.f32 %v487, %v665
      %vm667 = vcmp.eq.f32.partialorder %v487, inf
      %v668 = vsel %vm667, %v487, %v666
      %vm669 = vcmp.eq.f32.partialorder %v487, 0.0
      %v670 = vand.u32 %v487, 2147483648
      %v671 = vsel %vm669, %v670, %v668
      %v672 = vrsqrt.pop %v489
      %v673 = vmul.f32 %v489, %v672
      %vm674 = vcmp.eq.f32.partialorder %v489, inf
      %v675 = vsel %vm674, %v489, %v673
      %vm676 = vcmp.eq.f32.partialorder %v489, 0.0
      %v677 = vand.u32 %v489, 2147483648
      %v678 = vsel %vm676, %v677, %v675
      %v679 = vrsqrt.pop %v491
      %v680 = vmul.f32 %v491, %v679
      %vm681 = vcmp.eq.f32.partialorder %v491, inf
      %v682 = vsel %vm681, %v491, %v680
      %vm683 = vcmp.eq.f32.partialorder %v491, 0.0
      %v684 = vand.u32 %v491, 2147483648
      %v685 = vsel %vm683, %v684, %v682
      %v686 = vrsqrt.pop %v493
      %v687 = vmul.f32 %v493, %v686
      %vm688 = vcmp.eq.f32.partialorder %v493, inf
      %v689 = vsel %vm688, %v493, %v687
      %vm690 = vcmp.eq.f32.partialorder %v493, 0.0
      %v691 = vand.u32 %v493, 2147483648
      %v692 = vsel %vm690, %v691, %v689
      %v693 = vrsqrt.pop %v495
      %v694 = vmul.f32 %v495, %v693
      %vm695 = vcmp.eq.f32.partialorder %v495, inf
      %v696 = vsel %vm695, %v495, %v694
      %vm697 = vcmp.eq.f32.partialorder %v495, 0.0
      %v698 = vand.u32 %v495, 2147483648
      %v699 = vsel %vm697, %v698, %v696
      %v700 = vrsqrt.pop %v497
      %v701 = vmul.f32 %v497, %v700
      %vm702 = vcmp.eq.f32.partialorder %v497, inf
      %v703 = vsel %vm702, %v497, %v701
      %vm704 = vcmp.eq.f32.partialorder %v497, 0.0
      %v705 = vand.u32 %v497, 2147483648
      %v706 = vsel %vm704, %v705, %v703
      %v707 = vrsqrt.pop %v499
      %v708 = vmul.f32 %v499, %v707
      %vm709 = vcmp.eq.f32.partialorder %v499, inf
      %v710 = vsel %vm709, %v499, %v708
      %vm711 = vcmp.eq.f32.partialorder %v499, 0.0
      %v712 = vand.u32 %v499, 2147483648
      %v713 = vsel %vm711, %v712, %v710
      %v714 = vrsqrt.pop %v501
      %v715 = vmul.f32 %v501, %v714
      %vm716 = vcmp.eq.f32.partialorder %v501, inf
      %v717 = vsel %vm716, %v501, %v715
      %vm718 = vcmp.eq.f32.partialorder %v501, 0.0
      %v719 = vand.u32 %v501, 2147483648
      %v720 = vsel %vm718, %v719, %v717
      %v721 = vrsqrt.pop %v503
      %v722 = vmul.f32 %v503, %v721
      %vm723 = vcmp.eq.f32.partialorder %v503, inf
      %v724 = vsel %vm723, %v503, %v722
      %vm725 = vcmp.eq.f32.partialorder %v503, 0.0
      %v726 = vand.u32 %v503, 2147483648
      %v727 = vsel %vm725, %v726, %v724
      %v728 = vadd.f32 %v441, 1.0
      %v729 = vadd.f32 %v443, 1.0
      %v730 = vadd.f32 %v445, 1.0
      %v731 = vadd.f32 %v447, 1.0
      %v732 = vadd.f32 %v449, 1.0
      %v733 = vadd.f32 %v451, 1.0
      %v734 = vadd.f32 %v453, 1.0
      %v735 = vadd.f32 %v455, 1.0
      %v736 = vadd.f32 %v457, 1.0
      %v737 = vadd.f32 %v459, 1.0
      %v738 = vadd.f32 %v461, 1.0
      %v739 = vadd.f32 %v463, 1.0
      %v740 = vadd.f32 %v465, 1.0
      %v741 = vadd.f32 %v467, 1.0
      %v742 = vadd.f32 %v469, 1.0
      %v743 = vadd.f32 %v471, 1.0
      %v744 = vadd.f32 %v473, 1.0
      %v745 = vadd.f32 %v475, 1.0
      %v746 = vadd.f32 %v477, 1.0
      %v747 = vadd.f32 %v479, 1.0
      %v748 = vadd.f32 %v481, 1.0
      %v749 = vadd.f32 %v483, 1.0
      %v750 = vadd.f32 %v485, 1.0
      %v751 = vadd.f32 %v487, 1.0
      %v752 = vadd.f32 %v489, 1.0
      %v753 = vadd.f32 %v491, 1.0
      %v754 = vadd.f32 %v493, 1.0
      %v755 = vadd.f32 %v495, 1.0
      %v756 = vadd.f32 %v497, 1.0
      %v757 = vadd.f32 %v499, 1.0
      %v758 = vadd.f32 %v501, 1.0
      %v759 = vadd.f32 %v503, 1.0
      %v760 = vmul.f32 %v728, %v510
      %v761 = vmul.f32 %v729, %v517
      %v762 = vmul.f32 %v730, %v524
      %v763 = vmul.f32 %v731, %v531
      %v764 = vmul.f32 %v732, %v538
      %v765 = vmul.f32 %v733, %v545
      %v766 = vmul.f32 %v734, %v552
      %v767 = vmul.f32 %v735, %v559
      %v768 = vmul.f32 %v736, %v566
      %v769 = vmul.f32 %v737, %v573
      %v770 = vmul.f32 %v738, %v580
      %v771 = vmul.f32 %v739, %v587
      %v772 = vmul.f32 %v740, %v594
      %v773 = vmul.f32 %v741, %v601
      %v774 = vmul.f32 %v742, %v608
      %v775 = vmul.f32 %v743, %v615
      %v776 = vmul.f32 %v744, %v622
      %v777 = vmul.f32 %v745, %v629
      %v778 = vmul.f32 %v746, %v636
      %v779 = vmul.f32 %v747, %v643
      %v780 = vmul.f32 %v748, %v650
      %v781 = vmul.f32 %v749, %v657
      %v782 = vmul.f32 %v750, %v664
      %v783 = vmul.f32 %v751, %v671
      %v784 = vmul.f32 %v752, %v678
      %v785 = vmul.f32 %v753, %v685
      %v786 = vmul.f32 %v754, %v692
      %v787 = vmul.f32 %v755, %v699
      %v788 = vmul.f32 %v756, %v706
      %v789 = vmul.f32 %v757, %v713
      %v790 = vmul.f32 %v758, %v720
      %v791 = vmul.f32 %v759, %v727
      %v792 = vrcp.pop %v510
      %v793 = vrcp.pop %v517
      %v794 = vrcp.pop %v524
      %v795 = vrcp.pop %v531
      %v796 = vrcp.pop %v538
      %v797 = vrcp.pop %v545
      %v798 = vrcp.pop %v552
      %v799 = vrcp.pop %v559
      %v800 = vrcp.pop %v566
      %v801 = vrcp.pop %v573
      %v802 = vrcp.pop %v580
      %v803 = vrcp.pop %v587
      %v804 = vrcp.pop %v594
      %v805 = vrcp.pop %v601
      %v806 = vrcp.pop %v608
      %v807 = vrcp.pop %v615
      %v808 = vrcp.pop %v622
      %v809 = vrcp.pop %v629
      %v810 = vrcp.pop %v636
      %v811 = vrcp.pop %v643
      %v812 = vrcp.pop %v650
      %v813 = vrcp.pop %v657
      %v814 = vrcp.pop %v664
      %v815 = vrcp.pop %v671
      %v816 = vrcp.pop %v678
      %v817 = vrcp.pop %v685
      %v818 = vrcp.pop %v692
      %v819 = vrcp.pop %v699
      %v820 = vrcp.pop %v706
      %v821 = vrcp.pop %v713
      %v822 = vrcp.pop %v720
      %v823 = vrcp.pop %v727
      %v824 = vrcp.pop %v760
      %v825 = vrcp.pop %v761
      %v826 = vrcp.pop %v762
      %v827 = vrcp.pop %v763
      %v828 = vrcp.pop %v764
      %v829 = vrcp.pop %v765
      %v830 = vrcp.pop %v766
      %v831 = vrcp.pop %v767
      %v832 = vrcp.pop %v768
      %v833 = vrcp.pop %v769
      %v834 = vrcp.pop %v770
      %v835 = vrcp.pop %v771
      %v836 = vrcp.pop %v772
      %v837 = vrcp.pop %v773
      %v838 = vrcp.pop %v774
      %v839 = vrcp.pop %v775
      %v840 = vrcp.pop %v776
      %v841 = vrcp.pop %v777
      %v842 = vrcp.pop %v778
      %v843 = vrcp.pop %v779
      %v844 = vrcp.pop %v780
      %v845 = vrcp.pop %v781
      %v846 = vrcp.pop %v782
      %v847 = vrcp.pop %v783
      %v848 = vrcp.pop %v784
      %v849 = vrcp.pop %v785
      %v850 = vrcp.pop %v786
      %v851 = vrcp.pop %v787
      %v852 = vrcp.pop %v788
      %v853 = vrcp.pop %v789
      %v854 = vrcp.pop %v790
      %v855 = vrcp.pop %v791
      %v856 = vld [vmem:[#allocation2] sm:$0x1]
      %vm857 = vcmp.gt.f32.partialorder %v856, 0.5
      %v858 = vmul.f32 %v441, %v824
      %v859 = vmul.f32 %v443, %v825
      %v860 = vmul.f32 %v445, %v826
      %v861 = vmul.f32 %v447, %v827
      %v862 = vmul.f32 %v449, %v828
      %v863 = vmul.f32 %v451, %v829
      %v864 = vmul.f32 %v453, %v830
      %v865 = vmul.f32 %v455, %v831
      %v866 = vmul.f32 %v457, %v832
      %v867 = vmul.f32 %v459, %v833
      %v868 = vmul.f32 %v461, %v834
      %v869 = vmul.f32 %v463, %v835
      %v870 = vmul.f32 %v465, %v836
      %v871 = vmul.f32 %v467, %v837
      %v872 = vmul.f32 %v469, %v838
      %v873 = vmul.f32 %v471, %v839
      %v874 = vmul.f32 %v473, %v840
      %v875 = vmul.f32 %v475, %v841
      %v876 = vmul.f32 %v477, %v842
      %v877 = vmul.f32 %v479, %v843
      %v878 = vmul.f32 %v481, %v844
      %v879 = vmul.f32 %v483, %v845
      %v880 = vmul.f32 %v485, %v846
      %v881 = vmul.f32 %v487, %v847
      %v882 = vmul.f32 %v489, %v848
      %v883 = vmul.f32 %v491, %v849
      %v884 = vmul.f32 %v493, %v850
      %v885 = vmul.f32 %v495, %v851
      %v886 = vmul.f32 %v497, %v852
      %v887 = vmul.f32 %v499, %v853
      %v888 = vmul.f32 %v501, %v854
      %v889 = vmul.f32 %v503, %v855
      %v890 = vsel %vm857, 1, 0
      %v891 = vlaneseq
      %v892 = vshrl.u32 %v891, 7
      %v893 = vsub.s32 0, %v892
      %v894 = vrot.slane %v890, %v893
      %vm895 = vcmp.eq.s32.totalorder %v894, 1
      %v896 = vsel %vm895, %v792, %v858
      %v897 = vsel %vm895, %v793, %v859
      %v898 = vsel %vm895, %v794, %v860
      %v899 = vsel %vm895, %v795, %v861
      %v900 = vsel %vm895, %v796, %v862
      %v901 = vsel %vm895, %v797, %v863
      %v902 = vsel %vm895, %v798, %v864
      %v903 = vsel %vm895, %v799, %v865
      %v904 = vsel %vm895, %v800, %v866
      %v905 = vsel %vm895, %v801, %v867
      %v906 = vsel %vm895, %v802, %v868
      %v907 = vsel %vm895, %v803, %v869
      %v908 = vsel %vm895, %v804, %v870
      %v909 = vsel %vm895, %v805, %v871
      %v910 = vsel %vm895, %v806, %v872
      %v911 = vsel %vm895, %v807, %v873
      %v912 = vsel %vm895, %v808, %v874
      %v913 = vsel %vm895, %v809, %v875
      %v914 = vsel %vm895, %v810, %v876
      %v915 = vsel %vm895, %v811, %v877
      %v916 = vsel %vm895, %v812, %v878
      %v917 = vsel %vm895, %v813, %v879
      %v918 = vsel %vm895, %v814, %v880
      %v919 = vsel %vm895, %v815, %v881
      %v920 = vsel %vm895, %v816, %v882
      %v921 = vsel %vm895, %v817, %v883
      %v922 = vsel %vm895, %v818, %v884
      %v923 = vsel %vm895, %v819, %v885
      %v924 = vsel %vm895, %v820, %v886
      %v925 = vsel %vm895, %v821, %v887
      %v926 = vsel %vm895, %v822, %v888
      %v927 = vsel %vm895, %v823, %v889
      %929 = vset.pattern.permute.xlu0 0
      %930 = vperm.xlu0 %929, %v896
      %v931 = vpop.permute.xlu0 %930
      %934 = vset.pattern.permute.xlu0 0
      %935 = vperm.xlu0 %934, %v897
      %v936 = vpop.permute.xlu0 %935
      %939 = vset.pattern.permute.xlu0 0
      %940 = vperm.xlu0 %939, %v898
      %v941 = vpop.permute.xlu0 %940
      %944 = vset.pattern.permute.xlu0 0
      %945 = vperm.xlu0 %944, %v899
      %v946 = vpop.permute.xlu0 %945
      %949 = vset.pattern.permute.xlu0 0
      %950 = vperm.xlu0 %949, %v900
      %v951 = vpop.permute.xlu0 %950
      %954 = vset.pattern.permute.xlu0 0
      %955 = vperm.xlu0 %954, %v901
      %v956 = vpop.permute.xlu0 %955
      %959 = vset.pattern.permute.xlu0 0
      %960 = vperm.xlu0 %959, %v902
      %v961 = vpop.permute.xlu0 %960
      %964 = vset.pattern.permute.xlu0 0
      %965 = vperm.xlu0 %964, %v903
      %v966 = vpop.permute.xlu0 %965
      %969 = vset.pattern.permute.xlu0 0
      %970 = vperm.xlu0 %969, %v904
      %v971 = vpop.permute.xlu0 %970
      %974 = vset.pattern.permute.xlu0 0
      %975 = vperm.xlu0 %974, %v905
      %v976 = vpop.permute.xlu0 %975
      %979 = vset.pattern.permute.xlu0 0
      %980 = vperm.xlu0 %979, %v906
      %v981 = vpop.permute.xlu0 %980
      %984 = vset.pattern.permute.xlu0 0
      %985 = vperm.xlu0 %984, %v907
      %v986 = vpop.permute.xlu0 %985
      %989 = vset.pattern.permute.xlu0 0
      %990 = vperm.xlu0 %989, %v908
      %v991 = vpop.permute.xlu0 %990
      %994 = vset.pattern.permute.xlu0 0
      %995 = vperm.xlu0 %994, %v909
      %v996 = vpop.permute.xlu0 %995
      %999 = vset.pattern.permute.xlu0 0
      %1000 = vperm.xlu0 %999, %v910
      %v1001 = vpop.permute.xlu0 %1000
      %1004 = vset.pattern.permute.xlu0 0
      %1005 = vperm.xlu0 %1004, %v911
      %v1006 = vpop.permute.xlu0 %1005
      %1009 = vset.pattern.permute.xlu0 0
      %1010 = vperm.xlu0 %1009, %v912
      %v1011 = vpop.permute.xlu0 %1010
      %1014 = vset.pattern.permute.xlu0 0
      %1015 = vperm.xlu0 %1014, %v913
      %v1016 = vpop.permute.xlu0 %1015
      %1019 = vset.pattern.permute.xlu0 0
      %1020 = vperm.xlu0 %1019, %v914
      %v1021 = vpop.permute.xlu0 %1020
      %1024 = vset.pattern.permute.xlu0 0
      %1025 = vperm.xlu0 %1024, %v915
      %v1026 = vpop.permute.xlu0 %1025
      %1029 = vset.pattern.permute.xlu0 0
      %1030 = vperm.xlu0 %1029, %v916
      %v1031 = vpop.permute.xlu0 %1030
      %1034 = vset.pattern.permute.xlu0 0
      %1035 = vperm.xlu0 %1034, %v917
      %v1036 = vpop.permute.xlu0 %1035
      %1039 = vset.pattern.permute.xlu0 0
      %1040 = vperm.xlu0 %1039, %v918
      %v1041 = vpop.permute.xlu0 %1040
      %1044 = vset.pattern.permute.xlu0 0
      %1045 = vperm.xlu0 %1044, %v919
      %v1046 = vpop.permute.xlu0 %1045
      %1049 = vset.pattern.permute.xlu0 0
      %1050 = vperm.xlu0 %1049, %v920
      %v1051 = vpop.permute.xlu0 %1050
      %1054 = vset.pattern.permute.xlu0 0
      %1055 = vperm.xlu0 %1054, %v921
      %v1056 = vpop.permute.xlu0 %1055
      %1059 = vset.pattern.permute.xlu0 0
      %1060 = vperm.xlu0 %1059, %v922
      %v1061 = vpop.permute.xlu0 %1060
      %1064 = vset.pattern.permute.xlu0 0
      %1065 = vperm.xlu0 %1064, %v923
      %v1066 = vpop.permute.xlu0 %1065
      %1069 = vset.pattern.permute.xlu0 0
      %1070 = vperm.xlu0 %1069, %v924
      %v1071 = vpop.permute.xlu0 %1070
      %1074 = vset.pattern.permute.xlu0 0
      %1075 = vperm.xlu0 %1074, %v925
      %v1076 = vpop.permute.xlu0 %1075
      %1079 = vset.pattern.permute.xlu0 0
      %1080 = vperm.xlu0 %1079, %v926
      %v1081 = vpop.permute.xlu0 %1080
      %1084 = vset.pattern.permute.xlu0 0
      %1085 = vperm.xlu0 %1084, %v927
      %v1086 = vpop.permute.xlu0 %1085
      %v1088 = vmul.f32 %v376, %v931
      %v1089 = vmul.f32 %v377, %v936
      %v1090 = vmul.f32 %v378, %v941
      %v1091 = vmul.f32 %v379, %v946
      %v1092 = vmul.f32 %v380, %v951
      %v1093 = vmul.f32 %v381, %v956
      %v1094 = vmul.f32 %v382, %v961
      %v1095 = vmul.f32 %v383, %v966
      %v1096 = vmul.f32 %v384, %v971
      %v1097 = vmul.f32 %v385, %v976
      %v1098 = vmul.f32 %v386, %v981
      %v1099 = vmul.f32 %v387, %v986
      %v1100 = vmul.f32 %v388, %v991
      %v1101 = vmul.f32 %v389, %v996
      %v1102 = vmul.f32 %v390, %v1001
      %v1103 = vmul.f32 %v391, %v1006
      %v1104 = vmul.f32 %v392, %v1011
      %v1105 = vmul.f32 %v393, %v1016
      %v1106 = vmul.f32 %v394, %v1021
      %v1107 = vmul.f32 %v395, %v1026
      %v1108 = vmul.f32 %v396, %v1031
      %v1109 = vmul.f32 %v397, %v1036
      %v1110 = vmul.f32 %v398, %v1041
      %v1111 = vmul.f32 %v399, %v1046
      %v1112 = vmul.f32 %v400, %v1051
      %v1113 = vmul.f32 %v401, %v1056
      %v1114 = vmul.f32 %v402, %v1061
      %v1115 = vmul.f32 %v403, %v1066
      %v1116 = vmul.f32 %v404, %v1071
      %v1117 = vmul.f32 %v405, %v1076
      %v1118 = vmul.f32 %v406, %v1081
      %v1119 = vmul.f32 %v407, %v1086
      %v1120 = vand.u32 2147483647, %v1088
      %v1121 = vand.u32 2147483647, %v1089
      %v1122 = vand.u32 2147483647, %v1090
      %v1123 = vand.u32 2147483647, %v1091
      %v1124 = vand.u32 2147483647, %v1092
      %v1125 = vand.u32 2147483647, %v1093
      %v1126 = vand.u32 2147483647, %v1094
      %v1127 = vand.u32 2147483647, %v1095
      %v1128 = vand.u32 2147483647, %v1096
      %v1129 = vand.u32 2147483647, %v1097
      %v1130 = vand.u32 2147483647, %v1098
      %v1131 = vand.u32 2147483647, %v1099
      %v1132 = vand.u32 2147483647, %v1100
      %v1133 = vand.u32 2147483647, %v1101
      %v1134 = vand.u32 2147483647, %v1102
      %v1135 = vand.u32 2147483647, %v1103
      %v1136 = vand.u32 2147483647, %v1104
      %v1137 = vand.u32 2147483647, %v1105
      %v1138 = vand.u32 2147483647, %v1106
      %v1139 = vand.u32 2147483647, %v1107
      %v1140 = vand.u32 2147483647, %v1108
      %v1141 = vand.u32 2147483647, %v1109
      %v1142 = vand.u32 2147483647, %v1110
      %v1143 = vand.u32 2147483647, %v1111
      %v1144 = vand.u32 2147483647, %v1112
      %v1145 = vand.u32 2147483647, %v1113
      %v1146 = vand.u32 2147483647, %v1114
      %v1147 = vand.u32 2147483647, %v1115
      %v1148 = vand.u32 2147483647, %v1116
      %v1149 = vand.u32 2147483647, %v1117
      %v1150 = vand.u32 2147483647, %v1118
      %v1151 = vand.u32 2147483647, %v1119
      %v1152 = vmul.f32 %v1120, -0.0012624911
      %v1153 = vmul.f32 %v1121, -0.0012624911
      %v1154 = vmul.f32 %v1122, -0.0012624911
      %v1155 = vmul.f32 %v1123, -0.0012624911
      %v1156 = vmul.f32 %v1124, -0.0012624911
      %v1157 = vmul.f32 %v1125, -0.0012624911
      %v1158 = vmul.f32 %v1126, -0.0012624911
      %v1159 = vmul.f32 %v1127, -0.0012624911
      %v1160 = vmul.f32 %v1128, -0.0012624911
      %v1161 = vmul.f32 %v1129, -0.0012624911
      %v1162 = vmul.f32 %v1130, -0.0012624911
      %v1163 = vmul.f32 %v1131, -0.0012624911
      %v1164 = vmul.f32 %v1132, -0.0012624911
      %v1165 = vmul.f32 %v1133, -0.0012624911
      %v1166 = vmul.f32 %v1134, -0.0012624911
      %v1167 = vmul.f32 %v1135, -0.0012624911
      %v1168 = vmul.f32 %v1136, -0.0012624911
      %v1169 = vmul.f32 %v1137, -0.0012624911
      %v1170 = vmul.f32 %v1138, -0.0012624911
      %v1171 = vmul.f32 %v1139, -0.0012624911
      %v1172 = vmul.f32 %v1140, -0.0012624911
      %v1173 = vmul.f32 %v1141, -0.0012624911
      %v1174 = vmul.f32 %v1142, -0.0012624911
      %v1175 = vmul.f32 %v1143, -0.0012624911
      %v1176 = vmul.f32 %v1144, -0.0012624911
      %v1177 = vmul.f32 %v1145, -0.0012624911
      %v1178 = vmul.f32 %v1146, -0.0012624911
      %v1179 = vmul.f32 %v1147, -0.0012624911
      %v1180 = vmul.f32 %v1148, -0.0012624911
      %v1181 = vmul.f32 %v1149, -0.0012624911
      %v1182 = vmul.f32 %v1150, -0.0012624911
      %v1183 = vmul.f32 %v1151, -0.0012624911
      %v1184 = vadd.f32 %v1152, 0.00667009
      %v1185 = vadd.f32 %v1153, 0.00667009
      %v1186 = vadd.f32 %v1154, 0.00667009
      %v1187 = vadd.f32 %v1155, 0.00667009
      %v1188 = vadd.f32 %v1156, 0.00667009
      %v1189 = vadd.f32 %v1157, 0.00667009
      %v1190 = vadd.f32 %v1158, 0.00667009
      %v1191 = vadd.f32 %v1159, 0.00667009
      %v1192 = vadd.f32 %v1160, 0.00667009
      %v1193 = vadd.f32 %v1161, 0.00667009
      %v1194 = vadd.f32 %v1162, 0.00667009
      %v1195 = vadd.f32 %v1163, 0.00667009
      %v1196 = vadd.f32 %v1164, 0.00667009
      %v1197 = vadd.f32 %v1165, 0.00667009
      %v1198 = vadd.f32 %v1166, 0.00667009
      %v1199 = vadd.f32 %v1167, 0.00667009
      %v1200 = vadd.f32 %v1168, 0.00667009
      %v1201 = vadd.f32 %v1169, 0.00667009
      %v1202 = vadd.f32 %v1170, 0.00667009
      %v1203 = vadd.f32 %v1171, 0.00667009
      %v1204 = vadd.f32 %v1172, 0.00667009
      %v1205 = vadd.f32 %v1173, 0.00667009
      %v1206 = vadd.f32 %v1174, 0.00667009
      %v1207 = vadd.f32 %v1175, 0.00667009
      %v1208 = vadd.f32 %v1176, 0.00667009
      %v1209 = vadd.f32 %v1177, 0.00667009
      %v1210 = vadd.f32 %v1178, 0.00667009
      %v1211 = vadd.f32 %v1179, 0.00667009
      %v1212 = vadd.f32 %v1180, 0.00667009
      %v1213 = vadd.f32 %v1181, 0.00667009
      %v1214 = vadd.f32 %v1182, 0.00667009
      %v1215 = vadd.f32 %v1183, 0.00667009
      %v1216 = vmul.f32 %v1184, %v1120
      %v1217 = vmul.f32 %v1185, %v1121
      %v1218 = vmul.f32 %v1186, %v1122
      %v1219 = vmul.f32 %v1187, %v1123
      %v1220 = vmul.f32 %v1188, %v1124
      %v1221 = vmul.f32 %v1189, %v1125
      %v1222 = vmul.f32 %v1190, %v1126
      %v1223 = vmul.f32 %v1191, %v1127
      %v1224 = vmul.f32 %v1192, %v1128
      %v1225 = vmul.f32 %v1193, %v1129
      %v1226 = vmul.f32 %v1194, %v1130
      %v1227 = vmul.f32 %v1195, %v1131
      %v1228 = vmul.f32 %v1196, %v1132
      %v1229 = vmul.f32 %v1197, %v1133
      %v1230 = vmul.f32 %v1198, %v1134
      %v1231 = vmul.f32 %v1199, %v1135
      %v1232 = vmul.f32 %v1200, %v1136
      %v1233 = vmul.f32 %v1201, %v1137
      %v1234 = vmul.f32 %v1202, %v1138
      %v1235 = vmul.f32 %v1203, %v1139
      %v1236 = vmul.f32 %v1204, %v1140
      %v1237 = vmul.f32 %v1205, %v1141
      %v1238 = vmul.f32 %v1206, %v1142
      %v1239 = vmul.f32 %v1207, %v1143
      %v1240 = vmul.f32 %v1208, %v1144
      %v1241 = vmul.f32 %v1209, %v1145
      %v1242 = vmul.f32 %v1210, %v1146
      %v1243 = vmul.f32 %v1211, %v1147
      %v1244 = vmul.f32 %v1212, %v1148
      %v1245 = vmul.f32 %v1213, %v1149
      %v1246 = vmul.f32 %v1214, %v1150
      %v1247 = vmul.f32 %v1215, %v1151
      %v1248 = vsub.f32 %v1216, 0.017088126
      %v1249 = vsub.f32 %v1217, 0.017088126
      %v1250 = vsub.f32 %v1218, 0.017088126
      %v1251 = vsub.f32 %v1219, 0.017088126
      %v1252 = vsub.f32 %v1220, 0.017088126
      %v1253 = vsub.f32 %v1221, 0.017088126
      %v1254 = vsub.f32 %v1222, 0.017088126
      %v1255 = vsub.f32 %v1223, 0.017088126
      %v1256 = vsub.f32 %v1224, 0.017088126
      %v1257 = vsub.f32 %v1225, 0.017088126
      %v1258 = vsub.f32 %v1226, 0.017088126
      %v1259 = vsub.f32 %v1227, 0.017088126
      %v1260 = vsub.f32 %v1228, 0.017088126
      %v1261 = vsub.f32 %v1229, 0.017088126
      %v1262 = vsub.f32 %v1230, 0.017088126
      %v1263 = vsub.f32 %v1231, 0.017088126
      %v1264 = vsub.f32 %v1232, 0.017088126
      %v1265 = vsub.f32 %v1233, 0.017088126
      %v1266 = vsub.f32 %v1234, 0.017088126
      %v1267 = vsub.f32 %v1235, 0.017088126
      %v1268 = vsub.f32 %v1236, 0.017088126
      %v1269 = vsub.f32 %v1237, 0.017088126
      %v1270 = vsub.f32 %v1238, 0.017088126
      %v1271 = vsub.f32 %v1239, 0.017088126
      %v1272 = vsub.f32 %v1240, 0.017088126
      %v1273 = vsub.f32 %v1241, 0.017088126
      %v1274 = vsub.f32 %v1242, 0.017088126
      %v1275 = vsub.f32 %v1243, 0.017088126
      %v1276 = vsub.f32 %v1244, 0.017088126
      %v1277 = vsub.f32 %v1245, 0.017088126
      %v1278 = vsub.f32 %v1246, 0.017088126
      %v1279 = vsub.f32 %v1247, 0.017088126
      %v1280 = vmul.f32 %v1248, %v1120
      %v1281 = vmul.f32 %v1249, %v1121
      %v1282 = vmul.f32 %v1250, %v1122
      %v1283 = vmul.f32 %v1251, %v1123
      %v1284 = vmul.f32 %v1252, %v1124
      %v1285 = vmul.f32 %v1253, %v1125
      %v1286 = vmul.f32 %v1254, %v1126
      %v1287 = vmul.f32 %v1255, %v1127
      %v1288 = vmul.f32 %v1256, %v1128
      %v1289 = vmul.f32 %v1257, %v1129
      %v1290 = vmul.f32 %v1258, %v1130
      %v1291 = vmul.f32 %v1259, %v1131
      %v1292 = vmul.f32 %v1260, %v1132
      %v1293 = vmul.f32 %v1261, %v1133
      %v1294 = vmul.f32 %v1262, %v1134
      %v1295 = vmul.f32 %v1263, %v1135
      %v1296 = vmul.f32 %v1264, %v1136
      %v1297 = vmul.f32 %v1265, %v1137
      %v1298 = vmul.f32 %v1266, %v1138
      %v1299 = vmul.f32 %v1267, %v1139
      %v1300 = vmul.f32 %v1268, %v1140
      %v1301 = vmul.f32 %v1269, %v1141
      %v1302 = vmul.f32 %v1270, %v1142
      %v1303 = vmul.f32 %v1271, %v1143
      %v1304 = vmul.f32 %v1272, %v1144
      %v1305 = vmul.f32 %v1273, %v1145
      %v1306 = vmul.f32 %v1274, %v1146
      %v1307 = vmul.f32 %v1275, %v1147
      %v1308 = vmul.f32 %v1276, %v1148
      %v1309 = vmul.f32 %v1277, %v1149
      %v1310 = vmul.f32 %v1278, %v1150
      %v1311 = vmul.f32 %v1279, %v1151
      %v1312 = vadd.f32 %v1280, 0.03089188
      %v1313 = vadd.f32 %v1281, 0.03089188
      %v1314 = vadd.f32 %v1282, 0.03089188
      %v1315 = vadd.f32 %v1283, 0.03089188
      %v1316 = vadd.f32 %v1284, 0.03089188
      %v1317 = vadd.f32 %v1285, 0.03089188
      %v1318 = vadd.f32 %v1286, 0.03089188
      %v1319 = vadd.f32 %v1287, 0.03089188
      %v1320 = vadd.f32 %v1288, 0.03089188
      %v1321 = vadd.f32 %v1289, 0.03089188
      %v1322 = vadd.f32 %v1290, 0.03089188
      %v1323 = vadd.f32 %v1291, 0.03089188
      %v1324 = vadd.f32 %v1292, 0.03089188
      %v1325 = vadd.f32 %v1293, 0.03089188
      %v1326 = vadd.f32 %v1294, 0.03089188
      %v1327 = vadd.f32 %v1295, 0.03089188
      %v1328 = vadd.f32 %v1296, 0.03089188
      %v1329 = vadd.f32 %v1297, 0.03089188
      %v1330 = vadd.f32 %v1298, 0.03089188
      %v1331 = vadd.f32 %v1299, 0.03089188
      %v1332 = vadd.f32 %v1300, 0.03089188
      %v1333 = vadd.f32 %v1301, 0.03089188
      %v1334 = vadd.f32 %v1302, 0.03089188
      %v1335 = vadd.f32 %v1303, 0.03089188
      %v1336 = vadd.f32 %v1304, 0.03089188
      %v1337 = vadd.f32 %v1305, 0.03089188
      %v1338 = vadd.f32 %v1306, 0.03089188
      %v1339 = vadd.f32 %v1307, 0.03089188
      %v1340 = vadd.f32 %v1308, 0.03089188
      %v1341 = vadd.f32 %v1309, 0.03089188
      %v1342 = vadd.f32 %v1310, 0.03089188
      %v1343 = vadd.f32 %v1311, 0.03089188
      %v1344 = vmul.f32 %v1312, %v1120
      %v1345 = vmul.f32 %v1313, %v1121
      %v1346 = vmul.f32 %v1314, %v1122
      %v1347 = vmul.f32 %v1315, %v1123
      %v1348 = vmul.f32 %v1316, %v1124
      %v1349 = vmul.f32 %v1317, %v1125
      %v1350 = vmul.f32 %v1318, %v1126
      %v1351 = vmul.f32 %v1319, %v1127
      %v1352 = vmul.f32 %v1320, %v1128
      %v1353 = vmul.f32 %v1321, %v1129
      %v1354 = vmul.f32 %v1322, %v1130
      %v1355 = vmul.f32 %v1323, %v1131
      %v1356 = vmul.f32 %v1324, %v1132
      %v1357 = vmul.f32 %v1325, %v1133
      %v1358 = vmul.f32 %v1326, %v1134
      %v1359 = vmul.f32 %v1327, %v1135
      %v1360 = vmul.f32 %v1328, %v1136
      %v1361 = vmul.f32 %v1329, %v1137
      %v1362 = vmul.f32 %v1330, %v1138
      %v1363 = vmul.f32 %v1331, %v1139
      %v1364 = vmul.f32 %v1332, %v1140
      %v1365 = vmul.f32 %v1333, %v1141
      %v1366 = vmul.f32 %v1334, %v1142
      %v1367 = vmul.f32 %v1335, %v1143
      %v1368 = vmul.f32 %v1336, %v1144
      %v1369 = vmul.f32 %v1337, %v1145
      %v1370 = vmul.f32 %v1338, %v1146
      %v1371 = vmul.f32 %v1339, %v1147
      %v1372 = vmul.f32 %v1340, %v1148
      %v1373 = vmul.f32 %v1341, %v1149
      %v1374 = vmul.f32 %v1342, %v1150
      %v1375 = vmul.f32 %v1343, %v1151
      %v1376 = vsub.f32 %v1344, 0.050174303
      %v1377 = vsub.f32 %v1345, 0.050174303
      %v1378 = vsub.f32 %v1346, 0.050174303
      %v1379 = vsub.f32 %v1347, 0.050174303
      %v1380 = vsub.f32 %v1348, 0.050174303
      %v1381 = vsub.f32 %v1349, 0.050174303
      %v1382 = vsub.f32 %v1350, 0.050174303
      %v1383 = vsub.f32 %v1351, 0.050174303
      %v1384 = vsub.f32 %v1352, 0.050174303
      %v1385 = vsub.f32 %v1353, 0.050174303
      %v1386 = vsub.f32 %v1354, 0.050174303
      %v1387 = vsub.f32 %v1355, 0.050174303
      %v1388 = vsub.f32 %v1356, 0.050174303
      %v1389 = vsub.f32 %v1357, 0.050174303
      %v1390 = vsub.f32 %v1358, 0.050174303
      %v1391 = vsub.f32 %v1359, 0.050174303
      %v1392 = vsub.f32 %v1360, 0.050174303
      %v1393 = vsub.f32 %v1361, 0.050174303
      %v1394 = vsub.f32 %v1362, 0.050174303
      %v1395 = vsub.f32 %v1363, 0.050174303
      %v1396 = vsub.f32 %v1364, 0.050174303
      %v1397 = vsub.f32 %v1365, 0.050174303
      %v1398 = vsub.f32 %v1366, 0.050174303
      %v1399 = vsub.f32 %v1367, 0.050174303
      %v1400 = vsub.f32 %v1368, 0.050174303
      %v1401 = vsub.f32 %v1369, 0.050174303
      %v1402 = vsub.f32 %v1370, 0.050174303
      %v1403 = vsub.f32 %v1371, 0.050174303
      %v1404 = vsub.f32 %v1372, 0.050174303
      %v1405 = vsub.f32 %v1373, 0.050174303
      %v1406 = vsub.f32 %v1374, 0.050174303
      %v1407 = vsub.f32 %v1375, 0.050174303
      %v1408 = vmul.f32 %v1376, %v1120
      %v1409 = vmul.f32 %v1377, %v1121
      %v1410 = vmul.f32 %v1378, %v1122
      %v1411 = vmul.f32 %v1379, %v1123
      %v1412 = vmul.f32 %v1380, %v1124
      %v1413 = vmul.f32 %v1381, %v1125
      %v1414 = vmul.f32 %v1382, %v1126
      %v1415 = vmul.f32 %v1383, %v1127
      %v1416 = vmul.f32 %v1384, %v1128
      %v1417 = vmul.f32 %v1385, %v1129
      %v1418 = vmul.f32 %v1386, %v1130
      %v1419 = vmul.f32 %v1387, %v1131
      %v1420 = vmul.f32 %v1388, %v1132
      %v1421 = vmul.f32 %v1389, %v1133
      %v1422 = vmul.f32 %v1390, %v1134
      %v1423 = vmul.f32 %v1391, %v1135
      %v1424 = vmul.f32 %v1392, %v1136
      %v1425 = vmul.f32 %v1393, %v1137
      %v1426 = vmul.f32 %v1394, %v1138
      %v1427 = vmul.f32 %v1395, %v1139
      %v1428 = vmul.f32 %v1396, %v1140
      %v1429 = vmul.f32 %v1397, %v1141
      %v1430 = vmul.f32 %v1398, %v1142
      %v1431 = vmul.f32 %v1399, %v1143
      %v1432 = vmul.f32 %v1400, %v1144
      %v1433 = vmul.f32 %v1401, %v1145
      %v1434 = vmul.f32 %v1402, %v1146
      %v1435 = vmul.f32 %v1403, %v1147
      %v1436 = vmul.f32 %v1404, %v1148
      %v1437 = vmul.f32 %v1405, %v1149
      %v1438 = vmul.f32 %v1406, %v1150
      %v1439 = vmul.f32 %v1407, %v1151
      %v1440 = vadd.f32 %v1408, 0.08897899
      %v1441 = vadd.f32 %v1409, 0.08897899
      %v1442 = vadd.f32 %v1410, 0.08897899
      %v1443 = vadd.f32 %v1411, 0.08897899
      %v1444 = vadd.f32 %v1412, 0.08897899
      %v1445 = vadd.f32 %v1413, 0.08897899
      %v1446 = vadd.f32 %v1414, 0.08897899
      %v1447 = vadd.f32 %v1415, 0.08897899
      %v1448 = vadd.f32 %v1416, 0.08897899
      %v1449 = vadd.f32 %v1417, 0.08897899
      %v1450 = vadd.f32 %v1418, 0.08897899
      %v1451 = vadd.f32 %v1419, 0.08897899
      %v1452 = vadd.f32 %v1420, 0.08897899
      %v1453 = vadd.f32 %v1421, 0.08897899
      %v1454 = vadd.f32 %v1422, 0.08897899
      %v1455 = vadd.f32 %v1423, 0.08897899
      %v1456 = vadd.f32 %v1424, 0.08897899
      %v1457 = vadd.f32 %v1425, 0.08897899
      %v1458 = vadd.f32 %v1426, 0.08897899
      %v1459 = vadd.f32 %v1427, 0.08897899
      %v1460 = vadd.f32 %v1428, 0.08897899
      %v1461 = vadd.f32 %v1429, 0.08897899
      %v1462 = vadd.f32 %v1430, 0.08897899
      %v1463 = vadd.f32 %v1431, 0.08897899
      %v1464 = vadd.f32 %v1432, 0.08897899
      %v1465 = vadd.f32 %v1433, 0.08897899
      %v1466 = vadd.f32 %v1434, 0.08897899
      %v1467 = vadd.f32 %v1435, 0.08897899
      %v1468 = vadd.f32 %v1436, 0.08897899
      %v1469 = vadd.f32 %v1437, 0.08897899
      %v1470 = vadd.f32 %v1438, 0.08897899
      %v1471 = vadd.f32 %v1439, 0.08897899
      %v1472 = vmul.f32 %v1440, %v1120
      %v1473 = vmul.f32 %v1441, %v1121
      %v1474 = vmul.f32 %v1442, %v1122
      %v1475 = vmul.f32 %v1443, %v1123
      %v1476 = vmul.f32 %v1444, %v1124
      %v1477 = vmul.f32 %v1445, %v1125
      %v1478 = vmul.f32 %v1446, %v1126
      %v1479 = vmul.f32 %v1447, %v1127
      %v1480 = vmul.f32 %v1448, %v1128
      %v1481 = vmul.f32 %v1449, %v1129
      %v1482 = vmul.f32 %v1450, %v1130
      %v1483 = vmul.f32 %v1451, %v1131
      %v1484 = vmul.f32 %v1452, %v1132
      %v1485 = vmul.f32 %v1453, %v1133
      %v1486 = vmul.f32 %v1454, %v1134
      %v1487 = vmul.f32 %v1455, %v1135
      %v1488 = vmul.f32 %v1456, %v1136
      %v1489 = vmul.f32 %v1457, %v1137
      %v1490 = vmul.f32 %v1458, %v1138
      %v1491 = vmul.f32 %v1459, %v1139
      %v1492 = vmul.f32 %v1460, %v1140
      %v1493 = vmul.f32 %v1461, %v1141
      %v1494 = vmul.f32 %v1462, %v1142
      %v1495 = vmul.f32 %v1463, %v1143
      %v1496 = vmul.f32 %v1464, %v1144
      %v1497 = vmul.f32 %v1465, %v1145
      %v1498 = vmul.f32 %v1466, %v1146
      %v1499 = vmul.f32 %v1467, %v1147
      %v1500 = vmul.f32 %v1468, %v1148
      %v1501 = vmul.f32 %v1469, %v1149
      %v1502 = vmul.f32 %v1470, %v1150
      %v1503 = vmul.f32 %v1471, %v1151
      %v1504 = vsub.f32 %v1472, 0.2145988
      %v1505 = vsub.f32 %v1473, 0.2145988
      %v1506 = vsub.f32 %v1474, 0.2145988
      %v1507 = vsub.f32 %v1475, 0.2145988
      %v1508 = vsub.f32 %v1476, 0.2145988
      %v1509 = vsub.f32 %v1477, 0.2145988
      %v1510 = vsub.f32 %v1478, 0.2145988
      %v1511 = vsub.f32 %v1479, 0.2145988
      %v1512 = vsub.f32 %v1480, 0.2145988
      %v1513 = vsub.f32 %v1481, 0.2145988
      %v1514 = vsub.f32 %v1482, 0.2145988
      %v1515 = vsub.f32 %v1483, 0.2145988
      %v1516 = vsub.f32 %v1484, 0.2145988
      %v1517 = vsub.f32 %v1485, 0.2145988
      %v1518 = vsub.f32 %v1486, 0.2145988
      %v1519 = vsub.f32 %v1487, 0.2145988
      %v1520 = vsub.f32 %v1488, 0.2145988
      %v1521 = vsub.f32 %v1489, 0.2145988
      %v1522 = vsub.f32 %v1490, 0.2145988
      %v1523 = vsub.f32 %v1491, 0.2145988
      %v1524 = vsub.f32 %v1492, 0.2145988
      %v1525 = vsub.f32 %v1493, 0.2145988
      %v1526 = vsub.f32 %v1494, 0.2145988
      %v1527 = vsub.f32 %v1495, 0.2145988
      %v1528 = vsub.f32 %v1496, 0.2145988
      %v1529 = vsub.f32 %v1497, 0.2145988
      %v1530 = vsub.f32 %v1498, 0.2145988
      %v1531 = vsub.f32 %v1499, 0.2145988
      %v1532 = vsub.f32 %v1500, 0.2145988
      %v1533 = vsub.f32 %v1501, 0.2145988
      %v1534 = vsub.f32 %v1502, 0.2145988
      %v1535 = vsub.f32 %v1503, 0.2145988
      %v1536 = vmul.f32 %v1504, %v1120
      %v1537 = vmul.f32 %v1505, %v1121
      %v1538 = vmul.f32 %v1506, %v1122
      %v1539 = vmul.f32 %v1507, %v1123
      %v1540 = vmul.f32 %v1508, %v1124
      %v1541 = vmul.f32 %v1509, %v1125
      %v1542 = vmul.f32 %v1510, %v1126
      %v1543 = vmul.f32 %v1511, %v1127
      %v1544 = vmul.f32 %v1512, %v1128
      %v1545 = vmul.f32 %v1513, %v1129
      %v1546 = vmul.f32 %v1514, %v1130
      %v1547 = vmul.f32 %v1515, %v1131
      %v1548 = vmul.f32 %v1516, %v1132
      %v1549 = vmul.f32 %v1517, %v1133
      %v1550 = vmul.f32 %v1518, %v1134
      %v1551 = vmul.f32 %v1519, %v1135
      %v1552 = vmul.f32 %v1520, %v1136
      %v1553 = vmul.f32 %v1521, %v1137
      %v1554 = vmul.f32 %v1522, %v1138
      %v1555 = vmul.f32 %v1523, %v1139
      %v1556 = vmul.f32 %v1524, %v1140
      %v1557 = vmul.f32 %v1525, %v1141
      %v1558 = vmul.f32 %v1526, %v1142
      %v1559 = vmul.f32 %v1527, %v1143
      %v1560 = vmul.f32 %v1528, %v1144
      %v1561 = vmul.f32 %v1529, %v1145
      %v1562 = vmul.f32 %v1530, %v1146
      %v1563 = vmul.f32 %v1531, %v1147
      %v1564 = vmul.f32 %v1532, %v1148
      %v1565 = vmul.f32 %v1533, %v1149
      %v1566 = vmul.f32 %v1534, %v1150
      %v1567 = vmul.f32 %v1535, %v1151
      %v1568 = vadd.f32 %v1536, 1.5707963
      %v1569 = vadd.f32 %v1537, 1.5707963
      %v1570 = vadd.f32 %v1538, 1.5707963
      %v1571 = vadd.f32 %v1539, 1.5707963
      %v1572 = vadd.f32 %v1540, 1.5707963
      %v1573 = vadd.f32 %v1541, 1.5707963
      %v1574 = vadd.f32 %v1542, 1.5707963
      %v1575 = vadd.f32 %v1543, 1.5707963
      %v1576 = vadd.f32 %v1544, 1.5707963
      %v1577 = vadd.f32 %v1545, 1.5707963
      %v1578 = vadd.f32 %v1546, 1.5707963
      %v1579 = vadd.f32 %v1547, 1.5707963
      %v1580 = vadd.f32 %v1548, 1.5707963
      %v1581 = vadd.f32 %v1549, 1.5707963
      %v1582 = vadd.f32 %v1550, 1.5707963
      %v1583 = vadd.f32 %v1551, 1.5707963
      %v1584 = vadd.f32 %v1552, 1.5707963
      %v1585 = vadd.f32 %v1553, 1.5707963
      %v1586 = vadd.f32 %v1554, 1.5707963
      %v1587 = vadd.f32 %v1555, 1.5707963
      %v1588 = vadd.f32 %v1556, 1.5707963
      %v1589 = vadd.f32 %v1557, 1.5707963
      %v1590 = vadd.f32 %v1558, 1.5707963
      %v1591 = vadd.f32 %v1559, 1.5707963
      %v1592 = vadd.f32 %v1560, 1.5707963
      %v1593 = vadd.f32 %v1561, 1.5707963
      %v1594 = vadd.f32 %v1562, 1.5707963
      %v1595 = vadd.f32 %v1563, 1.5707963
      %v1596 = vadd.f32 %v1564, 1.5707963
      %v1597 = vadd.f32 %v1565, 1.5707963
      %v1598 = vadd.f32 %v1566, 1.5707963
      %v1599 = vadd.f32 %v1567, 1.5707963
      %v1600 = vsub.f32 1.0, %v1120
      %v1601 = vsub.f32 1.0, %v1121
      %v1602 = vsub.f32 1.0, %v1122
      %v1603 = vsub.f32 1.0, %v1123
      %v1604 = vsub.f32 1.0, %v1124
      %v1605 = vsub.f32 1.0, %v1125
      %v1606 = vsub.f32 1.0, %v1126
      %v1607 = vsub.f32 1.0, %v1127
      %v1608 = vsub.f32 1.0, %v1128
      %v1609 = vsub.f32 1.0, %v1129
      %v1610 = vsub.f32 1.0, %v1130
      %v1611 = vsub.f32 1.0, %v1131
      %v1612 = vsub.f32 1.0, %v1132
      %v1613 = vsub.f32 1.0, %v1133
      %v1614 = vsub.f32 1.0, %v1134
      %v1615 = vsub.f32 1.0, %v1135
      %v1616 = vsub.f32 1.0, %v1136
      %v1617 = vsub.f32 1.0, %v1137
      %v1618 = vsub.f32 1.0, %v1138
      %v1619 = vsub.f32 1.0, %v1139
      %v1620 = vsub.f32 1.0, %v1140
      %v1621 = vsub.f32 1.0, %v1141
      %v1622 = vsub.f32 1.0, %v1142
      %v1623 = vsub.f32 1.0, %v1143
      %v1624 = vsub.f32 1.0, %v1144
      %v1625 = vsub.f32 1.0, %v1145
      %v1626 = vsub.f32 1.0, %v1146
      %v1627 = vsub.f32 1.0, %v1147
      %v1628 = vsub.f32 1.0, %v1148
      %v1629 = vsub.f32 1.0, %v1149
      %v1630 = vsub.f32 1.0, %v1150
      %v1631 = vsub.f32 1.0, %v1151
      %v1632 = vmax.f32 %v1600, 0.0
      %v1633 = vmax.f32 %v1601, 0.0
      %v1634 = vmax.f32 %v1602, 0.0
      %v1635 = vmax.f32 %v1603, 0.0
      %v1636 = vmax.f32 %v1604, 0.0
      %v1637 = vmax.f32 %v1605, 0.0
      %v1638 = vmax.f32 %v1606, 0.0
      %v1639 = vmax.f32 %v1607, 0.0
      %v1640 = vmax.f32 %v1608, 0.0
      %v1641 = vmax.f32 %v1609, 0.0
      %v1642 = vmax.f32 %v1610, 0.0
      %v1643 = vmax.f32 %v1611, 0.0
      %v1644 = vmax.f32 %v1612, 0.0
      %v1645 = vmax.f32 %v1613, 0.0
      %v1646 = vmax.f32 %v1614, 0.0
      %v1647 = vmax.f32 %v1615, 0.0
      %v1648 = vmax.f32 %v1616, 0.0
      %v1649 = vmax.f32 %v1617, 0.0
      %v1650 = vmax.f32 %v1618, 0.0
      %v1651 = vmax.f32 %v1619, 0.0
      %v1652 = vmax.f32 %v1620, 0.0
      %v1653 = vmax.f32 %v1621, 0.0
      %v1654 = vmax.f32 %v1622, 0.0
      %v1655 = vmax.f32 %v1623, 0.0
      %v1656 = vmax.f32 %v1624, 0.0
      %v1657 = vmax.f32 %v1625, 0.0
      %v1658 = vmax.f32 %v1626, 0.0
      %v1659 = vmax.f32 %v1627, 0.0
      %v1660 = vmax.f32 %v1628, 0.0
      %v1661 = vmax.f32 %v1629, 0.0
      %v1662 = vmax.f32 %v1630, 0.0
      %v1663 = vmax.f32 %v1631, 0.0
      %v1664 = vrsqrt.pop %v1632
      %v1665 = vmul.f32 %v1632, %v1664
      %vm1666 = vcmp.eq.f32.partialorder %v1632, inf
      %v1667 = vsel %vm1666, %v1632, %v1665
      %vm1668 = vcmp.eq.f32.partialorder %v1632, 0.0
      %v1669 = vand.u32 %v1632, 2147483648
      %v1670 = vsel %vm1668, %v1669, %v1667
      %v1671 = vrsqrt.pop %v1633
      %v1672 = vmul.f32 %v1633, %v1671
      %vm1673 = vcmp.eq.f32.partialorder %v1633, inf
      %v1674 = vsel %vm1673, %v1633, %v1672
      %vm1675 = vcmp.eq.f32.partialorder %v1633, 0.0
      %v1676 = vand.u32 %v1633, 2147483648
      %v1677 = vsel %vm1675, %v1676, %v1674
      %v1678 = vrsqrt.pop %v1634
      %v1679 = vmul.f32 %v1634, %v1678
      %vm1680 = vcmp.eq.f32.partialorder %v1634, inf
      %v1681 = vsel %vm1680, %v1634, %v1679
      %vm1682 = vcmp.eq.f32.partialorder %v1634, 0.0
      %v1683 = vand.u32 %v1634, 2147483648
      %v1684 = vsel %vm1682, %v1683, %v1681
      %v1685 = vrsqrt.pop %v1635
      %v1686 = vmul.f32 %v1635, %v1685
      %vm1687 = vcmp.eq.f32.partialorder %v1635, inf
      %v1688 = vsel %vm1687, %v1635, %v1686
      %vm1689 = vcmp.eq.f32.partialorder %v1635, 0.0
      %v1690 = vand.u32 %v1635, 2147483648
      %v1691 = vsel %vm1689, %v1690, %v1688
      %v1692 = vrsqrt.pop %v1636
      %v1693 = vmul.f32 %v1636, %v1692
      %vm1694 = vcmp.eq.f32.partialorder %v1636, inf
      %v1695 = vsel %vm1694, %v1636, %v1693
      %vm1696 = vcmp.eq.f32.partialorder %v1636, 0.0
      %v1697 = vand.u32 %v1636, 2147483648
      %v1698 = vsel %vm1696, %v1697, %v1695
      %v1699 = vrsqrt.pop %v1637
      %v1700 = vmul.f32 %v1637, %v1699
      %vm1701 = vcmp.eq.f32.partialorder %v1637, inf
      %v1702 = vsel %vm1701, %v1637, %v1700
      %vm1703 = vcmp.eq.f32.partialorder %v1637, 0.0
      %v1704 = vand.u32 %v1637, 2147483648
      %v1705 = vsel %vm1703, %v1704, %v1702
      %v1706 = vrsqrt.pop %v1638
      %v1707 = vmul.f32 %v1638, %v1706
      %vm1708 = vcmp.eq.f32.partialorder %v1638, inf
      %v1709 = vsel %vm1708, %v1638, %v1707
      %vm1710 = vcmp.eq.f32.partialorder %v1638, 0.0
      %v1711 = vand.u32 %v1638, 2147483648
      %v1712 = vsel %vm1710, %v1711, %v1709
      %v1713 = vrsqrt.pop %v1639
      %v1714 = vmul.f32 %v1639, %v1713
      %vm1715 = vcmp.eq.f32.partialorder %v1639, inf
      %v1716 = vsel %vm1715, %v1639, %v1714
      %vm1717 = vcmp.eq.f32.partialorder %v1639, 0.0
      %v1718 = vand.u32 %v1639, 2147483648
      %v1719 = vsel %vm1717, %v1718, %v1716
      %v1720 = vrsqrt.pop %v1640
      %v1721 = vmul.f32 %v1640, %v1720
      %vm1722 = vcmp.eq.f32.partialorder %v1640, inf
      %v1723 = vsel %vm1722, %v1640, %v1721
      %vm1724 = vcmp.eq.f32.partialorder %v1640, 0.0
      %v1725 = vand.u32 %v1640, 2147483648
      %v1726 = vsel %vm1724, %v1725, %v1723
      %v1727 = vrsqrt.pop %v1641
      %v1728 = vmul.f32 %v1641, %v1727
      %vm1729 = vcmp.eq.f32.partialorder %v1641, inf
      %v1730 = vsel %vm1729, %v1641, %v1728
      %vm1731 = vcmp.eq.f32.partialorder %v1641, 0.0
      %v1732 = vand.u32 %v1641, 2147483648
      %v1733 = vsel %vm1731, %v1732, %v1730
      %v1734 = vrsqrt.pop %v1642
      %v1735 = vmul.f32 %v1642, %v1734
      %vm1736 = vcmp.eq.f32.partialorder %v1642, inf
      %v1737 = vsel %vm1736, %v1642, %v1735
      %vm1738 = vcmp.eq.f32.partialorder %v1642, 0.0
      %v1739 = vand.u32 %v1642, 2147483648
      %v1740 = vsel %vm1738, %v1739, %v1737
      %v1741 = vrsqrt.pop %v1643
      %v1742 = vmul.f32 %v1643, %v1741
      %vm1743 = vcmp.eq.f32.partialorder %v1643, inf
      %v1744 = vsel %vm1743, %v1643, %v1742
      %vm1745 = vcmp.eq.f32.partialorder %v1643, 0.0
      %v1746 = vand.u32 %v1643, 2147483648
      %v1747 = vsel %vm1745, %v1746, %v1744
      %v1748 = vrsqrt.pop %v1644
      %v1749 = vmul.f32 %v1644, %v1748
      %vm1750 = vcmp.eq.f32.partialorder %v1644, inf
      %v1751 = vsel %vm1750, %v1644, %v1749
      %vm1752 = vcmp.eq.f32.partialorder %v1644, 0.0
      %v1753 = vand.u32 %v1644, 2147483648
      %v1754 = vsel %vm1752, %v1753, %v1751
      %v1755 = vrsqrt.pop %v1645
      %v1756 = vmul.f32 %v1645, %v1755
      %vm1757 = vcmp.eq.f32.partialorder %v1645, inf
      %v1758 = vsel %vm1757, %v1645, %v1756
      %vm1759 = vcmp.eq.f32.partialorder %v1645, 0.0
      %v1760 = vand.u32 %v1645, 2147483648
      %v1761 = vsel %vm1759, %v1760, %v1758
      %v1762 = vrsqrt.pop %v1646
      %v1763 = vmul.f32 %v1646, %v1762
      %vm1764 = vcmp.eq.f32.partialorder %v1646, inf
      %v1765 = vsel %vm1764, %v1646, %v1763
      %vm1766 = vcmp.eq.f32.partialorder %v1646, 0.0
      %v1767 = vand.u32 %v1646, 2147483648
      %v1768 = vsel %vm1766, %v1767, %v1765
      %v1769 = vrsqrt.pop %v1647
      %v1770 = vmul.f32 %v1647, %v1769
      %vm1771 = vcmp.eq.f32.partialorder %v1647, inf
      %v1772 = vsel %vm1771, %v1647, %v1770
      %vm1773 = vcmp.eq.f32.partialorder %v1647, 0.0
      %v1774 = vand.u32 %v1647, 2147483648
      %v1775 = vsel %vm1773, %v1774, %v1772
      %v1776 = vrsqrt.pop %v1648
      %v1777 = vmul.f32 %v1648, %v1776
      %vm1778 = vcmp.eq.f32.partialorder %v1648, inf
      %v1779 = vsel %vm1778, %v1648, %v1777
      %vm1780 = vcmp.eq.f32.partialorder %v1648, 0.0
      %v1781 = vand.u32 %v1648, 2147483648
      %v1782 = vsel %vm1780, %v1781, %v1779
      %v1783 = vrsqrt.pop %v1649
      %v1784 = vmul.f32 %v1649, %v1783
      %vm1785 = vcmp.eq.f32.partialorder %v1649, inf
      %v1786 = vsel %vm1785, %v1649, %v1784
      %vm1787 = vcmp.eq.f32.partialorder %v1649, 0.0
      %v1788 = vand.u32 %v1649, 2147483648
      %v1789 = vsel %vm1787, %v1788, %v1786
      %v1790 = vrsqrt.pop %v1650
      %v1791 = vmul.f32 %v1650, %v1790
      %vm1792 = vcmp.eq.f32.partialorder %v1650, inf
      %v1793 = vsel %vm1792, %v1650, %v1791
      %vm1794 = vcmp.eq.f32.partialorder %v1650, 0.0
      %v1795 = vand.u32 %v1650, 2147483648
      %v1796 = vsel %vm1794, %v1795, %v1793
      %v1797 = vrsqrt.pop %v1651
      %v1798 = vmul.f32 %v1651, %v1797
      %vm1799 = vcmp.eq.f32.partialorder %v1651, inf
      %v1800 = vsel %vm1799, %v1651, %v1798
      %vm1801 = vcmp.eq.f32.partialorder %v1651, 0.0
      %v1802 = vand.u32 %v1651, 2147483648
      %v1803 = vsel %vm1801, %v1802, %v1800
      %v1804 = vrsqrt.pop %v1652
      %v1805 = vmul.f32 %v1652, %v1804
      %vm1806 = vcmp.eq.f32.partialorder %v1652, inf
      %v1807 = vsel %vm1806, %v1652, %v1805
      %vm1808 = vcmp.eq.f32.partialorder %v1652, 0.0
      %v1809 = vand.u32 %v1652, 2147483648
      %v1810 = vsel %vm1808, %v1809, %v1807
      %v1811 = vrsqrt.pop %v1653
      %v1812 = vmul.f32 %v1653, %v1811
      %vm1813 = vcmp.eq.f32.partialorder %v1653, inf
      %v1814 = vsel %vm1813, %v1653, %v1812
      %vm1815 = vcmp.eq.f32.partialorder %v1653, 0.0
      %v1816 = vand.u32 %v1653, 2147483648
      %v1817 = vsel %vm1815, %v1816, %v1814
      %v1818 = vrsqrt.pop %v1654
      %v1819 = vmul.f32 %v1654, %v1818
      %vm1820 = vcmp.eq.f32.partialorder %v1654, inf
      %v1821 = vsel %vm1820, %v1654, %v1819
      %vm1822 = vcmp.eq.f32.partialorder %v1654, 0.0
      %v1823 = vand.u32 %v1654, 2147483648
      %v1824 = vsel %vm1822, %v1823, %v1821
      %v1825 = vrsqrt.pop %v1655
      %v1826 = vmul.f32 %v1655, %v1825
      %vm1827 = vcmp.eq.f32.partialorder %v1655, inf
      %v1828 = vsel %vm1827, %v1655, %v1826
      %vm1829 = vcmp.eq.f32.partialorder %v1655, 0.0
      %v1830 = vand.u32 %v1655, 2147483648
      %v1831 = vsel %vm1829, %v1830, %v1828
      %v1832 = vrsqrt.pop %v1656
      %v1833 = vmul.f32 %v1656, %v1832
      %vm1834 = vcmp.eq.f32.partialorder %v1656, inf
      %v1835 = vsel %vm1834, %v1656, %v1833
      %vm1836 = vcmp.eq.f32.partialorder %v1656, 0.0
      %v1837 = vand.u32 %v1656, 2147483648
      %v1838 = vsel %vm1836, %v1837, %v1835
      %v1839 = vrsqrt.pop %v1657
      %v1840 = vmul.f32 %v1657, %v1839
      %vm1841 = vcmp.eq.f32.partialorder %v1657, inf
      %v1842 = vsel %vm1841, %v1657, %v1840
      %vm1843 = vcmp.eq.f32.partialorder %v1657, 0.0
      %v1844 = vand.u32 %v1657, 2147483648
      %v1845 = vsel %vm1843, %v1844, %v1842
      %v1846 = vrsqrt.pop %v1658
      %v1847 = vmul.f32 %v1658, %v1846
      %vm1848 = vcmp.eq.f32.partialorder %v1658, inf
      %v1849 = vsel %vm1848, %v1658, %v1847
      %vm1850 = vcmp.eq.f32.partialorder %v1658, 0.0
      %v1851 = vand.u32 %v1658, 2147483648
      %v1852 = vsel %vm1850, %v1851, %v1849
      %v1853 = vrsqrt.pop %v1659
      %v1854 = vmul.f32 %v1659, %v1853
      %vm1855 = vcmp.eq.f32.partialorder %v1659, inf
      %v1856 = vsel %vm1855, %v1659, %v1854
      %vm1857 = vcmp.eq.f32.partialorder %v1659, 0.0
      %v1858 = vand.u32 %v1659, 2147483648
      %v1859 = vsel %vm1857, %v1858, %v1856
      %v1860 = vrsqrt.pop %v1660
      %v1861 = vmul.f32 %v1660, %v1860
      %vm1862 = vcmp.eq.f32.partialorder %v1660, inf
      %v1863 = vsel %vm1862, %v1660, %v1861
      %vm1864 = vcmp.eq.f32.partialorder %v1660, 0.0
      %v1865 = vand.u32 %v1660, 2147483648
      %v1866 = vsel %vm1864, %v1865, %v1863
      %v1867 = vrsqrt.pop %v1661
      %v1868 = vmul.f32 %v1661, %v1867
      %vm1869 = vcmp.eq.f32.partialorder %v1661, inf
      %v1870 = vsel %vm1869, %v1661, %v1868
      %vm1871 = vcmp.eq.f32.partialorder %v1661, 0.0
      %v1872 = vand.u32 %v1661, 2147483648
      %v1873 = vsel %vm1871, %v1872, %v1870
      %v1874 = vrsqrt.pop %v1662
      %v1875 = vmul.f32 %v1662, %v1874
      %vm1876 = vcmp.eq.f32.partialorder %v1662, inf
      %v1877 = vsel %vm1876, %v1662, %v1875
      %vm1878 = vcmp.eq.f32.partialorder %v1662, 0.0
      %v1879 = vand.u32 %v1662, 2147483648
      %v1880 = vsel %vm1878, %v1879, %v1877
      %v1881 = vrsqrt.pop %v1663
      %v1882 = vmul.f32 %v1663, %v1881
      %vm1883 = vcmp.eq.f32.partialorder %v1663, inf
      %v1884 = vsel %vm1883, %v1663, %v1882
      %vm1885 = vcmp.eq.f32.partialorder %v1663, 0.0
      %v1886 = vand.u32 %v1663, 2147483648
      %v1887 = vsel %vm1885, %v1886, %v1884
      %v1888 = vmul.f32 %v1670, %v1568
      %v1889 = vmul.f32 %v1677, %v1569
      %v1890 = vmul.f32 %v1684, %v1570
      %v1891 = vmul.f32 %v1691, %v1571
      %v1892 = vmul.f32 %v1698, %v1572
      %v1893 = vmul.f32 %v1705, %v1573
      %v1894 = vmul.f32 %v1712, %v1574
      %v1895 = vmul.f32 %v1719, %v1575
      %v1896 = vmul.f32 %v1726, %v1576
      %v1897 = vmul.f32 %v1733, %v1577
      %v1898 = vmul.f32 %v1740, %v1578
      %v1899 = vmul.f32 %v1747, %v1579
      %v1900 = vmul.f32 %v1754, %v1580
      %v1901 = vmul.f32 %v1761, %v1581
      %v1902 = vmul.f32 %v1768, %v1582
      %v1903 = vmul.f32 %v1775, %v1583
      %v1904 = vmul.f32 %v1782, %v1584
      %v1905 = vmul.f32 %v1789, %v1585
      %v1906 = vmul.f32 %v1796, %v1586
      %v1907 = vmul.f32 %v1803, %v1587
      %v1908 = vmul.f32 %v1810, %v1588
      %v1909 = vmul.f32 %v1817, %v1589
      %v1910 = vmul.f32 %v1824, %v1590
      %v1911 = vmul.f32 %v1831, %v1591
      %v1912 = vmul.f32 %v1838, %v1592
      %v1913 = vmul.f32 %v1845, %v1593
      %v1914 = vmul.f32 %v1852, %v1594
      %v1915 = vmul.f32 %v1859, %v1595
      %v1916 = vmul.f32 %v1866, %v1596
      %v1917 = vmul.f32 %v1873, %v1597
      %v1918 = vmul.f32 %v1880, %v1598
      %v1919 = vmul.f32 %v1887, %v1599
      %vm1920 = vcmp.lt.f32.partialorder %v1088, 0.0
      %vm1921 = vcmp.lt.f32.partialorder %v1089, 0.0
      %vm1922 = vcmp.lt.f32.partialorder %v1090, 0.0
      %vm1923 = vcmp.lt.f32.partialorder %v1091, 0.0
      %vm1924 = vcmp.lt.f32.partialorder %v1092, 0.0
      %vm1925 = vcmp.lt.f32.partialorder %v1093, 0.0
      %vm1926 = vcmp.lt.f32.partialorder %v1094, 0.0
      %vm1927 = vcmp.lt.f32.partialorder %v1095, 0.0
      %vm1928 = vcmp.lt.f32.partialorder %v1096, 0.0
      %vm1929 = vcmp.lt.f32.partialorder %v1097, 0.0
      %vm1930 = vcmp.lt.f32.partialorder %v1098, 0.0
      %vm1931 = vcmp.lt.f32.partialorder %v1099, 0.0
      %vm1932 = vcmp.lt.f32.partialorder %v1100, 0.0
      %vm1933 = vcmp.lt.f32.partialorder %v1101, 0.0
      %vm1934 = vcmp.lt.f32.partialorder %v1102, 0.0
      %vm1935 = vcmp.lt.f32.partialorder %v1103, 0.0
      %vm1936 = vcmp.lt.f32.partialorder %v1104, 0.0
      %vm1937 = vcmp.lt.f32.partialorder %v1105, 0.0
      %vm1938 = vcmp.lt.f32.partialorder %v1106, 0.0
      %vm1939 = vcmp.lt.f32.partialorder %v1107, 0.0
      %vm1940 = vcmp.lt.f32.partialorder %v1108, 0.0
      %vm1941 = vcmp.lt.f32.partialorder %v1109, 0.0
      %vm1942 = vcmp.lt.f32.partialorder %v1110, 0.0
      %vm1943 = vcmp.lt.f32.partialorder %v1111, 0.0
      %vm1944 = vcmp.lt.f32.partialorder %v1112, 0.0
      %vm1945 = vcmp.lt.f32.partialorder %v1113, 0.0
      %vm1946 = vcmp.lt.f32.partialorder %v1114, 0.0
      %vm1947 = vcmp.lt.f32.partialorder %v1115, 0.0
      %vm1948 = vcmp.lt.f32.partialorder %v1116, 0.0
      %vm1949 = vcmp.lt.f32.partialorder %v1117, 0.0
      %vm1950 = vcmp.lt.f32.partialorder %v1118, 0.0
      %vm1951 = vcmp.lt.f32.partialorder %v1119, 0.0
      %v1952 = vsub.f32 3.1415927, %v1888
      %v1953 = vsub.f32 3.1415927, %v1889
      %v1954 = vsub.f32 3.1415927, %v1890
      %v1955 = vsub.f32 3.1415927, %v1891
      %v1956 = vsub.f32 3.1415927, %v1892
      %v1957 = vsub.f32 3.1415927, %v1893
      %v1958 = vsub.f32 3.1415927, %v1894
      %v1959 = vsub.f32 3.1415927, %v1895
      %v1960 = vsub.f32 3.1415927, %v1896
      %v1961 = vsub.f32 3.1415927, %v1897
      %v1962 = vsub.f32 3.1415927, %v1898
      %v1963 = vsub.f32 3.1415927, %v1899
      %v1964 = vsub.f32 3.1415927, %v1900
      %v1965 = vsub.f32 3.1415927, %v1901
      %v1966 = vsub.f32 3.1415927, %v1902
      %v1967 = vsub.f32 3.1415927, %v1903
      %v1968 = vsub.f32 3.1415927, %v1904
      %v1969 = vsub.f32 3.1415927, %v1905
      %v1970 = vsub.f32 3.1415927, %v1906
      %v1971 = vsub.f32 3.1415927, %v1907
      %v1972 = vsub.f32 3.1415927, %v1908
      %v1973 = vsub.f32 3.1415927, %v1909
      %v1974 = vsub.f32 3.1415927, %v1910
      %v1975 = vsub.f32 3.1415927, %v1911
      %v1976 = vsub.f32 3.1415927, %v1912
      %v1977 = vsub.f32 3.1415927, %v1913
      %v1978 = vsub.f32 3.1415927, %v1914
      %v1979 = vsub.f32 3.1415927, %v1915
      %v1980 = vsub.f32 3.1415927, %v1916
      %v1981 = vsub.f32 3.1415927, %v1917
      %v1982 = vsub.f32 3.1415927, %v1918
      %v1983 = vsub.f32 3.1415927, %v1919
      %v1984 = vsel %vm1920, %v1952, %v1888
      %v1985 = vsel %vm1921, %v1953, %v1889
      %v1986 = vsel %vm1922, %v1954, %v1890
      %v1987 = vsel %vm1923, %v1955, %v1891
      %v1988 = vsel %vm1924, %v1956, %v1892
      %v1989 = vsel %vm1925, %v1957, %v1893
      %v1990 = vsel %vm1926, %v1958, %v1894
      %v1991 = vsel %vm1927, %v1959, %v1895
      %v1992 = vsel %vm1928, %v1960, %v1896
      %v1993 = vsel %vm1929, %v1961, %v1897
      %v1994 = vsel %vm1930, %v1962, %v1898
      %v1995 = vsel %vm1931, %v1963, %v1899
      %v1996 = vsel %vm1932, %v1964, %v1900
      %v1997 = vsel %vm1933, %v1965, %v1901
      %v1998 = vsel %vm1934, %v1966, %v1902
      %v1999 = vsel %vm1935, %v1967, %v1903
      %v2000 = vsel %vm1936, %v1968, %v1904
      %v2001 = vsel %vm1937, %v1969, %v1905
      %v2002 = vsel %vm1938, %v1970, %v1906
      %v2003 = vsel %vm1939, %v1971, %v1907
      %v2004 = vsel %vm1940, %v1972, %v1908
      %v2005 = vsel %vm1941, %v1973, %v1909
      %v2006 = vsel %vm1942, %v1974, %v1910
      %v2007 = vsel %vm1943, %v1975, %v1911
      %v2008 = vsel %vm1944, %v1976, %v1912
      %v2009 = vsel %vm1945, %v1977, %v1913
      %v2010 = vsel %vm1946, %v1978, %v1914
      %v2011 = vsel %vm1947, %v1979, %v1915
      %v2012 = vsel %vm1948, %v1980, %v1916
      %v2013 = vsel %vm1949, %v1981, %v1917
      %v2014 = vsel %vm1950, %v1982, %v1918
      %v2015 = vsel %vm1951, %v1983, %v1919
      %v2016 = vpack.c.bf16 %v1985, %v1984
      %v2017 = vpack.c.bf16 %v1987, %v1986
      %v2018 = vpack.c.bf16 %v1989, %v1988
      %v2019 = vpack.c.bf16 %v1991, %v1990
      %v2020 = vpack.c.bf16 %v1993, %v1992
      %v2021 = vpack.c.bf16 %v1995, %v1994
      %v2022 = vpack.c.bf16 %v1997, %v1996
      %v2023 = vpack.c.bf16 %v1999, %v1998
      %v2024 = vpack.c.bf16 %v2001, %v2000
      %v2025 = vpack.c.bf16 %v2003, %v2002
      %v2026 = vpack.c.bf16 %v2005, %v2004
      %v2027 = vpack.c.bf16 %v2007, %v2006
      %v2028 = vpack.c.bf16 %v2009, %v2008
      %v2029 = vpack.c.bf16 %v2011, %v2010
      %v2030 = vpack.c.bf16 %v2013, %v2012
      %v2031 = vpack.c.bf16 %v2015, %v2014
      %v2032 = vld [vmem:[%s2] sm:$0xff]
      %v2033 = vld [vmem:[%s2 + $0x8] sm:$0xff]
      %v2034 = vld [vmem:[%s2 + $0x10] sm:$0xff]
      %v2035 = vld [vmem:[%s2 + $0x18] sm:$0xff]
      %v2036 = vld [vmem:[%s2 + $0x20] sm:$0xff]
      %v2037 = vld [vmem:[%s2 + $0x28] sm:$0xff]
      %v2038 = vld [vmem:[%s2 + $0x30] sm:$0xff]
      %v2039 = vld [vmem:[%s2 + $0x38] sm:$0xff]
      %v2040 = vld [vmem:[%s2 + $0x40] sm:$0xff]
      %v2041 = vld [vmem:[%s2 + $0x48] sm:$0xff]
      %v2042 = vld [vmem:[%s2 + $0x50] sm:$0xff]
      %v2043 = vld [vmem:[%s2 + $0x58] sm:$0xff]
      %v2044 = vld [vmem:[%s2 + $0x60] sm:$0xff]
      %v2045 = vld [vmem:[%s2 + $0x68] sm:$0xff]
      %v2046 = vld [vmem:[%s2 + $0x70] sm:$0xff]
      %v2047 = vld [vmem:[%s2 + $0x78] sm:$0xff]
      %v2048 = vld [vmem:[%s3] sm:$0x3]
      %v2050 = vlaneseq
      %v2051 = vshrl.u32 %v2050, 7
      %v2052 = vsub.s32 0, %v2051
      %v2053 = vrot.slane %v2048, %v2052
      %v2054 = vlaneseq
      %v2055 = vshrl.u32 %v2054, 7
      %v2056 = vsub.s32 1, %v2055
      %v2057 = vrot.slane %v2048, %v2056
      %v2076 = vunpack.c.l.b16 %v2032
      %v2077 = vunpack.c.h.b16 %v2032
      %v2078 = vunpack.c.l.b16 %v2033
      %v2079 = vunpack.c.h.b16 %v2033
      %v2080 = vunpack.c.l.b16 %v2034
      %v2081 = vunpack.c.h.b16 %v2034
      %v2082 = vunpack.c.l.b16 %v2035
      %v2083 = vunpack.c.h.b16 %v2035
      %v2084 = vunpack.c.l.b16 %v2036
      %v2085 = vunpack.c.h.b16 %v2036
      %v2086 = vunpack.c.l.b16 %v2037
      %v2087 = vunpack.c.h.b16 %v2037
      %v2088 = vunpack.c.l.b16 %v2038
      %v2089 = vunpack.c.h.b16 %v2038
      %v2090 = vunpack.c.l.b16 %v2039
      %v2091 = vunpack.c.h.b16 %v2039
      %v2092 = vunpack.c.l.b16 %v2040
      %v2093 = vunpack.c.h.b16 %v2040
      %v2094 = vunpack.c.l.b16 %v2041
      %v2095 = vunpack.c.h.b16 %v2041
      %v2096 = vunpack.c.l.b16 %v2042
      %v2097 = vunpack.c.h.b16 %v2042
      %v2098 = vunpack.c.l.b16 %v2043
      %v2099 = vunpack.c.h.b16 %v2043
      %v2100 = vunpack.c.l.b16 %v2044
      %v2101 = vunpack.c.h.b16 %v2044
      %v2102 = vunpack.c.l.b16 %v2045
      %v2103 = vunpack.c.h.b16 %v2045
      %v2104 = vunpack.c.l.b16 %v2046
      %v2105 = vunpack.c.h.b16 %v2046
      %v2106 = vunpack.c.l.b16 %v2047
      %v2107 = vunpack.c.h.b16 %v2047
      %v2108 = vpack.c.b16 %v2078, %v2076
      %v2109 = vpack.c.b16 %v2079, %v2077
      %v2110 = vpack.c.b16 %v2082, %v2080
      %v2111 = vpack.c.b16 %v2083, %v2081
      %v2112 = vpack.c.b16 %v2086, %v2084
      %v2113 = vpack.c.b16 %v2087, %v2085
      %v2114 = vpack.c.b16 %v2090, %v2088
      %v2115 = vpack.c.b16 %v2091, %v2089
      %v2116 = vpack.c.b16 %v2094, %v2092
      %v2117 = vpack.c.b16 %v2095, %v2093
      %v2118 = vpack.c.b16 %v2098, %v2096
      %v2119 = vpack.c.b16 %v2099, %v2097
      %v2120 = vpack.c.b16 %v2102, %v2100
      %v2121 = vpack.c.b16 %v2103, %v2101
      %v2122 = vpack.c.b16 %v2106, %v2104
      %v2123 = vpack.c.b16 %v2107, %v2105
      %2140 = vmatprep.subr.bf16.mxu0 %v2109
      %2141 = vmatpush1.bf16.msra.mxu0 %v2108
      %2142 = vmatprep.subr.bf16.mxu0 %v2111
      %2143 = vmatpush1.bf16.msra.mxu0 %v2110
      %2144 = vmatprep.subr.bf16.mxu0 %v2113
      %2145 = vmatpush1.bf16.msra.mxu0 %v2112
      %2146 = vmatprep.subr.bf16.mxu0 %v2115
      %2147 = vmatpush1.bf16.msra.mxu0 %v2114
      %2148 = vmatprep.subr.bf16.mxu0 %v2117
      %2149 = vmatpush1.bf16.msra.mxu0 %v2116
      %2150 = vmatprep.subr.bf16.mxu0 %v2119
      %2151 = vmatpush1.bf16.msra.mxu0 %v2118
      %2152 = vmatprep.subr.bf16.mxu0 %v2121
      %2153 = vmatpush1.bf16.msra.mxu0 %v2120
      %2154 = vmatprep.subr.bf16.mxu0 %v2123
      %2155 = vmatpush1.bf16.msra.mxu0 %v2122
      %2156 = vmatprep.subr.bf16.mxu0 0
      %2157 = vmatpush1.bf16.msra.mxu0 0
      %2158 = vmatprep.subr.bf16.mxu0 0
      %2159 = vmatpush1.bf16.msra.mxu0 0
      %2160 = vmatprep.subr.bf16.mxu0 0
      %2161 = vmatpush1.bf16.msra.mxu0 0
      %2162 = vmatprep.subr.bf16.mxu0 0
      %2163 = vmatpush1.bf16.msra.mxu0 0
      %2164 = vmatprep.subr.bf16.mxu0 0
      %2165 = vmatpush1.bf16.msra.mxu0 0
      %2166 = vmatprep.subr.bf16.mxu0 0
      %2167 = vmatpush1.bf16.msra.mxu0 0
      %2168 = vmatprep.subr.bf16.mxu0 0
      %2169 = vmatpush1.bf16.msra.mxu0 0
      %2170 = vmatprep.subr.bf16.mxu0 0
      %2171 = vmatpush1.bf16.msra.mxu0 0
      %2172 = vmatprep.mubr.bf16.mxu0 0
      %2173 = vmatmul.mubr.bf16.gmra.mrb[0].mxu0 %v2016
      %v2174 = vpop.f32.mrb[0].mxu0
      %v2175 = vadd.f32 %v2053, %v2174
      %v2176 = vpop.f32.mrb[0].mxu0
      %v2177 = vadd.f32 %v2057, %v2176
      %v2178 = vpop.f32.mrb[0].mxu0
      %v2179 = vadd.f32 %v2053, %v2178
      %v2180 = vpop.f32.mrb[0].mxu0
      %v2181 = vadd.f32 %v2057, %v2180
      %2182 = vmatprep.mubr.bf16.mxu0 0
      %2183 = vmatmul.mubr.bf16.gmra.mrb[0].mxu0 %v2017
      %v2184 = vpop.f32.mrb[0].mxu0
      %v2185 = vadd.f32 %v2053, %v2184
      %v2186 = vpop.f32.mrb[0].mxu0
      %v2187 = vadd.f32 %v2057, %v2186
      %v2188 = vpop.f32.mrb[0].mxu0
      %v2189 = vadd.f32 %v2053, %v2188
      %v2190 = vpop.f32.mrb[0].mxu0
      %v2191 = vadd.f32 %v2057, %v2190
      %2192 = vmatprep.mubr.bf16.mxu0 0
      %2193 = vmatmul.mubr.bf16.gmra.mrb[0].mxu0 %v2018
      %v2194 = vpop.f32.mrb[0].mxu0
      %v2195 = vadd.f32 %v2053, %v2194
      %v2196 = vpop.f32.mrb[0].mxu0
      %v2197 = vadd.f32 %v2057, %v2196
      %v2198 = vpop.f32.mrb[0].mxu0
      %v2199 = vadd.f32 %v2053, %v2198
      %v2200 = vpop.f32.mrb[0].mxu0
      %v2201 = vadd.f32 %v2057, %v2200
      %2202 = vmatprep.mubr.bf16.mxu0 0
      %2203 = vmatmul.mubr.bf16.gmra.mrb[0].mxu0 %v2019
      %v2204 = vpop.f32.mrb[0].mxu0
      %v2205 = vadd.f32 %v2053, %v2204
      %v2206 = vpop.f32.mrb[0].mxu0
      %v2207 = vadd.f32 %v2057, %v2206
      %v2208 = vpop.f32.mrb[0].mxu0
      %v2209 = vadd.f32 %v2053, %v2208
      %v2210 = vpop.f32.mrb[0].mxu0
      %v2211 = vadd.f32 %v2057, %v2210
      %2212 = vmatprep.mubr.bf16.mxu0 0
      %2213 = vmatmul.mubr.bf16.gmra.mrb[0].mxu0 %v2020
      %v2214 = vpop.f32.mrb[0].mxu0
      %v2215 = vadd.f32 %v2053, %v2214
      %v2216 = vpop.f32.mrb[0].mxu0
      %v2217 = vadd.f32 %v2057, %v2216
      %v2218 = vpop.f32.mrb[0].mxu0
      %v2219 = vadd.f32 %v2053, %v2218
      %v2220 = vpop.f32.mrb[0].mxu0
      %v2221 = vadd.f32 %v2057, %v2220
      %2222 = vmatprep.mubr.bf16.mxu0 0
      %2223 = vmatmul.mubr.bf16.gmra.mrb[0].mxu0 %v2021
      %v2224 = vpop.f32.mrb[0].mxu0
      %v2225 = vadd.f32 %v2053, %v2224
      %v2226 = vpop.f32.mrb[0].mxu0
      %v2227 = vadd.f32 %v2057, %v2226
      %v2228 = vpop.f32.mrb[0].mxu0
      %v2229 = vadd.f32 %v2053, %v2228
      %v2230 = vpop.f32.mrb[0].mxu0
      %v2231 = vadd.f32 %v2057, %v2230
      %2232 = vmatprep.mubr.bf16.mxu0 0
      %2233 = vmatmul.mubr.bf16.gmra.mrb[0].mxu0 %v2022
      %v2234 = vpop.f32.mrb[0].mxu0
      %v2235 = vadd.f32 %v2053, %v2234
      %v2236 = vpop.f32.mrb[0].mxu0
      %v2237 = vadd.f32 %v2057, %v2236
      %v2238 = vpop.f32.mrb[0].mxu0
      %v2239 = vadd.f32 %v2053, %v2238
      %v2240 = vpop.f32.mrb[0].mxu0
      %v2241 = vadd.f32 %v2057, %v2240
      %2242 = vmatprep.mubr.bf16.mxu0 0
      %2243 = vmatmul.mubr.bf16.gmra.mrb[0].mxu0 %v2023
      %v2244 = vpop.f32.mrb[0].mxu0
      %v2245 = vadd.f32 %v2053, %v2244
      %v2246 = vpop.f32.mrb[0].mxu0
      %v2247 = vadd.f32 %v2057, %v2246
      %v2248 = vpop.f32.mrb[0].mxu0
      %v2249 = vadd.f32 %v2053, %v2248
      %v2250 = vpop.f32.mrb[0].mxu0
      %v2251 = vadd.f32 %v2057, %v2250
      %2252 = vmatprep.mubr.bf16.mxu0 0
      %2253 = vmatmul.mubr.bf16.gmra.mrb[0].mxu0 %v2024
      %v2254 = vpop.f32.mrb[0].mxu0
      %v2255 = vadd.f32 %v2053, %v2254
      %v2256 = vpop.f32.mrb[0].mxu0
      %v2257 = vadd.f32 %v2057, %v2256
      %v2258 = vpop.f32.mrb[0].mxu0
      %v2259 = vadd.f32 %v2053, %v2258
      %v2260 = vpop.f32.mrb[0].mxu0
      %v2261 = vadd.f32 %v2057, %v2260
      %2262 = vmatprep.mubr.bf16.mxu0 0
      %2263 = vmatmul.mubr.bf16.gmra.mrb[0].mxu0 %v2025
      %v2264 = vpop.f32.mrb[0].mxu0
      %v2265 = vadd.f32 %v2053, %v2264
      %v2266 = vpop.f32.mrb[0].mxu0
      %v2267 = vadd.f32 %v2057, %v2266
      %v2268 = vpop.f32.mrb[0].mxu0
      %v2269 = vadd.f32 %v2053, %v2268
      %v2270 = vpop.f32.mrb[0].mxu0
      %v2271 = vadd.f32 %v2057, %v2270
      %2272 = vmatprep.mubr.bf16.mxu0 0
      %2273 = vmatmul.mubr.bf16.gmra.mrb[0].mxu0 %v2026
      %v2274 = vpop.f32.mrb[0].mxu0
      %v2275 = vadd.f32 %v2053, %v2274
      %v2276 = vpop.f32.mrb[0].mxu0
      %v2277 = vadd.f32 %v2057, %v2276
      %v2278 = vpop.f32.mrb[0].mxu0
      %v2279 = vadd.f32 %v2053, %v2278
      %v2280 = vpop.f32.mrb[0].mxu0
      %v2281 = vadd.f32 %v2057, %v2280
      %2282 = vmatprep.mubr.bf16.mxu0 0
      %2283 = vmatmul.mubr.bf16.gmra.mrb[0].mxu0 %v2027
      %v2284 = vpop.f32.mrb[0].mxu0
      %v2285 = vadd.f32 %v2053, %v2284
      %v2286 = vpop.f32.mrb[0].mxu0
      %v2287 = vadd.f32 %v2057, %v2286
      %v2288 = vpop.f32.mrb[0].mxu0
      %v2289 = vadd.f32 %v2053, %v2288
      %v2290 = vpop.f32.mrb[0].mxu0
      %v2291 = vadd.f32 %v2057, %v2290
      %2292 = vmatprep.mubr.bf16.mxu0 0
      %2293 = vmatmul.mubr.bf16.gmra.mrb[0].mxu0 %v2028
      %v2294 = vpop.f32.mrb[0].mxu0
      %v2295 = vadd.f32 %v2053, %v2294
      %v2296 = vpop.f32.mrb[0].mxu0
      %v2297 = vadd.f32 %v2057, %v2296
      %v2298 = vpop.f32.mrb[0].mxu0
      %v2299 = vadd.f32 %v2053, %v2298
      %v2300 = vpop.f32.mrb[0].mxu0
      %v2301 = vadd.f32 %v2057, %v2300
      %2302 = vmatprep.mubr.bf16.mxu0 0
      %2303 = vmatmul.mubr.bf16.gmra.mrb[0].mxu0 %v2029
      %v2304 = vpop.f32.mrb[0].mxu0
      %v2305 = vadd.f32 %v2053, %v2304
      %v2306 = vpop.f32.mrb[0].mxu0
      %v2307 = vadd.f32 %v2057, %v2306
      %v2308 = vpop.f32.mrb[0].mxu0
      %v2309 = vadd.f32 %v2053, %v2308
      %v2310 = vpop.f32.mrb[0].mxu0
      %v2311 = vadd.f32 %v2057, %v2310
      %2312 = vmatprep.mubr.bf16.mxu0 0
      %2313 = vmatmul.mubr.bf16.gmra.mrb[0].mxu0 %v2030
      %v2314 = vpop.f32.mrb[0].mxu0
      %v2315 = vadd.f32 %v2053, %v2314
      %v2316 = vpop.f32.mrb[0].mxu0
      %v2317 = vadd.f32 %v2057, %v2316
      %v2318 = vpop.f32.mrb[0].mxu0
      %v2319 = vadd.f32 %v2053, %v2318
      %v2320 = vpop.f32.mrb[0].mxu0
      %v2321 = vadd.f32 %v2057, %v2320
      %2322 = vmatprep.mubr.bf16.mxu0 0
      %2323 = vmatmul.mubr.bf16.gmra.mrb[0].mxu0 %v2031
      %v2324 = vpop.f32.mrb[0].mxu0
      %v2325 = vadd.f32 %v2053, %v2324
      %v2326 = vpop.f32.mrb[0].mxu0
      %v2327 = vadd.f32 %v2057, %v2326
      %v2328 = vpop.f32.mrb[0].mxu0
      %v2329 = vadd.f32 %v2053, %v2328
      %v2330 = vpop.f32.mrb[0].mxu0
      %v2331 = vadd.f32 %v2057, %v2330
      %2332 = vdwg.mxu0
      %v2333 = vmax.f32 %v2175, 0.0
      %v2334 = vmax.f32 %v2177, 0.0
      %v2335 = vmax.f32 %v2179, 0.0
      %v2336 = vmax.f32 %v2181, 0.0
      %v2337 = vmax.f32 %v2185, 0.0
      %v2338 = vmax.f32 %v2187, 0.0
      %v2339 = vmax.f32 %v2189, 0.0
      %v2340 = vmax.f32 %v2191, 0.0
      %v2341 = vmax.f32 %v2195, 0.0
      %v2342 = vmax.f32 %v2197, 0.0
      %v2343 = vmax.f32 %v2199, 0.0
      %v2344 = vmax.f32 %v2201, 0.0
      %v2345 = vmax.f32 %v2205, 0.0
      %v2346 = vmax.f32 %v2207, 0.0
      %v2347 = vmax.f32 %v2209, 0.0
      %v2348 = vmax.f32 %v2211, 0.0
      %v2349 = vmax.f32 %v2215, 0.0
      %v2350 = vmax.f32 %v2217, 0.0
      %v2351 = vmax.f32 %v2219, 0.0
      %v2352 = vmax.f32 %v2221, 0.0
      %v2353 = vmax.f32 %v2225, 0.0
      %v2354 = vmax.f32 %v2227, 0.0
      %v2355 = vmax.f32 %v2229, 0.0
      %v2356 = vmax.f32 %v2231, 0.0
      %v2357 = vmax.f32 %v2235, 0.0
      %v2358 = vmax.f32 %v2237, 0.0
      %v2359 = vmax.f32 %v2239, 0.0
      %v2360 = vmax.f32 %v2241, 0.0
      %v2361 = vmax.f32 %v2245, 0.0
      %v2362 = vmax.f32 %v2247, 0.0
      %v2363 = vmax.f32 %v2249, 0.0
      %v2364 = vmax.f32 %v2251, 0.0
      %v2365 = vmax.f32 %v2255, 0.0
      %v2366 = vmax.f32 %v2257, 0.0
      %v2367 = vmax.f32 %v2259, 0.0
      %v2368 = vmax.f32 %v2261, 0.0
      %v2369 = vmax.f32 %v2265, 0.0
      %v2370 = vmax.f32 %v2267, 0.0
      %v2371 = vmax.f32 %v2269, 0.0
      %v2372 = vmax.f32 %v2271, 0.0
      %v2373 = vmax.f32 %v2275, 0.0
      %v2374 = vmax.f32 %v2277, 0.0
      %v2375 = vmax.f32 %v2279, 0.0
      %v2376 = vmax.f32 %v2281, 0.0
      %v2377 = vmax.f32 %v2285, 0.0
      %v2378 = vmax.f32 %v2287, 0.0
      %v2379 = vmax.f32 %v2289, 0.0
      %v2380 = vmax.f32 %v2291, 0.0
      %v2381 = vmax.f32 %v2295, 0.0
      %v2382 = vmax.f32 %v2297, 0.0
      %v2383 = vmax.f32 %v2299, 0.0
      %v2384 = vmax.f32 %v2301, 0.0
      %v2385 = vmax.f32 %v2305, 0.0
      %v2386 = vmax.f32 %v2307, 0.0
      %v2387 = vmax.f32 %v2309, 0.0
      %v2388 = vmax.f32 %v2311, 0.0
      %v2389 = vmax.f32 %v2315, 0.0
      %v2390 = vmax.f32 %v2317, 0.0
      %v2391 = vmax.f32 %v2319, 0.0
      %v2392 = vmax.f32 %v2321, 0.0
      %v2393 = vmax.f32 %v2325, 0.0
      %v2394 = vmax.f32 %v2327, 0.0
      %v2395 = vmax.f32 %v2329, 0.0
      %v2396 = vmax.f32 %v2331, 0.0
      %v2397 = vpack.c.bf16 %v2335, %v2333
      %v2398 = vpack.c.bf16 %v2336, %v2334
      %v2399 = vpack.c.bf16 %v2339, %v2337
      %v2400 = vpack.c.bf16 %v2340, %v2338
      %v2401 = vpack.c.bf16 %v2343, %v2341
      %v2402 = vpack.c.bf16 %v2344, %v2342
      %v2403 = vpack.c.bf16 %v2347, %v2345
      %v2404 = vpack.c.bf16 %v2348, %v2346
      %v2405 = vpack.c.bf16 %v2351, %v2349
      %v2406 = vpack.c.bf16 %v2352, %v2350
      %v2407 = vpack.c.bf16 %v2355, %v2353
      %v2408 = vpack.c.bf16 %v2356, %v2354
      %v2409 = vpack.c.bf16 %v2359, %v2357
      %v2410 = vpack.c.bf16 %v2360, %v2358
      %v2411 = vpack.c.bf16 %v2363, %v2361
      %v2412 = vpack.c.bf16 %v2364, %v2362
      %v2413 = vpack.c.bf16 %v2367, %v2365
      %v2414 = vpack.c.bf16 %v2368, %v2366
      %v2415 = vpack.c.bf16 %v2371, %v2369
      %v2416 = vpack.c.bf16 %v2372, %v2370
      %v2417 = vpack.c.bf16 %v2375, %v2373
      %v2418 = vpack.c.bf16 %v2376, %v2374
      %v2419 = vpack.c.bf16 %v2379, %v2377
      %v2420 = vpack.c.bf16 %v2380, %v2378
      %v2421 = vpack.c.bf16 %v2383, %v2381
      %v2422 = vpack.c.bf16 %v2384, %v2382
      %v2423 = vpack.c.bf16 %v2387, %v2385
      %v2424 = vpack.c.bf16 %v2388, %v2386
      %v2425 = vpack.c.bf16 %v2391, %v2389
      %v2426 = vpack.c.bf16 %v2392, %v2390
      %v2427 = vpack.c.bf16 %v2395, %v2393
      %v2428 = vpack.c.bf16 %v2396, %v2394
      %v2429 = vld [vmem:[%s4] sm:$0xf]
      %v2430 = vld [vmem:[%s4 + $0x4] sm:$0xf]
      %v2431 = vld [vmem:[%s4 + $0x8] sm:$0xf]
      %v2432 = vld [vmem:[%s4 + $0xc] sm:$0xf]
      %v2433 = vld [vmem:[%s4 + $0x10] sm:$0xf]
      %v2434 = vld [vmem:[%s4 + $0x14] sm:$0xf]
      %v2435 = vld [vmem:[%s4 + $0x18] sm:$0xf]
      %v2436 = vld [vmem:[%s4 + $0x1c] sm:$0xf]
      %v2437 = vld [vmem:[%s4 + $0x20] sm:$0xf]
      %v2438 = vld [vmem:[%s4 + $0x24] sm:$0xf]
      %v2439 = vld [vmem:[%s4 + $0x28] sm:$0xf]
      %v2440 = vld [vmem:[%s4 + $0x2c] sm:$0xf]
      %v2441 = vld [vmem:[%s4 + $0x30] sm:$0xf]
      %v2442 = vld [vmem:[%s4 + $0x34] sm:$0xf]
      %v2443 = vld [vmem:[%s4 + $0x38] sm:$0xf]
      %v2444 = vld [vmem:[%s4 + $0x3c] sm:$0xf]
      %v2445 = vld [vmem:[%s4 + $0x40] sm:$0xf]
      %v2446 = vld [vmem:[%s4 + $0x44] sm:$0xf]
      %v2447 = vld [vmem:[%s4 + $0x48] sm:$0xf]
      %v2448 = vld [vmem:[%s4 + $0x4c] sm:$0xf]
      %v2449 = vld [vmem:[%s4 + $0x50] sm:$0xf]
      %v2450 = vld [vmem:[%s4 + $0x54] sm:$0xf]
      %v2451 = vld [vmem:[%s4 + $0x58] sm:$0xf]
      %v2452 = vld [vmem:[%s4 + $0x5c] sm:$0xf]
      %v2453 = vld [vmem:[%s4 + $0x60] sm:$0xf]
      %v2454 = vld [vmem:[%s4 + $0x64] sm:$0xf]
      %v2455 = vld [vmem:[%s4 + $0x68] sm:$0xf]
      %v2456 = vld [vmem:[%s4 + $0x6c] sm:$0xf]
      %v2457 = vld [vmem:[%s4 + $0x70] sm:$0xf]
      %v2458 = vld [vmem:[%s4 + $0x74] sm:$0xf]
      %v2459 = vld [vmem:[%s4 + $0x78] sm:$0xf]
      %v2460 = vld [vmem:[%s4 + $0x7c] sm:$0xf]
      %v2461 = vld [vmem:[%s5] sm:$0x1]
      %v2463 = vlaneseq
      %v2464 = vshrl.u32 %v2463, 7
      %v2465 = vsub.s32 0, %v2464
      %v2466 = vrot.slane %v2461, %v2465
      %v2500 = vunpack.c.l.b16 %v2429
      %v2501 = vunpack.c.l.b16 %v2430
      %v2502 = vunpack.c.l.b16 %v2431
      %v2503 = vunpack.c.l.b16 %v2432
      %v2504 = vunpack.c.l.b16 %v2433
      %v2505 = vunpack.c.l.b16 %v2434
      %v2506 = vunpack.c.l.b16 %v2435
      %v2507 = vunpack.c.l.b16 %v2436
      %v2508 = vunpack.c.l.b16 %v2437
      %v2509 = vunpack.c.l.b16 %v2438
      %v2510 = vunpack.c.l.b16 %v2439
      %v2511 = vunpack.c.l.b16 %v2440
      %v2512 = vunpack.c.l.b16 %v2441
      %v2513 = vunpack.c.l.b16 %v2442
      %v2514 = vunpack.c.l.b16 %v2443
      %v2515 = vunpack.c.l.b16 %v2444
      %v2516 = vunpack.c.l.b16 %v2445
      %v2517 = vunpack.c.l.b16 %v2446
      %v2518 = vunpack.c.l.b16 %v2447
      %v2519 = vunpack.c.l.b16 %v2448
      %v2520 = vunpack.c.l.b16 %v2449
      %v2521 = vunpack.c.l.b16 %v2450
      %v2522 = vunpack.c.l.b16 %v2451
      %v2523 = vunpack.c.l.b16 %v2452
      %v2524 = vunpack.c.l.b16 %v2453
      %v2525 = vunpack.c.l.b16 %v2454
      %v2526 = vunpack.c.l.b16 %v2455
      %v2527 = vunpack.c.l.b16 %v2456
      %v2528 = vunpack.c.l.b16 %v2457
      %v2529 = vunpack.c.l.b16 %v2458
      %v2530 = vunpack.c.l.b16 %v2459
      %v2531 = vunpack.c.l.b16 %v2460
      %v2532 = vpack.c.b16 %v2501, %v2500
      %v2533 = vpack.c.b16 %v2503, %v2502
      %v2534 = vpack.c.b16 %v2505, %v2504
      %v2535 = vpack.c.b16 %v2507, %v2506
      %v2536 = vpack.c.b16 %v2509, %v2508
      %v2537 = vpack.c.b16 %v2511, %v2510
      %v2538 = vpack.c.b16 %v2513, %v2512
      %v2539 = vpack.c.b16 %v2515, %v2514
      %v2540 = vpack.c.b16 %v2517, %v2516
      %v2541 = vpack.c.b16 %v2519, %v2518
      %v2542 = vpack.c.b16 %v2521, %v2520
      %v2543 = vpack.c.b16 %v2523, %v2522
      %v2544 = vpack.c.b16 %v2525, %v2524
      %v2545 = vpack.c.b16 %v2527, %v2526
      %v2546 = vpack.c.b16 %v2529, %v2528
      %v2547 = vpack.c.b16 %v2531, %v2530
      %2564 = vmatprep.subr.bf16.mxu0 0
      %2565 = vmatpush1.bf16.msra.mxu0 %v2532
      %2566 = vmatprep.subr.bf16.mxu0 0
      %2567 = vmatpush1.bf16.msra.mxu0 %v2533
      %2568 = vmatprep.subr.bf16.mxu0 0
      %2569 = vmatpush1.bf16.msra.mxu0 %v2534
      %2570 = vmatprep.subr.bf16.mxu0 0
      %2571 = vmatpush1.bf16.msra.mxu0 %v2535
      %2572 = vmatprep.subr.bf16.mxu0 0
      %2573 = vmatpush1.bf16.msra.mxu0 %v2536
      %2574 = vmatprep.subr.bf16.mxu0 0
      %2575 = vmatpush1.bf16.msra.mxu0 %v2537
      %2576 = vmatprep.subr.bf16.mxu0 0
      %2577 = vmatpush1.bf16.msra.mxu0 %v2538
      %2578 = vmatprep.subr.bf16.mxu0 0
      %2579 = vmatpush1.bf16.msra.mxu0 %v2539
      %2580 = vmatprep.subr.bf16.mxu0 0
      %2581 = vmatpush1.bf16.msra.mxu0 %v2540
      %2582 = vmatprep.subr.bf16.mxu0 0
      %2583 = vmatpush1.bf16.msra.mxu0 %v2541
      %2584 = vmatprep.subr.bf16.mxu0 0
      %2585 = vmatpush1.bf16.msra.mxu0 %v2542
      %2586 = vmatprep.subr.bf16.mxu0 0
      %2587 = vmatpush1.bf16.msra.mxu0 %v2543
      %2588 = vmatprep.subr.bf16.mxu0 0
      %2589 = vmatpush1.bf16.msra.mxu0 %v2544
      %2590 = vmatprep.subr.bf16.mxu0 0
      %2591 = vmatpush1.bf16.msra.mxu0 %v2545
      %2592 = vmatprep.subr.bf16.mxu0 0
      %2593 = vmatpush1.bf16.msra.mxu0 %v2546
      %2594 = vmatprep.subr.bf16.mxu0 0
      %2595 = vmatpush1.bf16.msra.mxu0 %v2547
      %2596 = vmatprep.mubr.bf16.mxu0 %v2398
      %2597 = vmatmul.mubr.bf16.gmra.mrb[0].mxu0 %v2397
      %v2598 = vpop.f32.mrb[0].mxu0
      %v2599 = vadd.f32 %v2466, %v2598
      %v2600 = vpop.f32.mrb[0].mxu0
      %v2601 = vpop.f32.mrb[0].mxu0
      %v2602 = vadd.f32 %v2466, %v2601
      %v2603 = vpop.f32.mrb[0].mxu0
      %2604 = vmatprep.mubr.bf16.mxu0 %v2400
      %2605 = vmatmul.mubr.bf16.gmra.mrb[0].mxu0 %v2399
      %v2606 = vpop.f32.mrb[0].mxu0
      %v2607 = vadd.f32 %v2466, %v2606
      %v2608 = vpop.f32.mrb[0].mxu0
      %v2609 = vpop.f32.mrb[0].mxu0
      %v2610 = vadd.f32 %v2466, %v2609
      %v2611 = vpop.f32.mrb[0].mxu0
      %2612 = vmatprep.mubr.bf16.mxu0 %v2402
      %2613 = vmatmul.mubr.bf16.gmra.mrb[0].mxu0 %v2401
      %v2614 = vpop.f32.mrb[0].mxu0
      %v2615 = vadd.f32 %v2466, %v2614
      %v2616 = vpop.f32.mrb[0].mxu0
      %v2617 = vpop.f32.mrb[0].mxu0
      %v2618 = vadd.f32 %v2466, %v2617
      %v2619 = vpop.f32.mrb[0].mxu0
      %2620 = vmatprep.mubr.bf16.mxu0 %v2404
      %2621 = vmatmul.mubr.bf16.gmra.mrb[0].mxu0 %v2403
      %v2622 = vpop.f32.mrb[0].mxu0
      %v2623 = vadd.f32 %v2466, %v2622
      %v2624 = vpop.f32.mrb[0].mxu0
      %v2625 = vpop.f32.mrb[0].mxu0
      %v2626 = vadd.f32 %v2466, %v2625
      %v2627 = vpop.f32.mrb[0].mxu0
      %2628 = vmatprep.mubr.bf16.mxu0 %v2406
      %2629 = vmatmul.mubr.bf16.gmra.mrb[0].mxu0 %v2405
      %v2630 = vpop.f32.mrb[0].mxu0
      %v2631 = vadd.f32 %v2466, %v2630
      %v2632 = vpop.f32.mrb[0].mxu0
      %v2633 = vpop.f32.mrb[0].mxu0
      %v2634 = vadd.f32 %v2466, %v2633
      %v2635 = vpop.f32.mrb[0].mxu0
      %2636 = vmatprep.mubr.bf16.mxu0 %v2408
      %2637 = vmatmul.mubr.bf16.gmra.mrb[0].mxu0 %v2407
      %v2638 = vpop.f32.mrb[0].mxu0
      %v2639 = vadd.f32 %v2466, %v2638
      %v2640 = vpop.f32.mrb[0].mxu0
      %v2641 = vpop.f32.mrb[0].mxu0
      %v2642 = vadd.f32 %v2466, %v2641
      %v2643 = vpop.f32.mrb[0].mxu0
      %2644 = vmatprep.mubr.bf16.mxu0 %v2410
      %2645 = vmatmul.mubr.bf16.gmra.mrb[0].mxu0 %v2409
      %v2646 = vpop.f32.mrb[0].mxu0
      %v2647 = vadd.f32 %v2466, %v2646
      %v2648 = vpop.f32.mrb[0].mxu0
      %v2649 = vpop.f32.mrb[0].mxu0
      %v2650 = vadd.f32 %v2466, %v2649
      %v2651 = vpop.f32.mrb[0].mxu0
      %2652 = vmatprep.mubr.bf16.mxu0 %v2412
      %2653 = vmatmul.mubr.bf16.gmra.mrb[0].mxu0 %v2411
      %v2654 = vpop.f32.mrb[0].mxu0
      %v2655 = vadd.f32 %v2466, %v2654
      %v2656 = vpop.f32.mrb[0].mxu0
      %v2657 = vpop.f32.mrb[0].mxu0
      %v2658 = vadd.f32 %v2466, %v2657
      %v2659 = vpop.f32.mrb[0].mxu0
      %2660 = vmatprep.mubr.bf16.mxu0 %v2414
      %2661 = vmatmul.mubr.bf16.gmra.mrb[0].mxu0 %v2413
      %v2662 = vpop.f32.mrb[0].mxu0
      %v2663 = vadd.f32 %v2466, %v2662
      %v2664 = vpop.f32.mrb[0].mxu0
      %v2665 = vpop.f32.mrb[0].mxu0
      %v2666 = vadd.f32 %v2466, %v2665
      %v2667 = vpop.f32.mrb[0].mxu0
      %2668 = vmatprep.mubr.bf16.mxu0 %v2416
      %2669 = vmatmul.mubr.bf16.gmra.mrb[0].mxu0 %v2415
      %v2670 = vpop.f32.mrb[0].mxu0
      %v2671 = vadd.f32 %v2466, %v2670
      %v2672 = vpop.f32.mrb[0].mxu0
      %v2673 = vpop.f32.mrb[0].mxu0
      %v2674 = vadd.f32 %v2466, %v2673
      %v2675 = vpop.f32.mrb[0].mxu0
      %2676 = vmatprep.mubr.bf16.mxu0 %v2418
      %2677 = vmatmul.mubr.bf16.gmra.mrb[0].mxu0 %v2417
      %v2678 = vpop.f32.mrb[0].mxu0
      %v2679 = vadd.f32 %v2466, %v2678
      %v2680 = vpop.f32.mrb[0].mxu0
      %v2681 = vpop.f32.mrb[0].mxu0
      %v2682 = vadd.f32 %v2466, %v2681
      %v2683 = vpop.f32.mrb[0].mxu0
      %2684 = vmatprep.mubr.bf16.mxu0 %v2420
      %2685 = vmatmul.mubr.bf16.gmra.mrb[0].mxu0 %v2419
      %v2686 = vpop.f32.mrb[0].mxu0
      %v2687 = vadd.f32 %v2466, %v2686
      %v2688 = vpop.f32.mrb[0].mxu0
      %v2689 = vpop.f32.mrb[0].mxu0
      %v2690 = vadd.f32 %v2466, %v2689
      %v2691 = vpop.f32.mrb[0].mxu0
      %2692 = vmatprep.mubr.bf16.mxu0 %v2422
      %2693 = vmatmul.mubr.bf16.gmra.mrb[0].mxu0 %v2421
      %v2694 = vpop.f32.mrb[0].mxu0
      %v2695 = vadd.f32 %v2466, %v2694
      %v2696 = vpop.f32.mrb[0].mxu0
      %v2697 = vpop.f32.mrb[0].mxu0
      %v2698 = vadd.f32 %v2466, %v2697
      %v2699 = vpop.f32.mrb[0].mxu0
      %2700 = vmatprep.mubr.bf16.mxu0 %v2424
      %2701 = vmatmul.mubr.bf16.gmra.mrb[0].mxu0 %v2423
      %v2702 = vpop.f32.mrb[0].mxu0
      %v2703 = vadd.f32 %v2466, %v2702
      %v2704 = vpop.f32.mrb[0].mxu0
      %v2705 = vpop.f32.mrb[0].mxu0
      %v2706 = vadd.f32 %v2466, %v2705
      %v2707 = vpop.f32.mrb[0].mxu0
      %2708 = vmatprep.mubr.bf16.mxu0 %v2426
      %2709 = vmatmul.mubr.bf16.gmra.mrb[0].mxu0 %v2425
      %v2710 = vpop.f32.mrb[0].mxu0
      %v2711 = vadd.f32 %v2466, %v2710
      %v2712 = vpop.f32.mrb[0].mxu0
      %v2713 = vpop.f32.mrb[0].mxu0
      %v2714 = vadd.f32 %v2466, %v2713
      %v2715 = vpop.f32.mrb[0].mxu0
      %2716 = vmatprep.mubr.bf16.mxu0 %v2428
      %2717 = vmatmul.mubr.bf16.gmra.mrb[0].mxu0 %v2427
      %v2718 = vpop.f32.mrb[0].mxu0
      %v2719 = vadd.f32 %v2466, %v2718
      %v2720 = vpop.f32.mrb[0].mxu0
      %v2721 = vpop.f32.mrb[0].mxu0
      %v2722 = vadd.f32 %v2466, %v2721
      %v2723 = vpop.f32.mrb[0].mxu0
      %2724 = vdwg.mxu0
      %v2725 = vmax.f32 %v2599, 0.0
      %v2726 = vmax.f32 %v2602, 0.0
      %v2727 = vmax.f32 %v2607, 0.0
      %v2728 = vmax.f32 %v2610, 0.0
      %v2729 = vmax.f32 %v2615, 0.0
      %v2730 = vmax.f32 %v2618, 0.0
      %v2731 = vmax.f32 %v2623, 0.0
      %v2732 = vmax.f32 %v2626, 0.0
      %v2733 = vmax.f32 %v2631, 0.0
      %v2734 = vmax.f32 %v2634, 0.0
      %v2735 = vmax.f32 %v2639, 0.0
      %v2736 = vmax.f32 %v2642, 0.0
      %v2737 = vmax.f32 %v2647, 0.0
      %v2738 = vmax.f32 %v2650, 0.0
      %v2739 = vmax.f32 %v2655, 0.0
      %v2740 = vmax.f32 %v2658, 0.0
      %v2741 = vmax.f32 %v2663, 0.0
      %v2742 = vmax.f32 %v2666, 0.0
      %v2743 = vmax.f32 %v2671, 0.0
      %v2744 = vmax.f32 %v2674, 0.0
      %v2745 = vmax.f32 %v2679, 0.0
      %v2746 = vmax.f32 %v2682, 0.0
      %v2747 = vmax.f32 %v2687, 0.0
      %v2748 = vmax.f32 %v2690, 0.0
      %v2749 = vmax.f32 %v2695, 0.0
      %v2750 = vmax.f32 %v2698, 0.0
      %v2751 = vmax.f32 %v2703, 0.0
      %v2752 = vmax.f32 %v2706, 0.0
      %v2753 = vmax.f32 %v2711, 0.0
      %v2754 = vmax.f32 %v2714, 0.0
      %v2755 = vmax.f32 %v2719, 0.0
      %v2756 = vmax.f32 %v2722, 0.0
      %v2757 = vpack.c.bf16 %v2726, %v2725
      %v2758 = vpack.c.bf16 %v2728, %v2727
      %v2759 = vpack.c.bf16 %v2730, %v2729
      %v2760 = vpack.c.bf16 %v2732, %v2731
      %v2761 = vpack.c.bf16 %v2734, %v2733
      %v2762 = vpack.c.bf16 %v2736, %v2735
      %v2763 = vpack.c.bf16 %v2738, %v2737
      %v2764 = vpack.c.bf16 %v2740, %v2739
      %v2765 = vpack.c.bf16 %v2742, %v2741
      %v2766 = vpack.c.bf16 %v2744, %v2743
      %v2767 = vpack.c.bf16 %v2746, %v2745
      %v2768 = vpack.c.bf16 %v2748, %v2747
      %v2769 = vpack.c.bf16 %v2750, %v2749
      %v2770 = vpack.c.bf16 %v2752, %v2751
      %v2771 = vpack.c.bf16 %v2754, %v2753
      %v2772 = vpack.c.bf16 %v2756, %v2755
      %v2773 = vld [vmem:[%s6] sm:$0xf]
      %v2774 = vld [vmem:[%s6 + $0x4] sm:$0xf]
      %v2775 = vld [vmem:[%s6 + $0x8] sm:$0xf]
      %v2776 = vld [vmem:[%s6 + $0xc] sm:$0xf]
      %v2777 = vld [vmem:[%s6 + $0x10] sm:$0xf]
      %v2778 = vld [vmem:[%s6 + $0x14] sm:$0xf]
      %v2779 = vld [vmem:[%s6 + $0x18] sm:$0xf]
      %v2780 = vld [vmem:[%s6 + $0x1c] sm:$0xf]
      %v2781 = vld [vmem:[%s6 + $0x20] sm:$0xf]
      %v2782 = vld [vmem:[%s6 + $0x24] sm:$0xf]
      %v2783 = vld [vmem:[%s6 + $0x28] sm:$0xf]
      %v2784 = vld [vmem:[%s6 + $0x2c] sm:$0xf]
      %v2785 = vld [vmem:[%s6 + $0x30] sm:$0xf]
      %v2786 = vld [vmem:[%s6 + $0x34] sm:$0xf]
      %v2787 = vld [vmem:[%s6 + $0x38] sm:$0xf]
      %v2788 = vld [vmem:[%s6 + $0x3c] sm:$0xf]
      %v2789 = vld [vmem:[%s7] sm:$0x1]
      %v2791 = vlaneseq
      %v2792 = vshrl.u32 %v2791, 7
      %v2793 = vsub.s32 0, %v2792
      %v2794 = vrot.slane %v2789, %v2793
      %v2812 = vunpack.c.l.b16 %v2773
      %v2813 = vunpack.c.l.b16 %v2774
      %v2814 = vunpack.c.l.b16 %v2775
      %v2815 = vunpack.c.l.b16 %v2776
      %v2816 = vunpack.c.l.b16 %v2777
      %v2817 = vunpack.c.l.b16 %v2778
      %v2818 = vunpack.c.l.b16 %v2779
      %v2819 = vunpack.c.l.b16 %v2780
      %v2820 = vunpack.c.l.b16 %v2781
      %v2821 = vunpack.c.l.b16 %v2782
      %v2822 = vunpack.c.l.b16 %v2783
      %v2823 = vunpack.c.l.b16 %v2784
      %v2824 = vunpack.c.l.b16 %v2785
      %v2825 = vunpack.c.l.b16 %v2786
      %v2826 = vunpack.c.l.b16 %v2787
      %v2827 = vunpack.c.l.b16 %v2788
      %v2828 = vpack.c.b16 %v2813, %v2812
      %v2829 = vpack.c.b16 %v2815, %v2814
      %v2830 = vpack.c.b16 %v2817, %v2816
      %v2831 = vpack.c.b16 %v2819, %v2818
      %v2832 = vpack.c.b16 %v2821, %v2820
      %v2833 = vpack.c.b16 %v2823, %v2822
      %v2834 = vpack.c.b16 %v2825, %v2824
      %v2835 = vpack.c.b16 %v2827, %v2826
      %2844 = vmatprep.subr.bf16.mxu0 0
      %2845 = vmatpush1.bf16.msra.mxu0 %v2828
      %2846 = vmatprep.subr.bf16.mxu0 0
      %2847 = vmatpush1.bf16.msra.mxu0 %v2829
      %2848 = vmatprep.subr.bf16.mxu0 0
      %2849 = vmatpush1.bf16.msra.mxu0 %v2830
      %2850 = vmatprep.subr.bf16.mxu0 0
      %2851 = vmatpush1.bf16.msra.mxu0 %v2831
      %2852 = vmatprep.subr.bf16.mxu0 0
      %2853 = vmatpush1.bf16.msra.mxu0 %v2832
      %2854 = vmatprep.subr.bf16.mxu0 0
      %2855 = vmatpush1.bf16.msra.mxu0 %v2833
      %2856 = vmatprep.subr.bf16.mxu0 0
      %2857 = vmatpush1.bf16.msra.mxu0 %v2834
      %2858 = vmatprep.subr.bf16.mxu0 0
      %2859 = vmatpush1.bf16.msra.mxu0 %v2835
      %2860 = vmatprep.subr.bf16.mxu0 0
      %2861 = vmatpush1.bf16.msra.mxu0 0
      %2862 = vmatprep.subr.bf16.mxu0 0
      %2863 = vmatpush1.bf16.msra.mxu0 0
      %2864 = vmatprep.subr.bf16.mxu0 0
      %2865 = vmatpush1.bf16.msra.mxu0 0
      %2866 = vmatprep.subr.bf16.mxu0 0
      %2867 = vmatpush1.bf16.msra.mxu0 0
      %2868 = vmatprep.subr.bf16.mxu0 0
      %2869 = vmatpush1.bf16.msra.mxu0 0
      %2870 = vmatprep.subr.bf16.mxu0 0
      %2871 = vmatpush1.bf16.msra.mxu0 0
      %2872 = vmatprep.subr.bf16.mxu0 0
      %2873 = vmatpush1.bf16.msra.mxu0 0
      %2874 = vmatprep.subr.bf16.mxu0 0
      %2875 = vmatpush1.bf16.msra.mxu0 0
      %2876 = vmatprep.mubr.bf16.mxu0 0
      %2877 = vmatmul.mubr.bf16.gmra.mrb[0].mxu0 %v2757
      %v2878 = vpop.f32.mrb[0].mxu0
      %v2879 = vadd.f32 %v2794, %v2878
      %v2880 = vpop.f32.mrb[0].mxu0
      %v2881 = vpop.f32.mrb[0].mxu0
      %v2882 = vadd.f32 %v2794, %v2881
      %v2883 = vpop.f32.mrb[0].mxu0
      %2884 = vmatprep.mubr.bf16.mxu0 0
      %2885 = vmatmul.mubr.bf16.gmra.mrb[0].mxu0 %v2758
      %v2886 = vpop.f32.mrb[0].mxu0
      %v2887 = vadd.f32 %v2794, %v2886
      %v2888 = vpop.f32.mrb[0].mxu0
      %v2889 = vpop.f32.mrb[0].mxu0
      %v2890 = vadd.f32 %v2794, %v2889
      %v2891 = vpop.f32.mrb[0].mxu0
      %2892 = vmatprep.mubr.bf16.mxu0 0
      %2893 = vmatmul.mubr.bf16.gmra.mrb[0].mxu0 %v2759
      %v2894 = vpop.f32.mrb[0].mxu0
      %v2895 = vadd.f32 %v2794, %v2894
      %v2896 = vpop.f32.mrb[0].mxu0
      %v2897 = vpop.f32.mrb[0].mxu0
      %v2898 = vadd.f32 %v2794, %v2897
      %v2899 = vpop.f32.mrb[0].mxu0
      %2900 = vmatprep.mubr.bf16.mxu0 0
      %2901 = vmatmul.mubr.bf16.gmra.mrb[0].mxu0 %v2760
      %v2902 = vpop.f32.mrb[0].mxu0
      %v2903 = vadd.f32 %v2794, %v2902
      %v2904 = vpop.f32.mrb[0].mxu0
      %v2905 = vpop.f32.mrb[0].mxu0
      %v2906 = vadd.f32 %v2794, %v2905
      %v2907 = vpop.f32.mrb[0].mxu0
      %2908 = vmatprep.mubr.bf16.mxu0 0
      %2909 = vmatmul.mubr.bf16.gmra.mrb[0].mxu0 %v2761
      %v2910 = vpop.f32.mrb[0].mxu0
      %v2911 = vadd.f32 %v2794, %v2910
      %v2912 = vpop.f32.mrb[0].mxu0
      %v2913 = vpop.f32.mrb[0].mxu0
      %v2914 = vadd.f32 %v2794, %v2913
      %v2915 = vpop.f32.mrb[0].mxu0
      %2916 = vmatprep.mubr.bf16.mxu0 0
      %2917 = vmatmul.mubr.bf16.gmra.mrb[0].mxu0 %v2762
      %v2918 = vpop.f32.mrb[0].mxu0
      %v2919 = vadd.f32 %v2794, %v2918
      %v2920 = vpop.f32.mrb[0].mxu0
      %v2921 = vpop.f32.mrb[0].mxu0
      %v2922 = vadd.f32 %v2794, %v2921
      %v2923 = vpop.f32.mrb[0].mxu0
      %2924 = vmatprep.mubr.bf16.mxu0 0
      %2925 = vmatmul.mubr.bf16.gmra.mrb[0].mxu0 %v2763
      %v2926 = vpop.f32.mrb[0].mxu0
      %v2927 = vadd.f32 %v2794, %v2926
      %v2928 = vpop.f32.mrb[0].mxu0
      %v2929 = vpop.f32.mrb[0].mxu0
      %v2930 = vadd.f32 %v2794, %v2929
      %v2931 = vpop.f32.mrb[0].mxu0
      %2932 = vmatprep.mubr.bf16.mxu0 0
      %2933 = vmatmul.mubr.bf16.gmra.mrb[0].mxu0 %v2764
      %v2934 = vpop.f32.mrb[0].mxu0
      %v2935 = vadd.f32 %v2794, %v2934
      %v2936 = vpop.f32.mrb[0].mxu0
      %v2937 = vpop.f32.mrb[0].mxu0
      %v2938 = vadd.f32 %v2794, %v2937
      %v2939 = vpop.f32.mrb[0].mxu0
      %2940 = vmatprep.mubr.bf16.mxu0 0
      %2941 = vmatmul.mubr.bf16.gmra.mrb[0].mxu0 %v2765
      %v2942 = vpop.f32.mrb[0].mxu0
      %v2943 = vadd.f32 %v2794, %v2942
      %v2944 = vpop.f32.mrb[0].mxu0
      %v2945 = vpop.f32.mrb[0].mxu0
      %v2946 = vadd.f32 %v2794, %v2945
      %v2947 = vpop.f32.mrb[0].mxu0
      %2948 = vmatprep.mubr.bf16.mxu0 0
      %2949 = vmatmul.mubr.bf16.gmra.mrb[0].mxu0 %v2766
      %v2950 = vpop.f32.mrb[0].mxu0
      %v2951 = vadd.f32 %v2794, %v2950
      %v2952 = vpop.f32.mrb[0].mxu0
      %v2953 = vpop.f32.mrb[0].mxu0
      %v2954 = vadd.f32 %v2794, %v2953
      %v2955 = vpop.f32.mrb[0].mxu0
      %2956 = vmatprep.mubr.bf16.mxu0 0
      %2957 = vmatmul.mubr.bf16.gmra.mrb[0].mxu0 %v2767
      %v2958 = vpop.f32.mrb[0].mxu0
      %v2959 = vadd.f32 %v2794, %v2958
      %v2960 = vpop.f32.mrb[0].mxu0
      %v2961 = vpop.f32.mrb[0].mxu0
      %v2962 = vadd.f32 %v2794, %v2961
      %v2963 = vpop.f32.mrb[0].mxu0
      %2964 = vmatprep.mubr.bf16.mxu0 0
      %2965 = vmatmul.mubr.bf16.gmra.mrb[0].mxu0 %v2768
      %v2966 = vpop.f32.mrb[0].mxu0
      %v2967 = vadd.f32 %v2794, %v2966
      %v2968 = vpop.f32.mrb[0].mxu0
      %v2969 = vpop.f32.mrb[0].mxu0
      %v2970 = vadd.f32 %v2794, %v2969
      %v2971 = vpop.f32.mrb[0].mxu0
      %2972 = vmatprep.mubr.bf16.mxu0 0
      %2973 = vmatmul.mubr.bf16.gmra.mrb[0].mxu0 %v2769
      %v2974 = vpop.f32.mrb[0].mxu0
      %v2975 = vadd.f32 %v2794, %v2974
      %v2976 = vpop.f32.mrb[0].mxu0
      %v2977 = vpop.f32.mrb[0].mxu0
      %v2978 = vadd.f32 %v2794, %v2977
      %v2979 = vpop.f32.mrb[0].mxu0
      %2980 = vmatprep.mubr.bf16.mxu0 0
      %2981 = vmatmul.mubr.bf16.gmra.mrb[0].mxu0 %v2770
      %v2982 = vpop.f32.mrb[0].mxu0
      %v2983 = vadd.f32 %v2794, %v2982
      %v2984 = vpop.f32.mrb[0].mxu0
      %v2985 = vpop.f32.mrb[0].mxu0
      %v2986 = vadd.f32 %v2794, %v2985
      %v2987 = vpop.f32.mrb[0].mxu0
      %2988 = vmatprep.mubr.bf16.mxu0 0
      %2989 = vmatmul.mubr.bf16.gmra.mrb[0].mxu0 %v2771
      %v2990 = vpop.f32.mrb[0].mxu0
      %v2991 = vadd.f32 %v2794, %v2990
      %v2992 = vpop.f32.mrb[0].mxu0
      %v2993 = vpop.f32.mrb[0].mxu0
      %v2994 = vadd.f32 %v2794, %v2993
      %v2995 = vpop.f32.mrb[0].mxu0
      %2996 = vmatprep.mubr.bf16.mxu0 0
      %2997 = vmatmul.mubr.bf16.gmra.mrb[0].mxu0 %v2772
      %v2998 = vpop.f32.mrb[0].mxu0
      %v2999 = vadd.f32 %v2794, %v2998
      %v3000 = vpop.f32.mrb[0].mxu0
      %v3001 = vpop.f32.mrb[0].mxu0
      %v3002 = vadd.f32 %v2794, %v3001
      %v3003 = vpop.f32.mrb[0].mxu0
      %3004 = vdwg.mxu0
      %v3005 = vmax.f32 %v2879, 0.0
      %v3006 = vmax.f32 %v2882, 0.0
      %v3007 = vmax.f32 %v2887, 0.0
      %v3008 = vmax.f32 %v2890, 0.0
      %v3009 = vmax.f32 %v2895, 0.0
      %v3010 = vmax.f32 %v2898, 0.0
      %v3011 = vmax.f32 %v2903, 0.0
      %v3012 = vmax.f32 %v2906, 0.0
      %v3013 = vmax.f32 %v2911, 0.0
      %v3014 = vmax.f32 %v2914, 0.0
      %v3015 = vmax.f32 %v2919, 0.0
      %v3016 = vmax.f32 %v2922, 0.0
      %v3017 = vmax.f32 %v2927, 0.0
      %v3018 = vmax.f32 %v2930, 0.0
      %v3019 = vmax.f32 %v2935, 0.0
      %v3020 = vmax.f32 %v2938, 0.0
      %v3021 = vmax.f32 %v2943, 0.0
      %v3022 = vmax.f32 %v2946, 0.0
      %v3023 = vmax.f32 %v2951, 0.0
      %v3024 = vmax.f32 %v2954, 0.0
      %v3025 = vmax.f32 %v2959, 0.0
      %v3026 = vmax.f32 %v2962, 0.0
      %v3027 = vmax.f32 %v2967, 0.0
      %v3028 = vmax.f32 %v2970, 0.0
      %v3029 = vmax.f32 %v2975, 0.0
      %v3030 = vmax.f32 %v2978, 0.0
      %v3031 = vmax.f32 %v2983, 0.0
      %v3032 = vmax.f32 %v2986, 0.0
      %v3033 = vmax.f32 %v2991, 0.0
      %v3034 = vmax.f32 %v2994, 0.0
      %v3035 = vmax.f32 %v2999, 0.0
      %v3036 = vmax.f32 %v3002, 0.0
      %v3037 = vand.u32 2147483647, %v3005
      %vm3038 = vcmp.le.f32.partialorder %v3037, 0.7853982
      %vm3039 = vcmp.lt.s32.totalorder %v3005, 0
      %v3040 = vand.u32 %v3005, 2139095040
      %v3041 = vshrl.u32 %v3040, 23
      %v3042 = vsub.s32 %v3041, 127
      %v3043 = vand.u32 2147483647, %v3005
      %v3044 = vand.u32 %v3043, 8388607
      %v3045 = vor.u32 %v3044, 8388608
      %v3046 = vsub.s32 0, %v3045
      %v3047 = vadd.s32 %v3042, 1
      %vm3048 = vcmp.gt.s32.totalorder %v3047, 0
      %v3049 = vsel %vm3048, %v3047, 0
      %v3050 = vshrl.u32 %v3049, 5
      %v3051 = vand.u32 %v3049, 31
      %v3052 = vsub.s32 32, %v3051
      %v3053 = vshrl.u32 683565275, %v3052
      %v3054 = vshll.u32 683565275, %v3051
      %v3055 = vshrl.u32 2475754826, %v3052
      %v3056 = vor.u32 %v3054, %v3055
      %v3057 = vshll.u32 2475754826, %v3051
      %v3058 = vshrl.u32 2131351028, %v3052
      %v3059 = vor.u32 %v3057, %v3058
      %v3060 = vshll.u32 2131351028, %v3051
      %v3061 = vshrl.u32 2102212464, %v3052
      %v3062 = vor.u32 %v3060, %v3061
      %v3063 = vshll.u32 2102212464, %v3051
      %v3064 = vshrl.u32 920167782, %v3052
      %v3065 = vor.u32 %v3063, %v3064
      %v3066 = vshll.u32 920167782, %v3051
      %v3067 = vshrl.u32 1326507024, %v3052
      %v3068 = vor.u32 %v3066, %v3067
      %vm3069 = vcmp.lt.s32.totalorder %v3050, 1
      %vm3070 = vcmp.lt.s32.totalorder %v3050, 2
      %vm3071 = vcmp.lt.s32.totalorder %v3050, 3
      %vm3072 = vcmp.lt.s32.totalorder %v3050, 4
      %v3073 = vsel %vm3069, %v3053, %v3056
      %v3074 = vsel %vm3072, %v3062, 2102212464
      %v3075 = vsel %vm3071, %v3059, %v3074
      %v3076 = vsel %vm3070, %v3073, %v3075
      %v3077 = vsel %vm3069, %v3056, %v3059
      %v3078 = vsel %vm3072, %v3065, 920167782
      %v3079 = vsel %vm3071, %v3062, %v3078
      %v3080 = vsel %vm3070, %v3077, %v3079
      %v3081 = vsel %vm3069, %v3059, %v3062
      %v3082 = vsel %vm3072, %v3068, 1326507024
      %v3083 = vsel %vm3071, %v3065, %v3082
      %v3084 = vsel %vm3070, %v3081, %v3083
      %v3085 = vshll.u32 %v3045, 8
      %v3086 = vmul.u32.u64.compose %v3085, %v3084
      %v3087 = vextract.low.u32 %v3086
      %v3088 = vextract.high.u32 %v3086
      %v3089 = vmul.u32.u64.compose %v3085, %v3080
      %v3090 = vextract.low.u32 %v3089
      %v3091 = vextract.high.u32 %v3089
      %v3092 = vmul.u32 %v3085, %v3076
      %v3093 = vadd.s32 %v3088, %v3090
      %vm3094 = vc.u32 %v3088, %v3090
      %v3095 = vadd.s32 %v3091, 1
      %v3096 = vsel %vm3094, %v3095, %v3091
      %v3097 = vadd.s32 %v3092, %v3096
      %v3098 = vadd.s32 %v3097, 536870912
      %v3099 = vshrl.u32 %v3098, 30
      %v3100 = vshll.u32 %v3099, 30
      %v3101 = vsub.s32 %v3097, %v3100
      %vm3102 = vcmp.lt.s32.totalorder %v3101, 0
      %v3103 = vsub.s32 0, %v3101
      %v3104 = vsel %vm3102, %v3103, %v3101
      %v3105 = vclz %v3104
      %v3106 = vsub.s32 %v3105, 2
      %vm3107 = vcmp.gt.s32.totalorder 0, %v3106
      %v3108 = vsel %vm3107, 0, %v3106
      %v3109 = vsub.s32 32, %v3108
      %v3110 = vshll.u32 %v3101, %v3108
      %v3111 = vshrl.u32 %v3093, %v3109
      %v3112 = vor.u32 %v3110, %v3111
      %v3113 = vsub.s32 4294967266, %v3108
      %v3114 = vadd.s32 %v3113, 127
      %v3115 = vshll.u32 %v3114, 23
      %v3116 = vor.u32 4788187, %v3115
      %v3117 = vand.u32 2147483647, %v3116
      %v3119 = vcvt.s32.f32 %v3112
      %v3120 = vmul.f32 %v3119, %v3117
      %v3121 = vxor.u32 %v3120, 2147483648
      %v3122 = vsel %vm3039, %v3121, %v3120
      %v3123 = vsub.s32 4, %v3099
      %v3124 = vsel %vm3039, %v3123, %v3099
      %v3125 = vsel %vm3038, %v3005, %v3122
      %v3126 = vsel %vm3038, 0, %v3124
      %v3127 = vcosq.f32.pop %v3125
      %v3128 = vsinq.f32.pop %v3125
      %vm3129 = vweird.f32 %v3005
      %v3130 = vand.u32 %v3126, 3
      %vm3131 = vcmp.lt.s32.totalorder %v3130, 2
      %vm3132 = vcmp.eq.s32.totalorder %v3130, 0
      %v3133 = vxor.u32 %v3128, 2147483648
      %v3134 = vsel %vm3132, %v3127, %v3133
      %vm3135 = vcmp.eq.s32.totalorder %v3130, 2
      %v3136 = vxor.u32 %v3127, 2147483648
      %v3137 = vsel %vm3135, %v3136, %v3128
      %v3138 = vsel %vm3131, %v3134, %v3137
      %v3139 = vsel %vm3129, nan, %v3138
      %v3140 = vand.u32 2147483647, %v3006
      %vm3141 = vcmp.le.f32.partialorder %v3140, 0.7853982
      %vm3142 = vcmp.lt.s32.totalorder %v3006, 0
      %v3143 = vand.u32 %v3006, 2139095040
      %v3144 = vshrl.u32 %v3143, 23
      %v3145 = vsub.s32 %v3144, 127
      %v3146 = vand.u32 2147483647, %v3006
      %v3147 = vand.u32 %v3146, 8388607
      %v3148 = vor.u32 %v3147, 8388608
      %v3149 = vsub.s32 0, %v3148
      %v3150 = vadd.s32 %v3145, 1
      %vm3151 = vcmp.gt.s32.totalorder %v3150, 0
      %v3152 = vsel %vm3151, %v3150, 0
      %v3153 = vshrl.u32 %v3152, 5
      %v3154 = vand.u32 %v3152, 31
      %v3155 = vsub.s32 32, %v3154
      %v3156 = vshrl.u32 683565275, %v3155
      %v3157 = vshll.u32 683565275, %v3154
      %v3158 = vshrl.u32 2475754826, %v3155
      %v3159 = vor.u32 %v3157, %v3158
      %v3160 = vshll.u32 2475754826, %v3154
      %v3161 = vshrl.u32 2131351028, %v3155
      %v3162 = vor.u32 %v3160, %v3161
      %v3163 = vshll.u32 2131351028, %v3154
      %v3164 = vshrl.u32 2102212464, %v3155
      %v3165 = vor.u32 %v3163, %v3164
      %v3166 = vshll.u32 2102212464, %v3154
      %v3167 = vshrl.u32 920167782, %v3155
      %v3168 = vor.u32 %v3166, %v3167
      %v3169 = vshll.u32 920167782, %v3154
      %v3170 = vshrl.u32 1326507024, %v3155
      %v3171 = vor.u32 %v3169, %v3170
      %vm3172 = vcmp.lt.s32.totalorder %v3153, 1
      %vm3173 = vcmp.lt.s32.totalorder %v3153, 2
      %vm3174 = vcmp.lt.s32.totalorder %v3153, 3
      %vm3175 = vcmp.lt.s32.totalorder %v3153, 4
      %v3176 = vsel %vm3172, %v3156, %v3159
      %v3177 = vsel %vm3175, %v3165, 2102212464
      %v3178 = vsel %vm3174, %v3162, %v3177
      %v3179 = vsel %vm3173, %v3176, %v3178
      %v3180 = vsel %vm3172, %v3159, %v3162
      %v3181 = vsel %vm3175, %v3168, 920167782
      %v3182 = vsel %vm3174, %v3165, %v3181
      %v3183 = vsel %vm3173, %v3180, %v3182
      %v3184 = vsel %vm3172, %v3162, %v3165
      %v3185 = vsel %vm3175, %v3171, 1326507024
      %v3186 = vsel %vm3174, %v3168, %v3185
      %v3187 = vsel %vm3173, %v3184, %v3186
      %v3188 = vshll.u32 %v3148, 8
      %v3189 = vmul.u32.u64.compose %v3188, %v3187
      %v3190 = vextract.low.u32 %v3189
      %v3191 = vextract.high.u32 %v3189
      %v3192 = vmul.u32.u64.compose %v3188, %v3183
      %v3193 = vextract.low.u32 %v3192
      %v3194 = vextract.high.u32 %v3192
      %v3195 = vmul.u32 %v3188, %v3179
      %v3196 = vadd.s32 %v3191, %v3193
      %vm3197 = vc.u32 %v3191, %v3193
      %v3198 = vadd.s32 %v3194, 1
      %v3199 = vsel %vm3197, %v3198, %v3194
      %v3200 = vadd.s32 %v3195, %v3199
      %v3201 = vadd.s32 %v3200, 536870912
      %v3202 = vshrl.u32 %v3201, 30
      %v3203 = vshll.u32 %v3202, 30
      %v3204 = vsub.s32 %v3200, %v3203
      %vm3205 = vcmp.lt.s32.totalorder %v3204, 0
      %v3206 = vsub.s32 0, %v3204
      %v3207 = vsel %vm3205, %v3206, %v3204
      %v3208 = vclz %v3207
      %v3209 = vsub.s32 %v3208, 2
      %vm3210 = vcmp.gt.s32.totalorder 0, %v3209
      %v3211 = vsel %vm3210, 0, %v3209
      %v3212 = vsub.s32 32, %v3211
      %v3213 = vshll.u32 %v3204, %v3211
      %v3214 = vshrl.u32 %v3196, %v3212
      %v3215 = vor.u32 %v3213, %v3214
      %v3216 = vsub.s32 4294967266, %v3211
      %v3217 = vadd.s32 %v3216, 127
      %v3218 = vshll.u32 %v3217, 23
      %v3219 = vor.u32 4788187, %v3218
      %v3220 = vand.u32 2147483647, %v3219
      %v3222 = vcvt.s32.f32 %v3215
      %v3223 = vmul.f32 %v3222, %v3220
      %v3224 = vxor.u32 %v3223, 2147483648
      %v3225 = vsel %vm3142, %v3224, %v3223
      %v3226 = vsub.s32 4, %v3202
      %v3227 = vsel %vm3142, %v3226, %v3202
      %v3228 = vsel %vm3141, %v3006, %v3225
      %v3229 = vsel %vm3141, 0, %v3227
      %v3230 = vcosq.f32.pop %v3228
      %v3231 = vsinq.f32.pop %v3228
      %vm3232 = vweird.f32 %v3006
      %v3233 = vand.u32 %v3229, 3
      %vm3234 = vcmp.lt.s32.totalorder %v3233, 2
      %vm3235 = vcmp.eq.s32.totalorder %v3233, 0
      %v3236 = vxor.u32 %v3231, 2147483648
      %v3237 = vsel %vm3235, %v3230, %v3236
      %vm3238 = vcmp.eq.s32.totalorder %v3233, 2
      %v3239 = vxor.u32 %v3230, 2147483648
      %v3240 = vsel %vm3238, %v3239, %v3231
      %v3241 = vsel %vm3234, %v3237, %v3240
      %v3242 = vsel %vm3232, nan, %v3241
      %v3243 = vand.u32 2147483647, %v3007
      %vm3244 = vcmp.le.f32.partialorder %v3243, 0.7853982
      %vm3245 = vcmp.lt.s32.totalorder %v3007, 0
      %v3246 = vand.u32 %v3007, 2139095040
      %v3247 = vshrl.u32 %v3246, 23
      %v3248 = vsub.s32 %v3247, 127
      %v3249 = vand.u32 2147483647, %v3007
      %v3250 = vand.u32 %v3249, 8388607
      %v3251 = vor.u32 %v3250, 8388608
      %v3252 = vsub.s32 0, %v3251
      %v3253 = vadd.s32 %v3248, 1
      %vm3254 = vcmp.gt.s32.totalorder %v3253, 0
      %v3255 = vsel %vm3254, %v3253, 0
      %v3256 = vshrl.u32 %v3255, 5
      %v3257 = vand.u32 %v3255, 31
      %v3258 = vsub.s32 32, %v3257
      %v3259 = vshrl.u32 683565275, %v3258
      %v3260 = vshll.u32 683565275, %v3257
      %v3261 = vshrl.u32 2475754826, %v3258
      %v3262 = vor.u32 %v3260, %v3261
      %v3263 = vshll.u32 2475754826, %v3257
      %v3264 = vshrl.u32 2131351028, %v3258
      %v3265 = vor.u32 %v3263, %v3264
      %v3266 = vshll.u32 2131351028, %v3257
      %v3267 = vshrl.u32 2102212464, %v3258
      %v3268 = vor.u32 %v3266, %v3267
      %v3269 = vshll.u32 2102212464, %v3257
      %v3270 = vshrl.u32 920167782, %v3258
      %v3271 = vor.u32 %v3269, %v3270
      %v3272 = vshll.u32 920167782, %v3257
      %v3273 = vshrl.u32 1326507024, %v3258
      %v3274 = vor.u32 %v3272, %v3273
      %vm3275 = vcmp.lt.s32.totalorder %v3256, 1
      %vm3276 = vcmp.lt.s32.totalorder %v3256, 2
      %vm3277 = vcmp.lt.s32.totalorder %v3256, 3
      %vm3278 = vcmp.lt.s32.totalorder %v3256, 4
      %v3279 = vsel %vm3275, %v3259, %v3262
      %v3280 = vsel %vm3278, %v3268, 2102212464
      %v3281 = vsel %vm3277, %v3265, %v3280
      %v3282 = vsel %vm3276, %v3279, %v3281
      %v3283 = vsel %vm3275, %v3262, %v3265
      %v3284 = vsel %vm3278, %v3271, 920167782
      %v3285 = vsel %vm3277, %v3268, %v3284
      %v3286 = vsel %vm3276, %v3283, %v3285
      %v3287 = vsel %vm3275, %v3265, %v3268
      %v3288 = vsel %vm3278, %v3274, 1326507024
      %v3289 = vsel %vm3277, %v3271, %v3288
      %v3290 = vsel %vm3276, %v3287, %v3289
      %v3291 = vshll.u32 %v3251, 8
      %v3292 = vmul.u32.u64.compose %v3291, %v3290
      %v3293 = vextract.low.u32 %v3292
      %v3294 = vextract.high.u32 %v3292
      %v3295 = vmul.u32.u64.compose %v3291, %v3286
      %v3296 = vextract.low.u32 %v3295
      %v3297 = vextract.high.u32 %v3295
      %v3298 = vmul.u32 %v3291, %v3282
      %v3299 = vadd.s32 %v3294, %v3296
      %vm3300 = vc.u32 %v3294, %v3296
      %v3301 = vadd.s32 %v3297, 1
      %v3302 = vsel %vm3300, %v3301, %v3297
      %v3303 = vadd.s32 %v3298, %v3302
      %v3304 = vadd.s32 %v3303, 536870912
      %v3305 = vshrl.u32 %v3304, 30
      %v3306 = vshll.u32 %v3305, 30
      %v3307 = vsub.s32 %v3303, %v3306
      %vm3308 = vcmp.lt.s32.totalorder %v3307, 0
      %v3309 = vsub.s32 0, %v3307
      %v3310 = vsel %vm3308, %v3309, %v3307
      %v3311 = vclz %v3310
      %v3312 = vsub.s32 %v3311, 2
      %vm3313 = vcmp.gt.s32.totalorder 0, %v3312
      %v3314 = vsel %vm3313, 0, %v3312
      %v3315 = vsub.s32 32, %v3314
      %v3316 = vshll.u32 %v3307, %v3314
      %v3317 = vshrl.u32 %v3299, %v3315
      %v3318 = vor.u32 %v3316, %v3317
      %v3319 = vsub.s32 4294967266, %v3314
      %v3320 = vadd.s32 %v3319, 127
      %v3321 = vshll.u32 %v3320, 23
      %v3322 = vor.u32 4788187, %v3321
      %v3323 = vand.u32 2147483647, %v3322
      %v3325 = vcvt.s32.f32 %v3318
      %v3326 = vmul.f32 %v3325, %v3323
      %v3327 = vxor.u32 %v3326, 2147483648
      %v3328 = vsel %vm3245, %v3327, %v3326
      %v3329 = vsub.s32 4, %v3305
      %v3330 = vsel %vm3245, %v3329, %v3305
      %v3331 = vsel %vm3244, %v3007, %v3328
      %v3332 = vsel %vm3244, 0, %v3330
      %v3333 = vcosq.f32.pop %v3331
      %v3334 = vsinq.f32.pop %v3331
      %vm3335 = vweird.f32 %v3007
      %v3336 = vand.u32 %v3332, 3
      %vm3337 = vcmp.lt.s32.totalorder %v3336, 2
      %vm3338 = vcmp.eq.s32.totalorder %v3336, 0
      %v3339 = vxor.u32 %v3334, 2147483648
      %v3340 = vsel %vm3338, %v3333, %v3339
      %vm3341 = vcmp.eq.s32.totalorder %v3336, 2
      %v3342 = vxor.u32 %v3333, 2147483648
      %v3343 = vsel %vm3341, %v3342, %v3334
      %v3344 = vsel %vm3337, %v3340, %v3343
      %v3345 = vsel %vm3335, nan, %v3344
      %v3346 = vand.u32 2147483647, %v3008
      %vm3347 = vcmp.le.f32.partialorder %v3346, 0.7853982
      %vm3348 = vcmp.lt.s32.totalorder %v3008, 0
      %v3349 = vand.u32 %v3008, 2139095040
      %v3350 = vshrl.u32 %v3349, 23
      %v3351 = vsub.s32 %v3350, 127
      %v3352 = vand.u32 2147483647, %v3008
      %v3353 = vand.u32 %v3352, 8388607
      %v3354 = vor.u32 %v3353, 8388608
      %v3355 = vsub.s32 0, %v3354
      %v3356 = vadd.s32 %v3351, 1
      %vm3357 = vcmp.gt.s32.totalorder %v3356, 0
      %v3358 = vsel %vm3357, %v3356, 0
      %v3359 = vshrl.u32 %v3358, 5
      %v3360 = vand.u32 %v3358, 31
      %v3361 = vsub.s32 32, %v3360
      %v3362 = vshrl.u32 683565275, %v3361
      %v3363 = vshll.u32 683565275, %v3360
      %v3364 = vshrl.u32 2475754826, %v3361
      %v3365 = vor.u32 %v3363, %v3364
      %v3366 = vshll.u32 2475754826, %v3360
      %v3367 = vshrl.u32 2131351028, %v3361
      %v3368 = vor.u32 %v3366, %v3367
      %v3369 = vshll.u32 2131351028, %v3360
      %v3370 = vshrl.u32 2102212464, %v3361
      %v3371 = vor.u32 %v3369, %v3370
      %v3372 = vshll.u32 2102212464, %v3360
      %v3373 = vshrl.u32 920167782, %v3361
      %v3374 = vor.u32 %v3372, %v3373
      %v3375 = vshll.u32 920167782, %v3360
      %v3376 = vshrl.u32 1326507024, %v3361
      %v3377 = vor.u32 %v3375, %v3376
      %vm3378 = vcmp.lt.s32.totalorder %v3359, 1
      %vm3379 = vcmp.lt.s32.totalorder %v3359, 2
      %vm3380 = vcmp.lt.s32.totalorder %v3359, 3
      %vm3381 = vcmp.lt.s32.totalorder %v3359, 4
      %v3382 = vsel %vm3378, %v3362, %v3365
      %v3383 = vsel %vm3381, %v3371, 2102212464
      %v3384 = vsel %vm3380, %v3368, %v3383
      %v3385 = vsel %vm3379, %v3382, %v3384
      %v3386 = vsel %vm3378, %v3365, %v3368
      %v3387 = vsel %vm3381, %v3374, 920167782
      %v3388 = vsel %vm3380, %v3371, %v3387
      %v3389 = vsel %vm3379, %v3386, %v3388
      %v3390 = vsel %vm3378, %v3368, %v3371
      %v3391 = vsel %vm3381, %v3377, 1326507024
      %v3392 = vsel %vm3380, %v3374, %v3391
      %v3393 = vsel %vm3379, %v3390, %v3392
      %v3394 = vshll.u32 %v3354, 8
      %v3395 = vmul.u32.u64.compose %v3394, %v3393
      %v3396 = vextract.low.u32 %v3395
      %v3397 = vextract.high.u32 %v3395
      %v3398 = vmul.u32.u64.compose %v3394, %v3389
      %v3399 = vextract.low.u32 %v3398
      %v3400 = vextract.high.u32 %v3398
      %v3401 = vmul.u32 %v3394, %v3385
      %v3402 = vadd.s32 %v3397, %v3399
      %vm3403 = vc.u32 %v3397, %v3399
      %v3404 = vadd.s32 %v3400, 1
      %v3405 = vsel %vm3403, %v3404, %v3400
      %v3406 = vadd.s32 %v3401, %v3405
      %v3407 = vadd.s32 %v3406, 536870912
      %v3408 = vshrl.u32 %v3407, 30
      %v3409 = vshll.u32 %v3408, 30
      %v3410 = vsub.s32 %v3406, %v3409
      %vm3411 = vcmp.lt.s32.totalorder %v3410, 0
      %v3412 = vsub.s32 0, %v3410
      %v3413 = vsel %vm3411, %v3412, %v3410
      %v3414 = vclz %v3413
      %v3415 = vsub.s32 %v3414, 2
      %vm3416 = vcmp.gt.s32.totalorder 0, %v3415
      %v3417 = vsel %vm3416, 0, %v3415
      %v3418 = vsub.s32 32, %v3417
      %v3419 = vshll.u32 %v3410, %v3417
      %v3420 = vshrl.u32 %v3402, %v3418
      %v3421 = vor.u32 %v3419, %v3420
      %v3422 = vsub.s32 4294967266, %v3417
      %v3423 = vadd.s32 %v3422, 127
      %v3424 = vshll.u32 %v3423, 23
      %v3425 = vor.u32 4788187, %v3424
      %v3426 = vand.u32 2147483647, %v3425
      %v3428 = vcvt.s32.f32 %v3421
      %v3429 = vmul.f32 %v3428, %v3426
      %v3430 = vxor.u32 %v3429, 2147483648
      %v3431 = vsel %vm3348, %v3430, %v3429
      %v3432 = vsub.s32 4, %v3408
      %v3433 = vsel %vm3348, %v3432, %v3408
      %v3434 = vsel %vm3347, %v3008, %v3431
      %v3435 = vsel %vm3347, 0, %v3433
      %v3436 = vcosq.f32.pop %v3434
      %v3437 = vsinq.f32.pop %v3434
      %vm3438 = vweird.f32 %v3008
      %v3439 = vand.u32 %v3435, 3
      %vm3440 = vcmp.lt.s32.totalorder %v3439, 2
      %vm3441 = vcmp.eq.s32.totalorder %v3439, 0
      %v3442 = vxor.u32 %v3437, 2147483648
      %v3443 = vsel %vm3441, %v3436, %v3442
      %vm3444 = vcmp.eq.s32.totalorder %v3439, 2
      %v3445 = vxor.u32 %v3436, 2147483648
      %v3446 = vsel %vm3444, %v3445, %v3437
      %v3447 = vsel %vm3440, %v3443, %v3446
      %v3448 = vsel %vm3438, nan, %v3447
      %v3449 = vand.u32 2147483647, %v3009
      %vm3450 = vcmp.le.f32.partialorder %v3449, 0.7853982
      %vm3451 = vcmp.lt.s32.totalorder %v3009, 0
      %v3452 = vand.u32 %v3009, 2139095040
      %v3453 = vshrl.u32 %v3452, 23
      %v3454 = vsub.s32 %v3453, 127
      %v3455 = vand.u32 2147483647, %v3009
      %v3456 = vand.u32 %v3455, 8388607
      %v3457 = vor.u32 %v3456, 8388608
      %v3458 = vsub.s32 0, %v3457
      %v3459 = vadd.s32 %v3454, 1
      %vm3460 = vcmp.gt.s32.totalorder %v3459, 0
      %v3461 = vsel %vm3460, %v3459, 0
      %v3462 = vshrl.u32 %v3461, 5
      %v3463 = vand.u32 %v3461, 31
      %v3464 = vsub.s32 32, %v3463
      %v3465 = vshrl.u32 683565275, %v3464
      %v3466 = vshll.u32 683565275, %v3463
      %v3467 = vshrl.u32 2475754826, %v3464
      %v3468 = vor.u32 %v3466, %v3467
      %v3469 = vshll.u32 2475754826, %v3463
      %v3470 = vshrl.u32 2131351028, %v3464
      %v3471 = vor.u32 %v3469, %v3470
      %v3472 = vshll.u32 2131351028, %v3463
      %v3473 = vshrl.u32 2102212464, %v3464
      %v3474 = vor.u32 %v3472, %v3473
      %v3475 = vshll.u32 2102212464, %v3463
      %v3476 = vshrl.u32 920167782, %v3464
      %v3477 = vor.u32 %v3475, %v3476
      %v3478 = vshll.u32 920167782, %v3463
      %v3479 = vshrl.u32 1326507024, %v3464
      %v3480 = vor.u32 %v3478, %v3479
      %vm3481 = vcmp.lt.s32.totalorder %v3462, 1
      %vm3482 = vcmp.lt.s32.totalorder %v3462, 2
      %vm3483 = vcmp.lt.s32.totalorder %v3462, 3
      %vm3484 = vcmp.lt.s32.totalorder %v3462, 4
      %v3485 = vsel %vm3481, %v3465, %v3468
      %v3486 = vsel %vm3484, %v3474, 2102212464
      %v3487 = vsel %vm3483, %v3471, %v3486
      %v3488 = vsel %vm3482, %v3485, %v3487
      %v3489 = vsel %vm3481, %v3468, %v3471
      %v3490 = vsel %vm3484, %v3477, 920167782
      %v3491 = vsel %vm3483, %v3474, %v3490
      %v3492 = vsel %vm3482, %v3489, %v3491
      %v3493 = vsel %vm3481, %v3471, %v3474
      %v3494 = vsel %vm3484, %v3480, 1326507024
      %v3495 = vsel %vm3483, %v3477, %v3494
      %v3496 = vsel %vm3482, %v3493, %v3495
      %v3497 = vshll.u32 %v3457, 8
      %v3498 = vmul.u32.u64.compose %v3497, %v3496
      %v3499 = vextract.low.u32 %v3498
      %v3500 = vextract.high.u32 %v3498
      %v3501 = vmul.u32.u64.compose %v3497, %v3492
      %v3502 = vextract.low.u32 %v3501
      %v3503 = vextract.high.u32 %v3501
      %v3504 = vmul.u32 %v3497, %v3488
      %v3505 = vadd.s32 %v3500, %v3502
      %vm3506 = vc.u32 %v3500, %v3502
      %v3507 = vadd.s32 %v3503, 1
      %v3508 = vsel %vm3506, %v3507, %v3503
      %v3509 = vadd.s32 %v3504, %v3508
      %v3510 = vadd.s32 %v3509, 536870912
      %v3511 = vshrl.u32 %v3510, 30
      %v3512 = vshll.u32 %v3511, 30
      %v3513 = vsub.s32 %v3509, %v3512
      %vm3514 = vcmp.lt.s32.totalorder %v3513, 0
      %v3515 = vsub.s32 0, %v3513
      %v3516 = vsel %vm3514, %v3515, %v3513
      %v3517 = vclz %v3516
      %v3518 = vsub.s32 %v3517, 2
      %vm3519 = vcmp.gt.s32.totalorder 0, %v3518
      %v3520 = vsel %vm3519, 0, %v3518
      %v3521 = vsub.s32 32, %v3520
      %v3522 = vshll.u32 %v3513, %v3520
      %v3523 = vshrl.u32 %v3505, %v3521
      %v3524 = vor.u32 %v3522, %v3523
      %v3525 = vsub.s32 4294967266, %v3520
      %v3526 = vadd.s32 %v3525, 127
      %v3527 = vshll.u32 %v3526, 23
      %v3528 = vor.u32 4788187, %v3527
      %v3529 = vand.u32 2147483647, %v3528
      %v3531 = vcvt.s32.f32 %v3524
      %v3532 = vmul.f32 %v3531, %v3529
      %v3533 = vxor.u32 %v3532, 2147483648
      %v3534 = vsel %vm3451, %v3533, %v3532
      %v3535 = vsub.s32 4, %v3511
      %v3536 = vsel %vm3451, %v3535, %v3511
      %v3537 = vsel %vm3450, %v3009, %v3534
      %v3538 = vsel %vm3450, 0, %v3536
      %v3539 = vcosq.f32.pop %v3537
      %v3540 = vsinq.f32.pop %v3537
      %vm3541 = vweird.f32 %v3009
      %v3542 = vand.u32 %v3538, 3
      %vm3543 = vcmp.lt.s32.totalorder %v3542, 2
      %vm3544 = vcmp.eq.s32.totalorder %v3542, 0
      %v3545 = vxor.u32 %v3540, 2147483648
      %v3546 = vsel %vm3544, %v3539, %v3545
      %vm3547 = vcmp.eq.s32.totalorder %v3542, 2
      %v3548 = vxor.u32 %v3539, 2147483648
      %v3549 = vsel %vm3547, %v3548, %v3540
      %v3550 = vsel %vm3543, %v3546, %v3549
      %v3551 = vsel %vm3541, nan, %v3550
      %v3552 = vand.u32 2147483647, %v3010
      %vm3553 = vcmp.le.f32.partialorder %v3552, 0.7853982
      %vm3554 = vcmp.lt.s32.totalorder %v3010, 0
      %v3555 = vand.u32 %v3010, 2139095040
      %v3556 = vshrl.u32 %v3555, 23
      %v3557 = vsub.s32 %v3556, 127
      %v3558 = vand.u32 2147483647, %v3010
      %v3559 = vand.u32 %v3558, 8388607
      %v3560 = vor.u32 %v3559, 8388608
      %v3561 = vsub.s32 0, %v3560
      %v3562 = vadd.s32 %v3557, 1
      %vm3563 = vcmp.gt.s32.totalorder %v3562, 0
      %v3564 = vsel %vm3563, %v3562, 0
      %v3565 = vshrl.u32 %v3564, 5
      %v3566 = vand.u32 %v3564, 31
      %v3567 = vsub.s32 32, %v3566
      %v3568 = vshrl.u32 683565275, %v3567
      %v3569 = vshll.u32 683565275, %v3566
      %v3570 = vshrl.u32 2475754826, %v3567
      %v3571 = vor.u32 %v3569, %v3570
      %v3572 = vshll.u32 2475754826, %v3566
      %v3573 = vshrl.u32 2131351028, %v3567
      %v3574 = vor.u32 %v3572, %v3573
      %v3575 = vshll.u32 2131351028, %v3566
      %v3576 = vshrl.u32 2102212464, %v3567
      %v3577 = vor.u32 %v3575, %v3576
      %v3578 = vshll.u32 2102212464, %v3566
      %v3579 = vshrl.u32 920167782, %v3567
      %v3580 = vor.u32 %v3578, %v3579
      %v3581 = vshll.u32 920167782, %v3566
      %v3582 = vshrl.u32 1326507024, %v3567
      %v3583 = vor.u32 %v3581, %v3582
      %vm3584 = vcmp.lt.s32.totalorder %v3565, 1
      %vm3585 = vcmp.lt.s32.totalorder %v3565, 2
      %vm3586 = vcmp.lt.s32.totalorder %v3565, 3
      %vm3587 = vcmp.lt.s32.totalorder %v3565, 4
      %v3588 = vsel %vm3584, %v3568, %v3571
      %v3589 = vsel %vm3587, %v3577, 2102212464
      %v3590 = vsel %vm3586, %v3574, %v3589
      %v3591 = vsel %vm3585, %v3588, %v3590
      %v3592 = vsel %vm3584, %v3571, %v3574
      %v3593 = vsel %vm3587, %v3580, 920167782
      %v3594 = vsel %vm3586, %v3577, %v3593
      %v3595 = vsel %vm3585, %v3592, %v3594
      %v3596 = vsel %vm3584, %v3574, %v3577
      %v3597 = vsel %vm3587, %v3583, 1326507024
      %v3598 = vsel %vm3586, %v3580, %v3597
      %v3599 = vsel %vm3585, %v3596, %v3598
      %v3600 = vshll.u32 %v3560, 8
      %v3601 = vmul.u32.u64.compose %v3600, %v3599
      %v3602 = vextract.low.u32 %v3601
      %v3603 = vextract.high.u32 %v3601
      %v3604 = vmul.u32.u64.compose %v3600, %v3595
      %v3605 = vextract.low.u32 %v3604
      %v3606 = vextract.high.u32 %v3604
      %v3607 = vmul.u32 %v3600, %v3591
      %v3608 = vadd.s32 %v3603, %v3605
      %vm3609 = vc.u32 %v3603, %v3605
      %v3610 = vadd.s32 %v3606, 1
      %v3611 = vsel %vm3609, %v3610, %v3606
      %v3612 = vadd.s32 %v3607, %v3611
      %v3613 = vadd.s32 %v3612, 536870912
      %v3614 = vshrl.u32 %v3613, 30
      %v3615 = vshll.u32 %v3614, 30
      %v3616 = vsub.s32 %v3612, %v3615
      %vm3617 = vcmp.lt.s32.totalorder %v3616, 0
      %v3618 = vsub.s32 0, %v3616
      %v3619 = vsel %vm3617, %v3618, %v3616
      %v3620 = vclz %v3619
      %v3621 = vsub.s32 %v3620, 2
      %vm3622 = vcmp.gt.s32.totalorder 0, %v3621
      %v3623 = vsel %vm3622, 0, %v3621
      %v3624 = vsub.s32 32, %v3623
      %v3625 = vshll.u32 %v3616, %v3623
      %v3626 = vshrl.u32 %v3608, %v3624
      %v3627 = vor.u32 %v3625, %v3626
      %v3628 = vsub.s32 4294967266, %v3623
      %v3629 = vadd.s32 %v3628, 127
      %v3630 = vshll.u32 %v3629, 23
      %v3631 = vor.u32 4788187, %v3630
      %v3632 = vand.u32 2147483647, %v3631
      %v3634 = vcvt.s32.f32 %v3627
      %v3635 = vmul.f32 %v3634, %v3632
      %v3636 = vxor.u32 %v3635, 2147483648
      %v3637 = vsel %vm3554, %v3636, %v3635
      %v3638 = vsub.s32 4, %v3614
      %v3639 = vsel %vm3554, %v3638, %v3614
      %v3640 = vsel %vm3553, %v3010, %v3637
      %v3641 = vsel %vm3553, 0, %v3639
      %v3642 = vcosq.f32.pop %v3640
      %v3643 = vsinq.f32.pop %v3640
      %vm3644 = vweird.f32 %v3010
      %v3645 = vand.u32 %v3641, 3
      %vm3646 = vcmp.lt.s32.totalorder %v3645, 2
      %vm3647 = vcmp.eq.s32.totalorder %v3645, 0
      %v3648 = vxor.u32 %v3643, 2147483648
      %v3649 = vsel %vm3647, %v3642, %v3648
      %vm3650 = vcmp.eq.s32.totalorder %v3645, 2
      %v3651 = vxor.u32 %v3642, 2147483648
      %v3652 = vsel %vm3650, %v3651, %v3643
      %v3653 = vsel %vm3646, %v3649, %v3652
      %v3654 = vsel %vm3644, nan, %v3653
      %v3655 = vand.u32 2147483647, %v3011
      %vm3656 = vcmp.le.f32.partialorder %v3655, 0.7853982
      %vm3657 = vcmp.lt.s32.totalorder %v3011, 0
      %v3658 = vand.u32 %v3011, 2139095040
      %v3659 = vshrl.u32 %v3658, 23
      %v3660 = vsub.s32 %v3659, 127
      %v3661 = vand.u32 2147483647, %v3011
      %v3662 = vand.u32 %v3661, 8388607
      %v3663 = vor.u32 %v3662, 8388608
      %v3664 = vsub.s32 0, %v3663
      %v3665 = vadd.s32 %v3660, 1
      %vm3666 = vcmp.gt.s32.totalorder %v3665, 0
      %v3667 = vsel %vm3666, %v3665, 0
      %v3668 = vshrl.u32 %v3667, 5
      %v3669 = vand.u32 %v3667, 31
      %v3670 = vsub.s32 32, %v3669
      %v3671 = vshrl.u32 683565275, %v3670
      %v3672 = vshll.u32 683565275, %v3669
      %v3673 = vshrl.u32 2475754826, %v3670
      %v3674 = vor.u32 %v3672, %v3673
      %v3675 = vshll.u32 2475754826, %v3669
      %v3676 = vshrl.u32 2131351028, %v3670
      %v3677 = vor.u32 %v3675, %v3676
      %v3678 = vshll.u32 2131351028, %v3669
      %v3679 = vshrl.u32 2102212464, %v3670
      %v3680 = vor.u32 %v3678, %v3679
      %v3681 = vshll.u32 2102212464, %v3669
      %v3682 = vshrl.u32 920167782, %v3670
      %v3683 = vor.u32 %v3681, %v3682
      %v3684 = vshll.u32 920167782, %v3669
      %v3685 = vshrl.u32 1326507024, %v3670
      %v3686 = vor.u32 %v3684, %v3685
      %vm3687 = vcmp.lt.s32.totalorder %v3668, 1
      %vm3688 = vcmp.lt.s32.totalorder %v3668, 2
      %vm3689 = vcmp.lt.s32.totalorder %v3668, 3
      %vm3690 = vcmp.lt.s32.totalorder %v3668, 4
      %v3691 = vsel %vm3687, %v3671, %v3674
      %v3692 = vsel %vm3690, %v3680, 2102212464
      %v3693 = vsel %vm3689, %v3677, %v3692
      %v3694 = vsel %vm3688, %v3691, %v3693
      %v3695 = vsel %vm3687, %v3674, %v3677
      %v3696 = vsel %vm3690, %v3683, 920167782
      %v3697 = vsel %vm3689, %v3680, %v3696
      %v3698 = vsel %vm3688, %v3695, %v3697
      %v3699 = vsel %vm3687, %v3677, %v3680
      %v3700 = vsel %vm3690, %v3686, 1326507024
      %v3701 = vsel %vm3689, %v3683, %v3700
      %v3702 = vsel %vm3688, %v3699, %v3701
      %v3703 = vshll.u32 %v3663, 8
      %v3704 = vmul.u32.u64.compose %v3703, %v3702
      %v3705 = vextract.low.u32 %v3704
      %v3706 = vextract.high.u32 %v3704
      %v3707 = vmul.u32.u64.compose %v3703, %v3698
      %v3708 = vextract.low.u32 %v3707
      %v3709 = vextract.high.u32 %v3707
      %v3710 = vmul.u32 %v3703, %v3694
      %v3711 = vadd.s32 %v3706, %v3708
      %vm3712 = vc.u32 %v3706, %v3708
      %v3713 = vadd.s32 %v3709, 1
      %v3714 = vsel %vm3712, %v3713, %v3709
      %v3715 = vadd.s32 %v3710, %v3714
      %v3716 = vadd.s32 %v3715, 536870912
      %v3717 = vshrl.u32 %v3716, 30
      %v3718 = vshll.u32 %v3717, 30
      %v3719 = vsub.s32 %v3715, %v3718
      %vm3720 = vcmp.lt.s32.totalorder %v3719, 0
      %v3721 = vsub.s32 0, %v3719
      %v3722 = vsel %vm3720, %v3721, %v3719
      %v3723 = vclz %v3722
      %v3724 = vsub.s32 %v3723, 2
      %vm3725 = vcmp.gt.s32.totalorder 0, %v3724
      %v3726 = vsel %vm3725, 0, %v3724
      %v3727 = vsub.s32 32, %v3726
      %v3728 = vshll.u32 %v3719, %v3726
      %v3729 = vshrl.u32 %v3711, %v3727
      %v3730 = vor.u32 %v3728, %v3729
      %v3731 = vsub.s32 4294967266, %v3726
      %v3732 = vadd.s32 %v3731, 127
      %v3733 = vshll.u32 %v3732, 23
      %v3734 = vor.u32 4788187, %v3733
      %v3735 = vand.u32 2147483647, %v3734
      %v3737 = vcvt.s32.f32 %v3730
      %v3738 = vmul.f32 %v3737, %v3735
      %v3739 = vxor.u32 %v3738, 2147483648
      %v3740 = vsel %vm3657, %v3739, %v3738
      %v3741 = vsub.s32 4, %v3717
      %v3742 = vsel %vm3657, %v3741, %v3717
      %v3743 = vsel %vm3656, %v3011, %v3740
      %v3744 = vsel %vm3656, 0, %v3742
      %v3745 = vcosq.f32.pop %v3743
      %v3746 = vsinq.f32.pop %v3743
      %vm3747 = vweird.f32 %v3011
      %v3748 = vand.u32 %v3744, 3
      %vm3749 = vcmp.lt.s32.totalorder %v3748, 2
      %vm3750 = vcmp.eq.s32.totalorder %v3748, 0
      %v3751 = vxor.u32 %v3746, 2147483648
      %v3752 = vsel %vm3750, %v3745, %v3751
      %vm3753 = vcmp.eq.s32.totalorder %v3748, 2
      %v3754 = vxor.u32 %v3745, 2147483648
      %v3755 = vsel %vm3753, %v3754, %v3746
      %v3756 = vsel %vm3749, %v3752, %v3755
      %v3757 = vsel %vm3747, nan, %v3756
      %v3758 = vand.u32 2147483647, %v3012
      %vm3759 = vcmp.le.f32.partialorder %v3758, 0.7853982
      %vm3760 = vcmp.lt.s32.totalorder %v3012, 0
      %v3761 = vand.u32 %v3012, 2139095040
      %v3762 = vshrl.u32 %v3761, 23
      %v3763 = vsub.s32 %v3762, 127
      %v3764 = vand.u32 2147483647, %v3012
      %v3765 = vand.u32 %v3764, 8388607
      %v3766 = vor.u32 %v3765, 8388608
      %v3767 = vsub.s32 0, %v3766
      %v3768 = vadd.s32 %v3763, 1
      %vm3769 = vcmp.gt.s32.totalorder %v3768, 0
      %v3770 = vsel %vm3769, %v3768, 0
      %v3771 = vshrl.u32 %v3770, 5
      %v3772 = vand.u32 %v3770, 31
      %v3773 = vsub.s32 32, %v3772
      %v3774 = vshrl.u32 683565275, %v3773
      %v3775 = vshll.u32 683565275, %v3772
      %v3776 = vshrl.u32 2475754826, %v3773
      %v3777 = vor.u32 %v3775, %v3776
      %v3778 = vshll.u32 2475754826, %v3772
      %v3779 = vshrl.u32 2131351028, %v3773
      %v3780 = vor.u32 %v3778, %v3779
      %v3781 = vshll.u32 2131351028, %v3772
      %v3782 = vshrl.u32 2102212464, %v3773
      %v3783 = vor.u32 %v3781, %v3782
      %v3784 = vshll.u32 2102212464, %v3772
      %v3785 = vshrl.u32 920167782, %v3773
      %v3786 = vor.u32 %v3784, %v3785
      %v3787 = vshll.u32 920167782, %v3772
      %v3788 = vshrl.u32 1326507024, %v3773
      %v3789 = vor.u32 %v3787, %v3788
      %vm3790 = vcmp.lt.s32.totalorder %v3771, 1
      %vm3791 = vcmp.lt.s32.totalorder %v3771, 2
      %vm3792 = vcmp.lt.s32.totalorder %v3771, 3
      %vm3793 = vcmp.lt.s32.totalorder %v3771, 4
      %v3794 = vsel %vm3790, %v3774, %v3777
      %v3795 = vsel %vm3793, %v3783, 2102212464
      %v3796 = vsel %vm3792, %v3780, %v3795
      %v3797 = vsel %vm3791, %v3794, %v3796
      %v3798 = vsel %vm3790, %v3777, %v3780
      %v3799 = vsel %vm3793, %v3786, 920167782
      %v3800 = vsel %vm3792, %v3783, %v3799
      %v3801 = vsel %vm3791, %v3798, %v3800
      %v3802 = vsel %vm3790, %v3780, %v3783
      %v3803 = vsel %vm3793, %v3789, 1326507024
      %v3804 = vsel %vm3792, %v3786, %v3803
      %v3805 = vsel %vm3791, %v3802, %v3804
      %v3806 = vshll.u32 %v3766, 8
      %v3807 = vmul.u32.u64.compose %v3806, %v3805
      %v3808 = vextract.low.u32 %v3807
      %v3809 = vextract.high.u32 %v3807
      %v3810 = vmul.u32.u64.compose %v3806, %v3801
      %v3811 = vextract.low.u32 %v3810
      %v3812 = vextract.high.u32 %v3810
      %v3813 = vmul.u32 %v3806, %v3797
      %v3814 = vadd.s32 %v3809, %v3811
      %vm3815 = vc.u32 %v3809, %v3811
      %v3816 = vadd.s32 %v3812, 1
      %v3817 = vsel %vm3815, %v3816, %v3812
      %v3818 = vadd.s32 %v3813, %v3817
      %v3819 = vadd.s32 %v3818, 536870912
      %v3820 = vshrl.u32 %v3819, 30
      %v3821 = vshll.u32 %v3820, 30
      %v3822 = vsub.s32 %v3818, %v3821
      %vm3823 = vcmp.lt.s32.totalorder %v3822, 0
      %v3824 = vsub.s32 0, %v3822
      %v3825 = vsel %vm3823, %v3824, %v3822
      %v3826 = vclz %v3825
      %v3827 = vsub.s32 %v3826, 2
      %vm3828 = vcmp.gt.s32.totalorder 0, %v3827
      %v3829 = vsel %vm3828, 0, %v3827
      %v3830 = vsub.s32 32, %v3829
      %v3831 = vshll.u32 %v3822, %v3829
      %v3832 = vshrl.u32 %v3814, %v3830
      %v3833 = vor.u32 %v3831, %v3832
      %v3834 = vsub.s32 4294967266, %v3829
      %v3835 = vadd.s32 %v3834, 127
      %v3836 = vshll.u32 %v3835, 23
      %v3837 = vor.u32 4788187, %v3836
      %v3838 = vand.u32 2147483647, %v3837
      %v3840 = vcvt.s32.f32 %v3833
      %v3841 = vmul.f32 %v3840, %v3838
      %v3842 = vxor.u32 %v3841, 2147483648
      %v3843 = vsel %vm3760, %v3842, %v3841
      %v3844 = vsub.s32 4, %v3820
      %v3845 = vsel %vm3760, %v3844, %v3820
      %v3846 = vsel %vm3759, %v3012, %v3843
      %v3847 = vsel %vm3759, 0, %v3845
      %v3848 = vcosq.f32.pop %v3846
      %v3849 = vsinq.f32.pop %v3846
      %vm3850 = vweird.f32 %v3012
      %v3851 = vand.u32 %v3847, 3
      %vm3852 = vcmp.lt.s32.totalorder %v3851, 2
      %vm3853 = vcmp.eq.s32.totalorder %v3851, 0
      %v3854 = vxor.u32 %v3849, 2147483648
      %v3855 = vsel %vm3853, %v3848, %v3854
      %vm3856 = vcmp.eq.s32.totalorder %v3851, 2
      %v3857 = vxor.u32 %v3848, 2147483648
      %v3858 = vsel %vm3856, %v3857, %v3849
      %v3859 = vsel %vm3852, %v3855, %v3858
      %v3860 = vsel %vm3850, nan, %v3859
      %v3861 = vand.u32 2147483647, %v3013
      %vm3862 = vcmp.le.f32.partialorder %v3861, 0.7853982
      %vm3863 = vcmp.lt.s32.totalorder %v3013, 0
      %v3864 = vand.u32 %v3013, 2139095040
      %v3865 = vshrl.u32 %v3864, 23
      %v3866 = vsub.s32 %v3865, 127
      %v3867 = vand.u32 2147483647, %v3013
      %v3868 = vand.u32 %v3867, 8388607
      %v3869 = vor.u32 %v3868, 8388608
      %v3870 = vsub.s32 0, %v3869
      %v3871 = vadd.s32 %v3866, 1
      %vm3872 = vcmp.gt.s32.totalorder %v3871, 0
      %v3873 = vsel %vm3872, %v3871, 0
      %v3874 = vshrl.u32 %v3873, 5
      %v3875 = vand.u32 %v3873, 31
      %v3876 = vsub.s32 32, %v3875
      %v3877 = vshrl.u32 683565275, %v3876
      %v3878 = vshll.u32 683565275, %v3875
      %v3879 = vshrl.u32 2475754826, %v3876
      %v3880 = vor.u32 %v3878, %v3879
      %v3881 = vshll.u32 2475754826, %v3875
      %v3882 = vshrl.u32 2131351028, %v3876
      %v3883 = vor.u32 %v3881, %v3882
      %v3884 = vshll.u32 2131351028, %v3875
      %v3885 = vshrl.u32 2102212464, %v3876
      %v3886 = vor.u32 %v3884, %v3885
      %v3887 = vshll.u32 2102212464, %v3875
      %v3888 = vshrl.u32 920167782, %v3876
      %v3889 = vor.u32 %v3887, %v3888
      %v3890 = vshll.u32 920167782, %v3875
      %v3891 = vshrl.u32 1326507024, %v3876
      %v3892 = vor.u32 %v3890, %v3891
      %vm3893 = vcmp.lt.s32.totalorder %v3874, 1
      %vm3894 = vcmp.lt.s32.totalorder %v3874, 2
      %vm3895 = vcmp.lt.s32.totalorder %v3874, 3
      %vm3896 = vcmp.lt.s32.totalorder %v3874, 4
      %v3897 = vsel %vm3893, %v3877, %v3880
      %v3898 = vsel %vm3896, %v3886, 2102212464
      %v3899 = vsel %vm3895, %v3883, %v3898
      %v3900 = vsel %vm3894, %v3897, %v3899
      %v3901 = vsel %vm3893, %v3880, %v3883
      %v3902 = vsel %vm3896, %v3889, 920167782
      %v3903 = vsel %vm3895, %v3886, %v3902
      %v3904 = vsel %vm3894, %v3901, %v3903
      %v3905 = vsel %vm3893, %v3883, %v3886
      %v3906 = vsel %vm3896, %v3892, 1326507024
      %v3907 = vsel %vm3895, %v3889, %v3906
      %v3908 = vsel %vm3894, %v3905, %v3907
      %v3909 = vshll.u32 %v3869, 8
      %v3910 = vmul.u32.u64.compose %v3909, %v3908
      %v3911 = vextract.low.u32 %v3910
      %v3912 = vextract.high.u32 %v3910
      %v3913 = vmul.u32.u64.compose %v3909, %v3904
      %v3914 = vextract.low.u32 %v3913
      %v3915 = vextract.high.u32 %v3913
      %v3916 = vmul.u32 %v3909, %v3900
      %v3917 = vadd.s32 %v3912, %v3914
      %vm3918 = vc.u32 %v3912, %v3914
      %v3919 = vadd.s32 %v3915, 1
      %v3920 = vsel %vm3918, %v3919, %v3915
      %v3921 = vadd.s32 %v3916, %v3920
      %v3922 = vadd.s32 %v3921, 536870912
      %v3923 = vshrl.u32 %v3922, 30
      %v3924 = vshll.u32 %v3923, 30
      %v3925 = vsub.s32 %v3921, %v3924
      %vm3926 = vcmp.lt.s32.totalorder %v3925, 0
      %v3927 = vsub.s32 0, %v3925
      %v3928 = vsel %vm3926, %v3927, %v3925
      %v3929 = vclz %v3928
      %v3930 = vsub.s32 %v3929, 2
      %vm3931 = vcmp.gt.s32.totalorder 0, %v3930
      %v3932 = vsel %vm3931, 0, %v3930
      %v3933 = vsub.s32 32, %v3932
      %v3934 = vshll.u32 %v3925, %v3932
      %v3935 = vshrl.u32 %v3917, %v3933
      %v3936 = vor.u32 %v3934, %v3935
      %v3937 = vsub.s32 4294967266, %v3932
      %v3938 = vadd.s32 %v3937, 127
      %v3939 = vshll.u32 %v3938, 23
      %v3940 = vor.u32 4788187, %v3939
      %v3941 = vand.u32 2147483647, %v3940
      %v3943 = vcvt.s32.f32 %v3936
      %v3944 = vmul.f32 %v3943, %v3941
      %v3945 = vxor.u32 %v3944, 2147483648
      %v3946 = vsel %vm3863, %v3945, %v3944
      %v3947 = vsub.s32 4, %v3923
      %v3948 = vsel %vm3863, %v3947, %v3923
      %v3949 = vsel %vm3862, %v3013, %v3946
      %v3950 = vsel %vm3862, 0, %v3948
      %v3951 = vcosq.f32.pop %v3949
      %v3952 = vsinq.f32.pop %v3949
      %vm3953 = vweird.f32 %v3013
      %v3954 = vand.u32 %v3950, 3
      %vm3955 = vcmp.lt.s32.totalorder %v3954, 2
      %vm3956 = vcmp.eq.s32.totalorder %v3954, 0
      %v3957 = vxor.u32 %v3952, 2147483648
      %v3958 = vsel %vm3956, %v3951, %v3957
      %vm3959 = vcmp.eq.s32.totalorder %v3954, 2
      %v3960 = vxor.u32 %v3951, 2147483648
      %v3961 = vsel %vm3959, %v3960, %v3952
      %v3962 = vsel %vm3955, %v3958, %v3961
      %v3963 = vsel %vm3953, nan, %v3962
      %v3964 = vand.u32 2147483647, %v3014
      %vm3965 = vcmp.le.f32.partialorder %v3964, 0.7853982
      %vm3966 = vcmp.lt.s32.totalorder %v3014, 0
      %v3967 = vand.u32 %v3014, 2139095040
      %v3968 = vshrl.u32 %v3967, 23
      %v3969 = vsub.s32 %v3968, 127
      %v3970 = vand.u32 2147483647, %v3014
      %v3971 = vand.u32 %v3970, 8388607
      %v3972 = vor.u32 %v3971, 8388608
      %v3973 = vsub.s32 0, %v3972
      %v3974 = vadd.s32 %v3969, 1
      %vm3975 = vcmp.gt.s32.totalorder %v3974, 0
      %v3976 = vsel %vm3975, %v3974, 0
      %v3977 = vshrl.u32 %v3976, 5
      %v3978 = vand.u32 %v3976, 31
      %v3979 = vsub.s32 32, %v3978
      %v3980 = vshrl.u32 683565275, %v3979
      %v3981 = vshll.u32 683565275, %v3978
      %v3982 = vshrl.u32 2475754826, %v3979
      %v3983 = vor.u32 %v3981, %v3982
      %v3984 = vshll.u32 2475754826, %v3978
      %v3985 = vshrl.u32 2131351028, %v3979
      %v3986 = vor.u32 %v3984, %v3985
      %v3987 = vshll.u32 2131351028, %v3978
      %v3988 = vshrl.u32 2102212464, %v3979
      %v3989 = vor.u32 %v3987, %v3988
      %v3990 = vshll.u32 2102212464, %v3978
      %v3991 = vshrl.u32 920167782, %v3979
      %v3992 = vor.u32 %v3990, %v3991
      %v3993 = vshll.u32 920167782, %v3978
      %v3994 = vshrl.u32 1326507024, %v3979
      %v3995 = vor.u32 %v3993, %v3994
      %vm3996 = vcmp.lt.s32.totalorder %v3977, 1
      %vm3997 = vcmp.lt.s32.totalorder %v3977, 2
      %vm3998 = vcmp.lt.s32.totalorder %v3977, 3
      %vm3999 = vcmp.lt.s32.totalorder %v3977, 4
      %v4000 = vsel %vm3996, %v3980, %v3983
      %v4001 = vsel %vm3999, %v3989, 2102212464
      %v4002 = vsel %vm3998, %v3986, %v4001
      %v4003 = vsel %vm3997, %v4000, %v4002
      %v4004 = vsel %vm3996, %v3983, %v3986
      %v4005 = vsel %vm3999, %v3992, 920167782
      %v4006 = vsel %vm3998, %v3989, %v4005
      %v4007 = vsel %vm3997, %v4004, %v4006
      %v4008 = vsel %vm3996, %v3986, %v3989
      %v4009 = vsel %vm3999, %v3995, 1326507024
      %v4010 = vsel %vm3998, %v3992, %v4009
      %v4011 = vsel %vm3997, %v4008, %v4010
      %v4012 = vshll.u32 %v3972, 8
      %v4013 = vmul.u32.u64.compose %v4012, %v4011
      %v4014 = vextract.low.u32 %v4013
      %v4015 = vextract.high.u32 %v4013
      %v4016 = vmul.u32.u64.compose %v4012, %v4007
      %v4017 = vextract.low.u32 %v4016
      %v4018 = vextract.high.u32 %v4016
      %v4019 = vmul.u32 %v4012, %v4003
      %v4020 = vadd.s32 %v4015, %v4017
      %vm4021 = vc.u32 %v4015, %v4017
      %v4022 = vadd.s32 %v4018, 1
      %v4023 = vsel %vm4021, %v4022, %v4018
      %v4024 = vadd.s32 %v4019, %v4023
      %v4025 = vadd.s32 %v4024, 536870912
      %v4026 = vshrl.u32 %v4025, 30
      %v4027 = vshll.u32 %v4026, 30
      %v4028 = vsub.s32 %v4024, %v4027
      %vm4029 = vcmp.lt.s32.totalorder %v4028, 0
      %v4030 = vsub.s32 0, %v4028
      %v4031 = vsel %vm4029, %v4030, %v4028
      %v4032 = vclz %v4031
      %v4033 = vsub.s32 %v4032, 2
      %vm4034 = vcmp.gt.s32.totalorder 0, %v4033
      %v4035 = vsel %vm4034, 0, %v4033
      %v4036 = vsub.s32 32, %v4035
      %v4037 = vshll.u32 %v4028, %v4035
      %v4038 = vshrl.u32 %v4020, %v4036
      %v4039 = vor.u32 %v4037, %v4038
      %v4040 = vsub.s32 4294967266, %v4035
      %v4041 = vadd.s32 %v4040, 127
      %v4042 = vshll.u32 %v4041, 23
      %v4043 = vor.u32 4788187, %v4042
      %v4044 = vand.u32 2147483647, %v4043
      %v4046 = vcvt.s32.f32 %v4039
      %v4047 = vmul.f32 %v4046, %v4044
      %v4048 = vxor.u32 %v4047, 2147483648
      %v4049 = vsel %vm3966, %v4048, %v4047
      %v4050 = vsub.s32 4, %v4026
      %v4051 = vsel %vm3966, %v4050, %v4026
      %v4052 = vsel %vm3965, %v3014, %v4049
      %v4053 = vsel %vm3965, 0, %v4051
      %v4054 = vcosq.f32.pop %v4052
      %v4055 = vsinq.f32.pop %v4052
      %vm4056 = vweird.f32 %v3014
      %v4057 = vand.u32 %v4053, 3
      %vm4058 = vcmp.lt.s32.totalorder %v4057, 2
      %vm4059 = vcmp.eq.s32.totalorder %v4057, 0
      %v4060 = vxor.u32 %v4055, 2147483648
      %v4061 = vsel %vm4059, %v4054, %v4060
      %vm4062 = vcmp.eq.s32.totalorder %v4057, 2
      %v4063 = vxor.u32 %v4054, 2147483648
      %v4064 = vsel %vm4062, %v4063, %v4055
      %v4065 = vsel %vm4058, %v4061, %v4064
      %v4066 = vsel %vm4056, nan, %v4065
      %v4067 = vand.u32 2147483647, %v3015
      %vm4068 = vcmp.le.f32.partialorder %v4067, 0.7853982
      %vm4069 = vcmp.lt.s32.totalorder %v3015, 0
      %v4070 = vand.u32 %v3015, 2139095040
      %v4071 = vshrl.u32 %v4070, 23
      %v4072 = vsub.s32 %v4071, 127
      %v4073 = vand.u32 2147483647, %v3015
      %v4074 = vand.u32 %v4073, 8388607
      %v4075 = vor.u32 %v4074, 8388608
      %v4076 = vsub.s32 0, %v4075
      %v4077 = vadd.s32 %v4072, 1
      %vm4078 = vcmp.gt.s32.totalorder %v4077, 0
      %v4079 = vsel %vm4078, %v4077, 0
      %v4080 = vshrl.u32 %v4079, 5
      %v4081 = vand.u32 %v4079, 31
      %v4082 = vsub.s32 32, %v4081
      %v4083 = vshrl.u32 683565275, %v4082
      %v4084 = vshll.u32 683565275, %v4081
      %v4085 = vshrl.u32 2475754826, %v4082
      %v4086 = vor.u32 %v4084, %v4085
      %v4087 = vshll.u32 2475754826, %v4081
      %v4088 = vshrl.u32 2131351028, %v4082
      %v4089 = vor.u32 %v4087, %v4088
      %v4090 = vshll.u32 2131351028, %v4081
      %v4091 = vshrl.u32 2102212464, %v4082
      %v4092 = vor.u32 %v4090, %v4091
      %v4093 = vshll.u32 2102212464, %v4081
      %v4094 = vshrl.u32 920167782, %v4082
      %v4095 = vor.u32 %v4093, %v4094
      %v4096 = vshll.u32 920167782, %v4081
      %v4097 = vshrl.u32 1326507024, %v4082
      %v4098 = vor.u32 %v4096, %v4097
      %vm4099 = vcmp.lt.s32.totalorder %v4080, 1
      %vm4100 = vcmp.lt.s32.totalorder %v4080, 2
      %vm4101 = vcmp.lt.s32.totalorder %v4080, 3
      %vm4102 = vcmp.lt.s32.totalorder %v4080, 4
      %v4103 = vsel %vm4099, %v4083, %v4086
      %v4104 = vsel %vm4102, %v4092, 2102212464
      %v4105 = vsel %vm4101, %v4089, %v4104
      %v4106 = vsel %vm4100, %v4103, %v4105
      %v4107 = vsel %vm4099, %v4086, %v4089
      %v4108 = vsel %vm4102, %v4095, 920167782
      %v4109 = vsel %vm4101, %v4092, %v4108
      %v4110 = vsel %vm4100, %v4107, %v4109
      %v4111 = vsel %vm4099, %v4089, %v4092
      %v4112 = vsel %vm4102, %v4098, 1326507024
      %v4113 = vsel %vm4101, %v4095, %v4112
      %v4114 = vsel %vm4100, %v4111, %v4113
      %v4115 = vshll.u32 %v4075, 8
      %v4116 = vmul.u32.u64.compose %v4115, %v4114
      %v4117 = vextract.low.u32 %v4116
      %v4118 = vextract.high.u32 %v4116
      %v4119 = vmul.u32.u64.compose %v4115, %v4110
      %v4120 = vextract.low.u32 %v4119
      %v4121 = vextract.high.u32 %v4119
      %v4122 = vmul.u32 %v4115, %v4106
      %v4123 = vadd.s32 %v4118, %v4120
      %vm4124 = vc.u32 %v4118, %v4120
      %v4125 = vadd.s32 %v4121, 1
      %v4126 = vsel %vm4124, %v4125, %v4121
      %v4127 = vadd.s32 %v4122, %v4126
      %v4128 = vadd.s32 %v4127, 536870912
      %v4129 = vshrl.u32 %v4128, 30
      %v4130 = vshll.u32 %v4129, 30
      %v4131 = vsub.s32 %v4127, %v4130
      %vm4132 = vcmp.lt.s32.totalorder %v4131, 0
      %v4133 = vsub.s32 0, %v4131
      %v4134 = vsel %vm4132, %v4133, %v4131
      %v4135 = vclz %v4134
      %v4136 = vsub.s32 %v4135, 2
      %vm4137 = vcmp.gt.s32.totalorder 0, %v4136
      %v4138 = vsel %vm4137, 0, %v4136
      %v4139 = vsub.s32 32, %v4138
      %v4140 = vshll.u32 %v4131, %v4138
      %v4141 = vshrl.u32 %v4123, %v4139
      %v4142 = vor.u32 %v4140, %v4141
      %v4143 = vsub.s32 4294967266, %v4138
      %v4144 = vadd.s32 %v4143, 127
      %v4145 = vshll.u32 %v4144, 23
      %v4146 = vor.u32 4788187, %v4145
      %v4147 = vand.u32 2147483647, %v4146
      %v4149 = vcvt.s32.f32 %v4142
      %v4150 = vmul.f32 %v4149, %v4147
      %v4151 = vxor.u32 %v4150, 2147483648
      %v4152 = vsel %vm4069, %v4151, %v4150
      %v4153 = vsub.s32 4, %v4129
      %v4154 = vsel %vm4069, %v4153, %v4129
      %v4155 = vsel %vm4068, %v3015, %v4152
      %v4156 = vsel %vm4068, 0, %v4154
      %v4157 = vcosq.f32.pop %v4155
      %v4158 = vsinq.f32.pop %v4155
      %vm4159 = vweird.f32 %v3015
      %v4160 = vand.u32 %v4156, 3
      %vm4161 = vcmp.lt.s32.totalorder %v4160, 2
      %vm4162 = vcmp.eq.s32.totalorder %v4160, 0
      %v4163 = vxor.u32 %v4158, 2147483648
      %v4164 = vsel %vm4162, %v4157, %v4163
      %vm4165 = vcmp.eq.s32.totalorder %v4160, 2
      %v4166 = vxor.u32 %v4157, 2147483648
      %v4167 = vsel %vm4165, %v4166, %v4158
      %v4168 = vsel %vm4161, %v4164, %v4167
      %v4169 = vsel %vm4159, nan, %v4168
      %v4170 = vand.u32 2147483647, %v3016
      %vm4171 = vcmp.le.f32.partialorder %v4170, 0.7853982
      %vm4172 = vcmp.lt.s32.totalorder %v3016, 0
      %v4173 = vand.u32 %v3016, 2139095040
      %v4174 = vshrl.u32 %v4173, 23
      %v4175 = vsub.s32 %v4174, 127
      %v4176 = vand.u32 2147483647, %v3016
      %v4177 = vand.u32 %v4176, 8388607
      %v4178 = vor.u32 %v4177, 8388608
      %v4179 = vsub.s32 0, %v4178
      %v4180 = vadd.s32 %v4175, 1
      %vm4181 = vcmp.gt.s32.totalorder %v4180, 0
      %v4182 = vsel %vm4181, %v4180, 0
      %v4183 = vshrl.u32 %v4182, 5
      %v4184 = vand.u32 %v4182, 31
      %v4185 = vsub.s32 32, %v4184
      %v4186 = vshrl.u32 683565275, %v4185
      %v4187 = vshll.u32 683565275, %v4184
      %v4188 = vshrl.u32 2475754826, %v4185
      %v4189 = vor.u32 %v4187, %v4188
      %v4190 = vshll.u32 2475754826, %v4184
      %v4191 = vshrl.u32 2131351028, %v4185
      %v4192 = vor.u32 %v4190, %v4191
      %v4193 = vshll.u32 2131351028, %v4184
      %v4194 = vshrl.u32 2102212464, %v4185
      %v4195 = vor.u32 %v4193, %v4194
      %v4196 = vshll.u32 2102212464, %v4184
      %v4197 = vshrl.u32 920167782, %v4185
      %v4198 = vor.u32 %v4196, %v4197
      %v4199 = vshll.u32 920167782, %v4184
      %v4200 = vshrl.u32 1326507024, %v4185
      %v4201 = vor.u32 %v4199, %v4200
      %vm4202 = vcmp.lt.s32.totalorder %v4183, 1
      %vm4203 = vcmp.lt.s32.totalorder %v4183, 2
      %vm4204 = vcmp.lt.s32.totalorder %v4183, 3
      %vm4205 = vcmp.lt.s32.totalorder %v4183, 4
      %v4206 = vsel %vm4202, %v4186, %v4189
      %v4207 = vsel %vm4205, %v4195, 2102212464
      %v4208 = vsel %vm4204, %v4192, %v4207
      %v4209 = vsel %vm4203, %v4206, %v4208
      %v4210 = vsel %vm4202, %v4189, %v4192
      %v4211 = vsel %vm4205, %v4198, 920167782
      %v4212 = vsel %vm4204, %v4195, %v4211
      %v4213 = vsel %vm4203, %v4210, %v4212
      %v4214 = vsel %vm4202, %v4192, %v4195
      %v4215 = vsel %vm4205, %v4201, 1326507024
      %v4216 = vsel %vm4204, %v4198, %v4215
      %v4217 = vsel %vm4203, %v4214, %v4216
      %v4218 = vshll.u32 %v4178, 8
      %v4219 = vmul.u32.u64.compose %v4218, %v4217
      %v4220 = vextract.low.u32 %v4219
      %v4221 = vextract.high.u32 %v4219
      %v4222 = vmul.u32.u64.compose %v4218, %v4213
      %v4223 = vextract.low.u32 %v4222
      %v4224 = vextract.high.u32 %v4222
      %v4225 = vmul.u32 %v4218, %v4209
      %v4226 = vadd.s32 %v4221, %v4223
      %vm4227 = vc.u32 %v4221, %v4223
      %v4228 = vadd.s32 %v4224, 1
      %v4229 = vsel %vm4227, %v4228, %v4224
      %v4230 = vadd.s32 %v4225, %v4229
      %v4231 = vadd.s32 %v4230, 536870912
      %v4232 = vshrl.u32 %v4231, 30
      %v4233 = vshll.u32 %v4232, 30
      %v4234 = vsub.s32 %v4230, %v4233
      %vm4235 = vcmp.lt.s32.totalorder %v4234, 0
      %v4236 = vsub.s32 0, %v4234
      %v4237 = vsel %vm4235, %v4236, %v4234
      %v4238 = vclz %v4237
      %v4239 = vsub.s32 %v4238, 2
      %vm4240 = vcmp.gt.s32.totalorder 0, %v4239
      %v4241 = vsel %vm4240, 0, %v4239
      %v4242 = vsub.s32 32, %v4241
      %v4243 = vshll.u32 %v4234, %v4241
      %v4244 = vshrl.u32 %v4226, %v4242
      %v4245 = vor.u32 %v4243, %v4244
      %v4246 = vsub.s32 4294967266, %v4241
      %v4247 = vadd.s32 %v4246, 127
      %v4248 = vshll.u32 %v4247, 23
      %v4249 = vor.u32 4788187, %v4248
      %v4250 = vand.u32 2147483647, %v4249
      %v4252 = vcvt.s32.f32 %v4245
      %v4253 = vmul.f32 %v4252, %v4250
      %v4254 = vxor.u32 %v4253, 2147483648
      %v4255 = vsel %vm4172, %v4254, %v4253
      %v4256 = vsub.s32 4, %v4232
      %v4257 = vsel %vm4172, %v4256, %v4232
      %v4258 = vsel %vm4171, %v3016, %v4255
      %v4259 = vsel %vm4171, 0, %v4257
      %v4260 = vcosq.f32.pop %v4258
      %v4261 = vsinq.f32.pop %v4258
      %vm4262 = vweird.f32 %v3016
      %v4263 = vand.u32 %v4259, 3
      %vm4264 = vcmp.lt.s32.totalorder %v4263, 2
      %vm4265 = vcmp.eq.s32.totalorder %v4263, 0
      %v4266 = vxor.u32 %v4261, 2147483648
      %v4267 = vsel %vm4265, %v4260, %v4266
      %vm4268 = vcmp.eq.s32.totalorder %v4263, 2
      %v4269 = vxor.u32 %v4260, 2147483648
      %v4270 = vsel %vm4268, %v4269, %v4261
      %v4271 = vsel %vm4264, %v4267, %v4270
      %v4272 = vsel %vm4262, nan, %v4271
      %v4273 = vand.u32 2147483647, %v3017
      %vm4274 = vcmp.le.f32.partialorder %v4273, 0.7853982
      %vm4275 = vcmp.lt.s32.totalorder %v3017, 0
      %v4276 = vand.u32 %v3017, 2139095040
      %v4277 = vshrl.u32 %v4276, 23
      %v4278 = vsub.s32 %v4277, 127
      %v4279 = vand.u32 2147483647, %v3017
      %v4280 = vand.u32 %v4279, 8388607
      %v4281 = vor.u32 %v4280, 8388608
      %v4282 = vsub.s32 0, %v4281
      %v4283 = vadd.s32 %v4278, 1
      %vm4284 = vcmp.gt.s32.totalorder %v4283, 0
      %v4285 = vsel %vm4284, %v4283, 0
      %v4286 = vshrl.u32 %v4285, 5
      %v4287 = vand.u32 %v4285, 31
      %v4288 = vsub.s32 32, %v4287
      %v4289 = vshrl.u32 683565275, %v4288
      %v4290 = vshll.u32 683565275, %v4287
      %v4291 = vshrl.u32 2475754826, %v4288
      %v4292 = vor.u32 %v4290, %v4291
      %v4293 = vshll.u32 2475754826, %v4287
      %v4294 = vshrl.u32 2131351028, %v4288
      %v4295 = vor.u32 %v4293, %v4294
      %v4296 = vshll.u32 2131351028, %v4287
      %v4297 = vshrl.u32 2102212464, %v4288
      %v4298 = vor.u32 %v4296, %v4297
      %v4299 = vshll.u32 2102212464, %v4287
      %v4300 = vshrl.u32 920167782, %v4288
      %v4301 = vor.u32 %v4299, %v4300
      %v4302 = vshll.u32 920167782, %v4287
      %v4303 = vshrl.u32 1326507024, %v4288
      %v4304 = vor.u32 %v4302, %v4303
      %vm4305 = vcmp.lt.s32.totalorder %v4286, 1
      %vm4306 = vcmp.lt.s32.totalorder %v4286, 2
      %vm4307 = vcmp.lt.s32.totalorder %v4286, 3
      %vm4308 = vcmp.lt.s32.totalorder %v4286, 4
      %v4309 = vsel %vm4305, %v4289, %v4292
      %v4310 = vsel %vm4308, %v4298, 2102212464
      %v4311 = vsel %vm4307, %v4295, %v4310
      %v4312 = vsel %vm4306, %v4309, %v4311
      %v4313 = vsel %vm4305, %v4292, %v4295
      %v4314 = vsel %vm4308, %v4301, 920167782
      %v4315 = vsel %vm4307, %v4298, %v4314
      %v4316 = vsel %vm4306, %v4313, %v4315
      %v4317 = vsel %vm4305, %v4295, %v4298
      %v4318 = vsel %vm4308, %v4304, 1326507024
      %v4319 = vsel %vm4307, %v4301, %v4318
      %v4320 = vsel %vm4306, %v4317, %v4319
      %v4321 = vshll.u32 %v4281, 8
      %v4322 = vmul.u32.u64.compose %v4321, %v4320
      %v4323 = vextract.low.u32 %v4322
      %v4324 = vextract.high.u32 %v4322
      %v4325 = vmul.u32.u64.compose %v4321, %v4316
      %v4326 = vextract.low.u32 %v4325
      %v4327 = vextract.high.u32 %v4325
      %v4328 = vmul.u32 %v4321, %v4312
      %v4329 = vadd.s32 %v4324, %v4326
      %vm4330 = vc.u32 %v4324, %v4326
      %v4331 = vadd.s32 %v4327, 1
      %v4332 = vsel %vm4330, %v4331, %v4327
      %v4333 = vadd.s32 %v4328, %v4332
      %v4334 = vadd.s32 %v4333, 536870912
      %v4335 = vshrl.u32 %v4334, 30
      %v4336 = vshll.u32 %v4335, 30
      %v4337 = vsub.s32 %v4333, %v4336
      %vm4338 = vcmp.lt.s32.totalorder %v4337, 0
      %v4339 = vsub.s32 0, %v4337
      %v4340 = vsel %vm4338, %v4339, %v4337
      %v4341 = vclz %v4340
      %v4342 = vsub.s32 %v4341, 2
      %vm4343 = vcmp.gt.s32.totalorder 0, %v4342
      %v4344 = vsel %vm4343, 0, %v4342
      %v4345 = vsub.s32 32, %v4344
      %v4346 = vshll.u32 %v4337, %v4344
      %v4347 = vshrl.u32 %v4329, %v4345
      %v4348 = vor.u32 %v4346, %v4347
      %v4349 = vsub.s32 4294967266, %v4344
      %v4350 = vadd.s32 %v4349, 127
      %v4351 = vshll.u32 %v4350, 23
      %v4352 = vor.u32 4788187, %v4351
      %v4353 = vand.u32 2147483647, %v4352
      %v4355 = vcvt.s32.f32 %v4348
      %v4356 = vmul.f32 %v4355, %v4353
      %v4357 = vxor.u32 %v4356, 2147483648
      %v4358 = vsel %vm4275, %v4357, %v4356
      %v4359 = vsub.s32 4, %v4335
      %v4360 = vsel %vm4275, %v4359, %v4335
      %v4361 = vsel %vm4274, %v3017, %v4358
      %v4362 = vsel %vm4274, 0, %v4360
      %v4363 = vcosq.f32.pop %v4361
      %v4364 = vsinq.f32.pop %v4361
      %vm4365 = vweird.f32 %v3017
      %v4366 = vand.u32 %v4362, 3
      %vm4367 = vcmp.lt.s32.totalorder %v4366, 2
      %vm4368 = vcmp.eq.s32.totalorder %v4366, 0
      %v4369 = vxor.u32 %v4364, 2147483648
      %v4370 = vsel %vm4368, %v4363, %v4369
      %vm4371 = vcmp.eq.s32.totalorder %v4366, 2
      %v4372 = vxor.u32 %v4363, 2147483648
      %v4373 = vsel %vm4371, %v4372, %v4364
      %v4374 = vsel %vm4367, %v4370, %v4373
      %v4375 = vsel %vm4365, nan, %v4374
      %v4376 = vand.u32 2147483647, %v3018
      %vm4377 = vcmp.le.f32.partialorder %v4376, 0.7853982
      %vm4378 = vcmp.lt.s32.totalorder %v3018, 0
      %v4379 = vand.u32 %v3018, 2139095040
      %v4380 = vshrl.u32 %v4379, 23
      %v4381 = vsub.s32 %v4380, 127
      %v4382 = vand.u32 2147483647, %v3018
      %v4383 = vand.u32 %v4382, 8388607
      %v4384 = vor.u32 %v4383, 8388608
      %v4385 = vsub.s32 0, %v4384
      %v4386 = vadd.s32 %v4381, 1
      %vm4387 = vcmp.gt.s32.totalorder %v4386, 0
      %v4388 = vsel %vm4387, %v4386, 0
      %v4389 = vshrl.u32 %v4388, 5
      %v4390 = vand.u32 %v4388, 31
      %v4391 = vsub.s32 32, %v4390
      %v4392 = vshrl.u32 683565275, %v4391
      %v4393 = vshll.u32 683565275, %v4390
      %v4394 = vshrl.u32 2475754826, %v4391
      %v4395 = vor.u32 %v4393, %v4394
      %v4396 = vshll.u32 2475754826, %v4390
      %v4397 = vshrl.u32 2131351028, %v4391
      %v4398 = vor.u32 %v4396, %v4397
      %v4399 = vshll.u32 2131351028, %v4390
      %v4400 = vshrl.u32 2102212464, %v4391
      %v4401 = vor.u32 %v4399, %v4400
      %v4402 = vshll.u32 2102212464, %v4390
      %v4403 = vshrl.u32 920167782, %v4391
      %v4404 = vor.u32 %v4402, %v4403
      %v4405 = vshll.u32 920167782, %v4390
      %v4406 = vshrl.u32 1326507024, %v4391
      %v4407 = vor.u32 %v4405, %v4406
      %vm4408 = vcmp.lt.s32.totalorder %v4389, 1
      %vm4409 = vcmp.lt.s32.totalorder %v4389, 2
      %vm4410 = vcmp.lt.s32.totalorder %v4389, 3
      %vm4411 = vcmp.lt.s32.totalorder %v4389, 4
      %v4412 = vsel %vm4408, %v4392, %v4395
      %v4413 = vsel %vm4411, %v4401, 2102212464
      %v4414 = vsel %vm4410, %v4398, %v4413
      %v4415 = vsel %vm4409, %v4412, %v4414
      %v4416 = vsel %vm4408, %v4395, %v4398
      %v4417 = vsel %vm4411, %v4404, 920167782
      %v4418 = vsel %vm4410, %v4401, %v4417
      %v4419 = vsel %vm4409, %v4416, %v4418
      %v4420 = vsel %vm4408, %v4398, %v4401
      %v4421 = vsel %vm4411, %v4407, 1326507024
      %v4422 = vsel %vm4410, %v4404, %v4421
      %v4423 = vsel %vm4409, %v4420, %v4422
      %v4424 = vshll.u32 %v4384, 8
      %v4425 = vmul.u32.u64.compose %v4424, %v4423
      %v4426 = vextract.low.u32 %v4425
      %v4427 = vextract.high.u32 %v4425
      %v4428 = vmul.u32.u64.compose %v4424, %v4419
      %v4429 = vextract.low.u32 %v4428
      %v4430 = vextract.high.u32 %v4428
      %v4431 = vmul.u32 %v4424, %v4415
      %v4432 = vadd.s32 %v4427, %v4429
      %vm4433 = vc.u32 %v4427, %v4429
      %v4434 = vadd.s32 %v4430, 1
      %v4435 = vsel %vm4433, %v4434, %v4430
      %v4436 = vadd.s32 %v4431, %v4435
      %v4437 = vadd.s32 %v4436, 536870912
      %v4438 = vshrl.u32 %v4437, 30
      %v4439 = vshll.u32 %v4438, 30
      %v4440 = vsub.s32 %v4436, %v4439
      %vm4441 = vcmp.lt.s32.totalorder %v4440, 0
      %v4442 = vsub.s32 0, %v4440
      %v4443 = vsel %vm4441, %v4442, %v4440
      %v4444 = vclz %v4443
      %v4445 = vsub.s32 %v4444, 2
      %vm4446 = vcmp.gt.s32.totalorder 0, %v4445
      %v4447 = vsel %vm4446, 0, %v4445
      %v4448 = vsub.s32 32, %v4447
      %v4449 = vshll.u32 %v4440, %v4447
      %v4450 = vshrl.u32 %v4432, %v4448
      %v4451 = vor.u32 %v4449, %v4450
      %v4452 = vsub.s32 4294967266, %v4447
      %v4453 = vadd.s32 %v4452, 127
      %v4454 = vshll.u32 %v4453, 23
      %v4455 = vor.u32 4788187, %v4454
      %v4456 = vand.u32 2147483647, %v4455
      %v4458 = vcvt.s32.f32 %v4451
      %v4459 = vmul.f32 %v4458, %v4456
      %v4460 = vxor.u32 %v4459, 2147483648
      %v4461 = vsel %vm4378, %v4460, %v4459
      %v4462 = vsub.s32 4, %v4438
      %v4463 = vsel %vm4378, %v4462, %v4438
      %v4464 = vsel %vm4377, %v3018, %v4461
      %v4465 = vsel %vm4377, 0, %v4463
      %v4466 = vcosq.f32.pop %v4464
      %v4467 = vsinq.f32.pop %v4464
      %vm4468 = vweird.f32 %v3018
      %v4469 = vand.u32 %v4465, 3
      %vm4470 = vcmp.lt.s32.totalorder %v4469, 2
      %vm4471 = vcmp.eq.s32.totalorder %v4469, 0
      %v4472 = vxor.u32 %v4467, 2147483648
      %v4473 = vsel %vm4471, %v4466, %v4472
      %vm4474 = vcmp.eq.s32.totalorder %v4469, 2
      %v4475 = vxor.u32 %v4466, 2147483648
      %v4476 = vsel %vm4474, %v4475, %v4467
      %v4477 = vsel %vm4470, %v4473, %v4476
      %v4478 = vsel %vm4468, nan, %v4477
      %v4479 = vand.u32 2147483647, %v3019
      %vm4480 = vcmp.le.f32.partialorder %v4479, 0.7853982
      %vm4481 = vcmp.lt.s32.totalorder %v3019, 0
      %v4482 = vand.u32 %v3019, 2139095040
      %v4483 = vshrl.u32 %v4482, 23
      %v4484 = vsub.s32 %v4483, 127
      %v4485 = vand.u32 2147483647, %v3019
      %v4486 = vand.u32 %v4485, 8388607
      %v4487 = vor.u32 %v4486, 8388608
      %v4488 = vsub.s32 0, %v4487
      %v4489 = vadd.s32 %v4484, 1
      %vm4490 = vcmp.gt.s32.totalorder %v4489, 0
      %v4491 = vsel %vm4490, %v4489, 0
      %v4492 = vshrl.u32 %v4491, 5
      %v4493 = vand.u32 %v4491, 31
      %v4494 = vsub.s32 32, %v4493
      %v4495 = vshrl.u32 683565275, %v4494
      %v4496 = vshll.u32 683565275, %v4493
      %v4497 = vshrl.u32 2475754826, %v4494
      %v4498 = vor.u32 %v4496, %v4497
      %v4499 = vshll.u32 2475754826, %v4493
      %v4500 = vshrl.u32 2131351028, %v4494
      %v4501 = vor.u32 %v4499, %v4500
      %v4502 = vshll.u32 2131351028, %v4493
      %v4503 = vshrl.u32 2102212464, %v4494
      %v4504 = vor.u32 %v4502, %v4503
      %v4505 = vshll.u32 2102212464, %v4493
      %v4506 = vshrl.u32 920167782, %v4494
      %v4507 = vor.u32 %v4505, %v4506
      %v4508 = vshll.u32 920167782, %v4493
      %v4509 = vshrl.u32 1326507024, %v4494
      %v4510 = vor.u32 %v4508, %v4509
      %vm4511 = vcmp.lt.s32.totalorder %v4492, 1
      %vm4512 = vcmp.lt.s32.totalorder %v4492, 2
      %vm4513 = vcmp.lt.s32.totalorder %v4492, 3
      %vm4514 = vcmp.lt.s32.totalorder %v4492, 4
      %v4515 = vsel %vm4511, %v4495, %v4498
      %v4516 = vsel %vm4514, %v4504, 2102212464
      %v4517 = vsel %vm4513, %v4501, %v4516
      %v4518 = vsel %vm4512, %v4515, %v4517
      %v4519 = vsel %vm4511, %v4498, %v4501
      %v4520 = vsel %vm4514, %v4507, 920167782
      %v4521 = vsel %vm4513, %v4504, %v4520
      %v4522 = vsel %vm4512, %v4519, %v4521
      %v4523 = vsel %vm4511, %v4501, %v4504
      %v4524 = vsel %vm4514, %v4510, 1326507024
      %v4525 = vsel %vm4513, %v4507, %v4524
      %v4526 = vsel %vm4512, %v4523, %v4525
      %v4527 = vshll.u32 %v4487, 8
      %v4528 = vmul.u32.u64.compose %v4527, %v4526
      %v4529 = vextract.low.u32 %v4528
      %v4530 = vextract.high.u32 %v4528
      %v4531 = vmul.u32.u64.compose %v4527, %v4522
      %v4532 = vextract.low.u32 %v4531
      %v4533 = vextract.high.u32 %v4531
      %v4534 = vmul.u32 %v4527, %v4518
      %v4535 = vadd.s32 %v4530, %v4532
      %vm4536 = vc.u32 %v4530, %v4532
      %v4537 = vadd.s32 %v4533, 1
      %v4538 = vsel %vm4536, %v4537, %v4533
      %v4539 = vadd.s32 %v4534, %v4538
      %v4540 = vadd.s32 %v4539, 536870912
      %v4541 = vshrl.u32 %v4540, 30
      %v4542 = vshll.u32 %v4541, 30
      %v4543 = vsub.s32 %v4539, %v4542
      %vm4544 = vcmp.lt.s32.totalorder %v4543, 0
      %v4545 = vsub.s32 0, %v4543
      %v4546 = vsel %vm4544, %v4545, %v4543
      %v4547 = vclz %v4546
      %v4548 = vsub.s32 %v4547, 2
      %vm4549 = vcmp.gt.s32.totalorder 0, %v4548
      %v4550 = vsel %vm4549, 0, %v4548
      %v4551 = vsub.s32 32, %v4550
      %v4552 = vshll.u32 %v4543, %v4550
      %v4553 = vshrl.u32 %v4535, %v4551
      %v4554 = vor.u32 %v4552, %v4553
      %v4555 = vsub.s32 4294967266, %v4550
      %v4556 = vadd.s32 %v4555, 127
      %v4557 = vshll.u32 %v4556, 23
      %v4558 = vor.u32 4788187, %v4557
      %v4559 = vand.u32 2147483647, %v4558
      %v4561 = vcvt.s32.f32 %v4554
      %v4562 = vmul.f32 %v4561, %v4559
      %v4563 = vxor.u32 %v4562, 2147483648
      %v4564 = vsel %vm4481, %v4563, %v4562
      %v4565 = vsub.s32 4, %v4541
      %v4566 = vsel %vm4481, %v4565, %v4541
      %v4567 = vsel %vm4480, %v3019, %v4564
      %v4568 = vsel %vm4480, 0, %v4566
      %v4569 = vcosq.f32.pop %v4567
      %v4570 = vsinq.f32.pop %v4567
      %vm4571 = vweird.f32 %v3019
      %v4572 = vand.u32 %v4568, 3
      %vm4573 = vcmp.lt.s32.totalorder %v4572, 2
      %vm4574 = vcmp.eq.s32.totalorder %v4572, 0
      %v4575 = vxor.u32 %v4570, 2147483648
      %v4576 = vsel %vm4574, %v4569, %v4575
      %vm4577 = vcmp.eq.s32.totalorder %v4572, 2
      %v4578 = vxor.u32 %v4569, 2147483648
      %v4579 = vsel %vm4577, %v4578, %v4570
      %v4580 = vsel %vm4573, %v4576, %v4579
      %v4581 = vsel %vm4571, nan, %v4580
      %v4582 = vand.u32 2147483647, %v3020
      %vm4583 = vcmp.le.f32.partialorder %v4582, 0.7853982
      %vm4584 = vcmp.lt.s32.totalorder %v3020, 0
      %v4585 = vand.u32 %v3020, 2139095040
      %v4586 = vshrl.u32 %v4585, 23
      %v4587 = vsub.s32 %v4586, 127
      %v4588 = vand.u32 2147483647, %v3020
      %v4589 = vand.u32 %v4588, 8388607
      %v4590 = vor.u32 %v4589, 8388608
      %v4591 = vsub.s32 0, %v4590
      %v4592 = vadd.s32 %v4587, 1
      %vm4593 = vcmp.gt.s32.totalorder %v4592, 0
      %v4594 = vsel %vm4593, %v4592, 0
      %v4595 = vshrl.u32 %v4594, 5
      %v4596 = vand.u32 %v4594, 31
      %v4597 = vsub.s32 32, %v4596
      %v4598 = vshrl.u32 683565275, %v4597
      %v4599 = vshll.u32 683565275, %v4596
      %v4600 = vshrl.u32 2475754826, %v4597
      %v4601 = vor.u32 %v4599, %v4600
      %v4602 = vshll.u32 2475754826, %v4596
      %v4603 = vshrl.u32 2131351028, %v4597
      %v4604 = vor.u32 %v4602, %v4603
      %v4605 = vshll.u32 2131351028, %v4596
      %v4606 = vshrl.u32 2102212464, %v4597
      %v4607 = vor.u32 %v4605, %v4606
      %v4608 = vshll.u32 2102212464, %v4596
      %v4609 = vshrl.u32 920167782, %v4597
      %v4610 = vor.u32 %v4608, %v4609
      %v4611 = vshll.u32 920167782, %v4596
      %v4612 = vshrl.u32 1326507024, %v4597
      %v4613 = vor.u32 %v4611, %v4612
      %vm4614 = vcmp.lt.s32.totalorder %v4595, 1
      %vm4615 = vcmp.lt.s32.totalorder %v4595, 2
      %vm4616 = vcmp.lt.s32.totalorder %v4595, 3
      %vm4617 = vcmp.lt.s32.totalorder %v4595, 4
      %v4618 = vsel %vm4614, %v4598, %v4601
      %v4619 = vsel %vm4617, %v4607, 2102212464
      %v4620 = vsel %vm4616, %v4604, %v4619
      %v4621 = vsel %vm4615, %v4618, %v4620
      %v4622 = vsel %vm4614, %v4601, %v4604
      %v4623 = vsel %vm4617, %v4610, 920167782
      %v4624 = vsel %vm4616, %v4607, %v4623
      %v4625 = vsel %vm4615, %v4622, %v4624
      %v4626 = vsel %vm4614, %v4604, %v4607
      %v4627 = vsel %vm4617, %v4613, 1326507024
      %v4628 = vsel %vm4616, %v4610, %v4627
      %v4629 = vsel %vm4615, %v4626, %v4628
      %v4630 = vshll.u32 %v4590, 8
      %v4631 = vmul.u32.u64.compose %v4630, %v4629
      %v4632 = vextract.low.u32 %v4631
      %v4633 = vextract.high.u32 %v4631
      %v4634 = vmul.u32.u64.compose %v4630, %v4625
      %v4635 = vextract.low.u32 %v4634
      %v4636 = vextract.high.u32 %v4634
      %v4637 = vmul.u32 %v4630, %v4621
      %v4638 = vadd.s32 %v4633, %v4635
      %vm4639 = vc.u32 %v4633, %v4635
      %v4640 = vadd.s32 %v4636, 1
      %v4641 = vsel %vm4639, %v4640, %v4636
      %v4642 = vadd.s32 %v4637, %v4641
      %v4643 = vadd.s32 %v4642, 536870912
      %v4644 = vshrl.u32 %v4643, 30
      %v4645 = vshll.u32 %v4644, 30
      %v4646 = vsub.s32 %v4642, %v4645
      %vm4647 = vcmp.lt.s32.totalorder %v4646, 0
      %v4648 = vsub.s32 0, %v4646
      %v4649 = vsel %vm4647, %v4648, %v4646
      %v4650 = vclz %v4649
      %v4651 = vsub.s32 %v4650, 2
      %vm4652 = vcmp.gt.s32.totalorder 0, %v4651
      %v4653 = vsel %vm4652, 0, %v4651
      %v4654 = vsub.s32 32, %v4653
      %v4655 = vshll.u32 %v4646, %v4653
      %v4656 = vshrl.u32 %v4638, %v4654
      %v4657 = vor.u32 %v4655, %v4656
      %v4658 = vsub.s32 4294967266, %v4653
      %v4659 = vadd.s32 %v4658, 127
      %v4660 = vshll.u32 %v4659, 23
      %v4661 = vor.u32 4788187, %v4660
      %v4662 = vand.u32 2147483647, %v4661
      %v4664 = vcvt.s32.f32 %v4657
      %v4665 = vmul.f32 %v4664, %v4662
      %v4666 = vxor.u32 %v4665, 2147483648
      %v4667 = vsel %vm4584, %v4666, %v4665
      %v4668 = vsub.s32 4, %v4644
      %v4669 = vsel %vm4584, %v4668, %v4644
      %v4670 = vsel %vm4583, %v3020, %v4667
      %v4671 = vsel %vm4583, 0, %v4669
      %v4672 = vcosq.f32.pop %v4670
      %v4673 = vsinq.f32.pop %v4670
      %vm4674 = vweird.f32 %v3020
      %v4675 = vand.u32 %v4671, 3
      %vm4676 = vcmp.lt.s32.totalorder %v4675, 2
      %vm4677 = vcmp.eq.s32.totalorder %v4675, 0
      %v4678 = vxor.u32 %v4673, 2147483648
      %v4679 = vsel %vm4677, %v4672, %v4678
      %vm4680 = vcmp.eq.s32.totalorder %v4675, 2
      %v4681 = vxor.u32 %v4672, 2147483648
      %v4682 = vsel %vm4680, %v4681, %v4673
      %v4683 = vsel %vm4676, %v4679, %v4682
      %v4684 = vsel %vm4674, nan, %v4683
      %v4685 = vand.u32 2147483647, %v3021
      %vm4686 = vcmp.le.f32.partialorder %v4685, 0.7853982
      %vm4687 = vcmp.lt.s32.totalorder %v3021, 0
      %v4688 = vand.u32 %v3021, 2139095040
      %v4689 = vshrl.u32 %v4688, 23
      %v4690 = vsub.s32 %v4689, 127
      %v4691 = vand.u32 2147483647, %v3021
      %v4692 = vand.u32 %v4691, 8388607
      %v4693 = vor.u32 %v4692, 8388608
      %v4694 = vsub.s32 0, %v4693
      %v4695 = vadd.s32 %v4690, 1
      %vm4696 = vcmp.gt.s32.totalorder %v4695, 0
      %v4697 = vsel %vm4696, %v4695, 0
      %v4698 = vshrl.u32 %v4697, 5
      %v4699 = vand.u32 %v4697, 31
      %v4700 = vsub.s32 32, %v4699
      %v4701 = vshrl.u32 683565275, %v4700
      %v4702 = vshll.u32 683565275, %v4699
      %v4703 = vshrl.u32 2475754826, %v4700
      %v4704 = vor.u32 %v4702, %v4703
      %v4705 = vshll.u32 2475754826, %v4699
      %v4706 = vshrl.u32 2131351028, %v4700
      %v4707 = vor.u32 %v4705, %v4706
      %v4708 = vshll.u32 2131351028, %v4699
      %v4709 = vshrl.u32 2102212464, %v4700
      %v4710 = vor.u32 %v4708, %v4709
      %v4711 = vshll.u32 2102212464, %v4699
      %v4712 = vshrl.u32 920167782, %v4700
      %v4713 = vor.u32 %v4711, %v4712
      %v4714 = vshll.u32 920167782, %v4699
      %v4715 = vshrl.u32 1326507024, %v4700
      %v4716 = vor.u32 %v4714, %v4715
      %vm4717 = vcmp.lt.s32.totalorder %v4698, 1
      %vm4718 = vcmp.lt.s32.totalorder %v4698, 2
      %vm4719 = vcmp.lt.s32.totalorder %v4698, 3
      %vm4720 = vcmp.lt.s32.totalorder %v4698, 4
      %v4721 = vsel %vm4717, %v4701, %v4704
      %v4722 = vsel %vm4720, %v4710, 2102212464
      %v4723 = vsel %vm4719, %v4707, %v4722
      %v4724 = vsel %vm4718, %v4721, %v4723
      %v4725 = vsel %vm4717, %v4704, %v4707
      %v4726 = vsel %vm4720, %v4713, 920167782
      %v4727 = vsel %vm4719, %v4710, %v4726
      %v4728 = vsel %vm4718, %v4725, %v4727
      %v4729 = vsel %vm4717, %v4707, %v4710
      %v4730 = vsel %vm4720, %v4716, 1326507024
      %v4731 = vsel %vm4719, %v4713, %v4730
      %v4732 = vsel %vm4718, %v4729, %v4731
      %v4733 = vshll.u32 %v4693, 8
      %v4734 = vmul.u32.u64.compose %v4733, %v4732
      %v4735 = vextract.low.u32 %v4734
      %v4736 = vextract.high.u32 %v4734
      %v4737 = vmul.u32.u64.compose %v4733, %v4728
      %v4738 = vextract.low.u32 %v4737
      %v4739 = vextract.high.u32 %v4737
      %v4740 = vmul.u32 %v4733, %v4724
      %v4741 = vadd.s32 %v4736, %v4738
      %vm4742 = vc.u32 %v4736, %v4738
      %v4743 = vadd.s32 %v4739, 1
      %v4744 = vsel %vm4742, %v4743, %v4739
      %v4745 = vadd.s32 %v4740, %v4744
      %v4746 = vadd.s32 %v4745, 536870912
      %v4747 = vshrl.u32 %v4746, 30
      %v4748 = vshll.u32 %v4747, 30
      %v4749 = vsub.s32 %v4745, %v4748
      %vm4750 = vcmp.lt.s32.totalorder %v4749, 0
      %v4751 = vsub.s32 0, %v4749
      %v4752 = vsel %vm4750, %v4751, %v4749
      %v4753 = vclz %v4752
      %v4754 = vsub.s32 %v4753, 2
      %vm4755 = vcmp.gt.s32.totalorder 0, %v4754
      %v4756 = vsel %vm4755, 0, %v4754
      %v4757 = vsub.s32 32, %v4756
      %v4758 = vshll.u32 %v4749, %v4756
      %v4759 = vshrl.u32 %v4741, %v4757
      %v4760 = vor.u32 %v4758, %v4759
      %v4761 = vsub.s32 4294967266, %v4756
      %v4762 = vadd.s32 %v4761, 127
      %v4763 = vshll.u32 %v4762, 23
      %v4764 = vor.u32 4788187, %v4763
      %v4765 = vand.u32 2147483647, %v4764
      %v4767 = vcvt.s32.f32 %v4760
      %v4768 = vmul.f32 %v4767, %v4765
      %v4769 = vxor.u32 %v4768, 2147483648
      %v4770 = vsel %vm4687, %v4769, %v4768
      %v4771 = vsub.s32 4, %v4747
      %v4772 = vsel %vm4687, %v4771, %v4747
      %v4773 = vsel %vm4686, %v3021, %v4770
      %v4774 = vsel %vm4686, 0, %v4772
      %v4775 = vcosq.f32.pop %v4773
      %v4776 = vsinq.f32.pop %v4773
      %vm4777 = vweird.f32 %v3021
      %v4778 = vand.u32 %v4774, 3
      %vm4779 = vcmp.lt.s32.totalorder %v4778, 2
      %vm4780 = vcmp.eq.s32.totalorder %v4778, 0
      %v4781 = vxor.u32 %v4776, 2147483648
      %v4782 = vsel %vm4780, %v4775, %v4781
      %vm4783 = vcmp.eq.s32.totalorder %v4778, 2
      %v4784 = vxor.u32 %v4775, 2147483648
      %v4785 = vsel %vm4783, %v4784, %v4776
      %v4786 = vsel %vm4779, %v4782, %v4785
      %v4787 = vsel %vm4777, nan, %v4786
      %v4788 = vand.u32 2147483647, %v3022
      %vm4789 = vcmp.le.f32.partialorder %v4788, 0.7853982
      %vm4790 = vcmp.lt.s32.totalorder %v3022, 0
      %v4791 = vand.u32 %v3022, 2139095040
      %v4792 = vshrl.u32 %v4791, 23
      %v4793 = vsub.s32 %v4792, 127
      %v4794 = vand.u32 2147483647, %v3022
      %v4795 = vand.u32 %v4794, 8388607
      %v4796 = vor.u32 %v4795, 8388608
      %v4797 = vsub.s32 0, %v4796
      %v4798 = vadd.s32 %v4793, 1
      %vm4799 = vcmp.gt.s32.totalorder %v4798, 0
      %v4800 = vsel %vm4799, %v4798, 0
      %v4801 = vshrl.u32 %v4800, 5
      %v4802 = vand.u32 %v4800, 31
      %v4803 = vsub.s32 32, %v4802
      %v4804 = vshrl.u32 683565275, %v4803
      %v4805 = vshll.u32 683565275, %v4802
      %v4806 = vshrl.u32 2475754826, %v4803
      %v4807 = vor.u32 %v4805, %v4806
      %v4808 = vshll.u32 2475754826, %v4802
      %v4809 = vshrl.u32 2131351028, %v4803
      %v4810 = vor.u32 %v4808, %v4809
      %v4811 = vshll.u32 2131351028, %v4802
      %v4812 = vshrl.u32 2102212464, %v4803
      %v4813 = vor.u32 %v4811, %v4812
      %v4814 = vshll.u32 2102212464, %v4802
      %v4815 = vshrl.u32 920167782, %v4803
      %v4816 = vor.u32 %v4814, %v4815
      %v4817 = vshll.u32 920167782, %v4802
      %v4818 = vshrl.u32 1326507024, %v4803
      %v4819 = vor.u32 %v4817, %v4818
      %vm4820 = vcmp.lt.s32.totalorder %v4801, 1
      %vm4821 = vcmp.lt.s32.totalorder %v4801, 2
      %vm4822 = vcmp.lt.s32.totalorder %v4801, 3
      %vm4823 = vcmp.lt.s32.totalorder %v4801, 4
      %v4824 = vsel %vm4820, %v4804, %v4807
      %v4825 = vsel %vm4823, %v4813, 2102212464
      %v4826 = vsel %vm4822, %v4810, %v4825
      %v4827 = vsel %vm4821, %v4824, %v4826
      %v4828 = vsel %vm4820, %v4807, %v4810
      %v4829 = vsel %vm4823, %v4816, 920167782
      %v4830 = vsel %vm4822, %v4813, %v4829
      %v4831 = vsel %vm4821, %v4828, %v4830
      %v4832 = vsel %vm4820, %v4810, %v4813
      %v4833 = vsel %vm4823, %v4819, 1326507024
      %v4834 = vsel %vm4822, %v4816, %v4833
      %v4835 = vsel %vm4821, %v4832, %v4834
      %v4836 = vshll.u32 %v4796, 8
      %v4837 = vmul.u32.u64.compose %v4836, %v4835
      %v4838 = vextract.low.u32 %v4837
      %v4839 = vextract.high.u32 %v4837
      %v4840 = vmul.u32.u64.compose %v4836, %v4831
      %v4841 = vextract.low.u32 %v4840
      %v4842 = vextract.high.u32 %v4840
      %v4843 = vmul.u32 %v4836, %v4827
      %v4844 = vadd.s32 %v4839, %v4841
      %vm4845 = vc.u32 %v4839, %v4841
      %v4846 = vadd.s32 %v4842, 1
      %v4847 = vsel %vm4845, %v4846, %v4842
      %v4848 = vadd.s32 %v4843, %v4847
      %v4849 = vadd.s32 %v4848, 536870912
      %v4850 = vshrl.u32 %v4849, 30
      %v4851 = vshll.u32 %v4850, 30
      %v4852 = vsub.s32 %v4848, %v4851
      %vm4853 = vcmp.lt.s32.totalorder %v4852, 0
      %v4854 = vsub.s32 0, %v4852
      %v4855 = vsel %vm4853, %v4854, %v4852
      %v4856 = vclz %v4855
      %v4857 = vsub.s32 %v4856, 2
      %vm4858 = vcmp.gt.s32.totalorder 0, %v4857
      %v4859 = vsel %vm4858, 0, %v4857
      %v4860 = vsub.s32 32, %v4859
      %v4861 = vshll.u32 %v4852, %v4859
      %v4862 = vshrl.u32 %v4844, %v4860
      %v4863 = vor.u32 %v4861, %v4862
      %v4864 = vsub.s32 4294967266, %v4859
      %v4865 = vadd.s32 %v4864, 127
      %v4866 = vshll.u32 %v4865, 23
      %v4867 = vor.u32 4788187, %v4866
      %v4868 = vand.u32 2147483647, %v4867
      %v4870 = vcvt.s32.f32 %v4863
      %v4871 = vmul.f32 %v4870, %v4868
      %v4872 = vxor.u32 %v4871, 2147483648
      %v4873 = vsel %vm4790, %v4872, %v4871
      %v4874 = vsub.s32 4, %v4850
      %v4875 = vsel %vm4790, %v4874, %v4850
      %v4876 = vsel %vm4789, %v3022, %v4873
      %v4877 = vsel %vm4789, 0, %v4875
      %v4878 = vcosq.f32.pop %v4876
      %v4879 = vsinq.f32.pop %v4876
      %vm4880 = vweird.f32 %v3022
      %v4881 = vand.u32 %v4877, 3
      %vm4882 = vcmp.lt.s32.totalorder %v4881, 2
      %vm4883 = vcmp.eq.s32.totalorder %v4881, 0
      %v4884 = vxor.u32 %v4879, 2147483648
      %v4885 = vsel %vm4883, %v4878, %v4884
      %vm4886 = vcmp.eq.s32.totalorder %v4881, 2
      %v4887 = vxor.u32 %v4878, 2147483648
      %v4888 = vsel %vm4886, %v4887, %v4879
      %v4889 = vsel %vm4882, %v4885, %v4888
      %v4890 = vsel %vm4880, nan, %v4889
      %v4891 = vand.u32 2147483647, %v3023
      %vm4892 = vcmp.le.f32.partialorder %v4891, 0.7853982
      %vm4893 = vcmp.lt.s32.totalorder %v3023, 0
      %v4894 = vand.u32 %v3023, 2139095040
      %v4895 = vshrl.u32 %v4894, 23
      %v4896 = vsub.s32 %v4895, 127
      %v4897 = vand.u32 2147483647, %v3023
      %v4898 = vand.u32 %v4897, 8388607
      %v4899 = vor.u32 %v4898, 8388608
      %v4900 = vsub.s32 0, %v4899
      %v4901 = vadd.s32 %v4896, 1
      %vm4902 = vcmp.gt.s32.totalorder %v4901, 0
      %v4903 = vsel %vm4902, %v4901, 0
      %v4904 = vshrl.u32 %v4903, 5
      %v4905 = vand.u32 %v4903, 31
      %v4906 = vsub.s32 32, %v4905
      %v4907 = vshrl.u32 683565275, %v4906
      %v4908 = vshll.u32 683565275, %v4905
      %v4909 = vshrl.u32 2475754826, %v4906
      %v4910 = vor.u32 %v4908, %v4909
      %v4911 = vshll.u32 2475754826, %v4905
      %v4912 = vshrl.u32 2131351028, %v4906
      %v4913 = vor.u32 %v4911, %v4912
      %v4914 = vshll.u32 2131351028, %v4905
      %v4915 = vshrl.u32 2102212464, %v4906
      %v4916 = vor.u32 %v4914, %v4915
      %v4917 = vshll.u32 2102212464, %v4905
      %v4918 = vshrl.u32 920167782, %v4906
      %v4919 = vor.u32 %v4917, %v4918
      %v4920 = vshll.u32 920167782, %v4905
      %v4921 = vshrl.u32 1326507024, %v4906
      %v4922 = vor.u32 %v4920, %v4921
      %vm4923 = vcmp.lt.s32.totalorder %v4904, 1
      %vm4924 = vcmp.lt.s32.totalorder %v4904, 2
      %vm4925 = vcmp.lt.s32.totalorder %v4904, 3
      %vm4926 = vcmp.lt.s32.totalorder %v4904, 4
      %v4927 = vsel %vm4923, %v4907, %v4910
      %v4928 = vsel %vm4926, %v4916, 2102212464
      %v4929 = vsel %vm4925, %v4913, %v4928
      %v4930 = vsel %vm4924, %v4927, %v4929
      %v4931 = vsel %vm4923, %v4910, %v4913
      %v4932 = vsel %vm4926, %v4919, 920167782
      %v4933 = vsel %vm4925, %v4916, %v4932
      %v4934 = vsel %vm4924, %v4931, %v4933
      %v4935 = vsel %vm4923, %v4913, %v4916
      %v4936 = vsel %vm4926, %v4922, 1326507024
      %v4937 = vsel %vm4925, %v4919, %v4936
      %v4938 = vsel %vm4924, %v4935, %v4937
      %v4939 = vshll.u32 %v4899, 8
      %v4940 = vmul.u32.u64.compose %v4939, %v4938
      %v4941 = vextract.low.u32 %v4940
      %v4942 = vextract.high.u32 %v4940
      %v4943 = vmul.u32.u64.compose %v4939, %v4934
      %v4944 = vextract.low.u32 %v4943
      %v4945 = vextract.high.u32 %v4943
      %v4946 = vmul.u32 %v4939, %v4930
      %v4947 = vadd.s32 %v4942, %v4944
      %vm4948 = vc.u32 %v4942, %v4944
      %v4949 = vadd.s32 %v4945, 1
      %v4950 = vsel %vm4948, %v4949, %v4945
      %v4951 = vadd.s32 %v4946, %v4950
      %v4952 = vadd.s32 %v4951, 536870912
      %v4953 = vshrl.u32 %v4952, 30
      %v4954 = vshll.u32 %v4953, 30
      %v4955 = vsub.s32 %v4951, %v4954
      %vm4956 = vcmp.lt.s32.totalorder %v4955, 0
      %v4957 = vsub.s32 0, %v4955
      %v4958 = vsel %vm4956, %v4957, %v4955
      %v4959 = vclz %v4958
      %v4960 = vsub.s32 %v4959, 2
      %vm4961 = vcmp.gt.s32.totalorder 0, %v4960
      %v4962 = vsel %vm4961, 0, %v4960
      %v4963 = vsub.s32 32, %v4962
      %v4964 = vshll.u32 %v4955, %v4962
      %v4965 = vshrl.u32 %v4947, %v4963
      %v4966 = vor.u32 %v4964, %v4965
      %v4967 = vsub.s32 4294967266, %v4962
      %v4968 = vadd.s32 %v4967, 127
      %v4969 = vshll.u32 %v4968, 23
      %v4970 = vor.u32 4788187, %v4969
      %v4971 = vand.u32 2147483647, %v4970
      %v4973 = vcvt.s32.f32 %v4966
      %v4974 = vmul.f32 %v4973, %v4971
      %v4975 = vxor.u32 %v4974, 2147483648
      %v4976 = vsel %vm4893, %v4975, %v4974
      %v4977 = vsub.s32 4, %v4953
      %v4978 = vsel %vm4893, %v4977, %v4953
      %v4979 = vsel %vm4892, %v3023, %v4976
      %v4980 = vsel %vm4892, 0, %v4978
      %v4981 = vcosq.f32.pop %v4979
      %v4982 = vsinq.f32.pop %v4979
      %vm4983 = vweird.f32 %v3023
      %v4984 = vand.u32 %v4980, 3
      %vm4985 = vcmp.lt.s32.totalorder %v4984, 2
      %vm4986 = vcmp.eq.s32.totalorder %v4984, 0
      %v4987 = vxor.u32 %v4982, 2147483648
      %v4988 = vsel %vm4986, %v4981, %v4987
      %vm4989 = vcmp.eq.s32.totalorder %v4984, 2
      %v4990 = vxor.u32 %v4981, 2147483648
      %v4991 = vsel %vm4989, %v4990, %v4982
      %v4992 = vsel %vm4985, %v4988, %v4991
      %v4993 = vsel %vm4983, nan, %v4992
      %v4994 = vand.u32 2147483647, %v3024
      %vm4995 = vcmp.le.f32.partialorder %v4994, 0.7853982
      %vm4996 = vcmp.lt.s32.totalorder %v3024, 0
      %v4997 = vand.u32 %v3024, 2139095040
      %v4998 = vshrl.u32 %v4997, 23
      %v4999 = vsub.s32 %v4998, 127
      %v5000 = vand.u32 2147483647, %v3024
      %v5001 = vand.u32 %v5000, 8388607
      %v5002 = vor.u32 %v5001, 8388608
      %v5003 = vsub.s32 0, %v5002
      %v5004 = vadd.s32 %v4999, 1
      %vm5005 = vcmp.gt.s32.totalorder %v5004, 0
      %v5006 = vsel %vm5005, %v5004, 0
      %v5007 = vshrl.u32 %v5006, 5
      %v5008 = vand.u32 %v5006, 31
      %v5009 = vsub.s32 32, %v5008
      %v5010 = vshrl.u32 683565275, %v5009
      %v5011 = vshll.u32 683565275, %v5008
      %v5012 = vshrl.u32 2475754826, %v5009
      %v5013 = vor.u32 %v5011, %v5012
      %v5014 = vshll.u32 2475754826, %v5008
      %v5015 = vshrl.u32 2131351028, %v5009
      %v5016 = vor.u32 %v5014, %v5015
      %v5017 = vshll.u32 2131351028, %v5008
      %v5018 = vshrl.u32 2102212464, %v5009
      %v5019 = vor.u32 %v5017, %v5018
      %v5020 = vshll.u32 2102212464, %v5008
      %v5021 = vshrl.u32 920167782, %v5009
      %v5022 = vor.u32 %v5020, %v5021
      %v5023 = vshll.u32 920167782, %v5008
      %v5024 = vshrl.u32 1326507024, %v5009
      %v5025 = vor.u32 %v5023, %v5024
      %vm5026 = vcmp.lt.s32.totalorder %v5007, 1
      %vm5027 = vcmp.lt.s32.totalorder %v5007, 2
      %vm5028 = vcmp.lt.s32.totalorder %v5007, 3
      %vm5029 = vcmp.lt.s32.totalorder %v5007, 4
      %v5030 = vsel %vm5026, %v5010, %v5013
      %v5031 = vsel %vm5029, %v5019, 2102212464
      %v5032 = vsel %vm5028, %v5016, %v5031
      %v5033 = vsel %vm5027, %v5030, %v5032
      %v5034 = vsel %vm5026, %v5013, %v5016
      %v5035 = vsel %vm5029, %v5022, 920167782
      %v5036 = vsel %vm5028, %v5019, %v5035
      %v5037 = vsel %vm5027, %v5034, %v5036
      %v5038 = vsel %vm5026, %v5016, %v5019
      %v5039 = vsel %vm5029, %v5025, 1326507024
      %v5040 = vsel %vm5028, %v5022, %v5039
      %v5041 = vsel %vm5027, %v5038, %v5040
      %v5042 = vshll.u32 %v5002, 8
      %v5043 = vmul.u32.u64.compose %v5042, %v5041
      %v5044 = vextract.low.u32 %v5043
      %v5045 = vextract.high.u32 %v5043
      %v5046 = vmul.u32.u64.compose %v5042, %v5037
      %v5047 = vextract.low.u32 %v5046
      %v5048 = vextract.high.u32 %v5046
      %v5049 = vmul.u32 %v5042, %v5033
      %v5050 = vadd.s32 %v5045, %v5047
      %vm5051 = vc.u32 %v5045, %v5047
      %v5052 = vadd.s32 %v5048, 1
      %v5053 = vsel %vm5051, %v5052, %v5048
      %v5054 = vadd.s32 %v5049, %v5053
      %v5055 = vadd.s32 %v5054, 536870912
      %v5056 = vshrl.u32 %v5055, 30
      %v5057 = vshll.u32 %v5056, 30
      %v5058 = vsub.s32 %v5054, %v5057
      %vm5059 = vcmp.lt.s32.totalorder %v5058, 0
      %v5060 = vsub.s32 0, %v5058
      %v5061 = vsel %vm5059, %v5060, %v5058
      %v5062 = vclz %v5061
      %v5063 = vsub.s32 %v5062, 2
      %vm5064 = vcmp.gt.s32.totalorder 0, %v5063
      %v5065 = vsel %vm5064, 0, %v5063
      %v5066 = vsub.s32 32, %v5065
      %v5067 = vshll.u32 %v5058, %v5065
      %v5068 = vshrl.u32 %v5050, %v5066
      %v5069 = vor.u32 %v5067, %v5068
      %v5070 = vsub.s32 4294967266, %v5065
      %v5071 = vadd.s32 %v5070, 127
      %v5072 = vshll.u32 %v5071, 23
      %v5073 = vor.u32 4788187, %v5072
      %v5074 = vand.u32 2147483647, %v5073
      %v5076 = vcvt.s32.f32 %v5069
      %v5077 = vmul.f32 %v5076, %v5074
      %v5078 = vxor.u32 %v5077, 2147483648
      %v5079 = vsel %vm4996, %v5078, %v5077
      %v5080 = vsub.s32 4, %v5056
      %v5081 = vsel %vm4996, %v5080, %v5056
      %v5082 = vsel %vm4995, %v3024, %v5079
      %v5083 = vsel %vm4995, 0, %v5081
      %v5084 = vcosq.f32.pop %v5082
      %v5085 = vsinq.f32.pop %v5082
      %vm5086 = vweird.f32 %v3024
      %v5087 = vand.u32 %v5083, 3
      %vm5088 = vcmp.lt.s32.totalorder %v5087, 2
      %vm5089 = vcmp.eq.s32.totalorder %v5087, 0
      %v5090 = vxor.u32 %v5085, 2147483648
      %v5091 = vsel %vm5089, %v5084, %v5090
      %vm5092 = vcmp.eq.s32.totalorder %v5087, 2
      %v5093 = vxor.u32 %v5084, 2147483648
      %v5094 = vsel %vm5092, %v5093, %v5085
      %v5095 = vsel %vm5088, %v5091, %v5094
      %v5096 = vsel %vm5086, nan, %v5095
      %v5097 = vand.u32 2147483647, %v3025
      %vm5098 = vcmp.le.f32.partialorder %v5097, 0.7853982
      %vm5099 = vcmp.lt.s32.totalorder %v3025, 0
      %v5100 = vand.u32 %v3025, 2139095040
      %v5101 = vshrl.u32 %v5100, 23
      %v5102 = vsub.s32 %v5101, 127
      %v5103 = vand.u32 2147483647, %v3025
      %v5104 = vand.u32 %v5103, 8388607
      %v5105 = vor.u32 %v5104, 8388608
      %v5106 = vsub.s32 0, %v5105
      %v5107 = vadd.s32 %v5102, 1
      %vm5108 = vcmp.gt.s32.totalorder %v5107, 0
      %v5109 = vsel %vm5108, %v5107, 0
      %v5110 = vshrl.u32 %v5109, 5
      %v5111 = vand.u32 %v5109, 31
      %v5112 = vsub.s32 32, %v5111
      %v5113 = vshrl.u32 683565275, %v5112
      %v5114 = vshll.u32 683565275, %v5111
      %v5115 = vshrl.u32 2475754826, %v5112
      %v5116 = vor.u32 %v5114, %v5115
      %v5117 = vshll.u32 2475754826, %v5111
      %v5118 = vshrl.u32 2131351028, %v5112
      %v5119 = vor.u32 %v5117, %v5118
      %v5120 = vshll.u32 2131351028, %v5111
      %v5121 = vshrl.u32 2102212464, %v5112
      %v5122 = vor.u32 %v5120, %v5121
      %v5123 = vshll.u32 2102212464, %v5111
      %v5124 = vshrl.u32 920167782, %v5112
      %v5125 = vor.u32 %v5123, %v5124
      %v5126 = vshll.u32 920167782, %v5111
      %v5127 = vshrl.u32 1326507024, %v5112
      %v5128 = vor.u32 %v5126, %v5127
      %vm5129 = vcmp.lt.s32.totalorder %v5110, 1
      %vm5130 = vcmp.lt.s32.totalorder %v5110, 2
      %vm5131 = vcmp.lt.s32.totalorder %v5110, 3
      %vm5132 = vcmp.lt.s32.totalorder %v5110, 4
      %v5133 = vsel %vm5129, %v5113, %v5116
      %v5134 = vsel %vm5132, %v5122, 2102212464
      %v5135 = vsel %vm5131, %v5119, %v5134
      %v5136 = vsel %vm5130, %v5133, %v5135
      %v5137 = vsel %vm5129, %v5116, %v5119
      %v5138 = vsel %vm5132, %v5125, 920167782
      %v5139 = vsel %vm5131, %v5122, %v5138
      %v5140 = vsel %vm5130, %v5137, %v5139
      %v5141 = vsel %vm5129, %v5119, %v5122
      %v5142 = vsel %vm5132, %v5128, 1326507024
      %v5143 = vsel %vm5131, %v5125, %v5142
      %v5144 = vsel %vm5130, %v5141, %v5143
      %v5145 = vshll.u32 %v5105, 8
      %v5146 = vmul.u32.u64.compose %v5145, %v5144
      %v5147 = vextract.low.u32 %v5146
      %v5148 = vextract.high.u32 %v5146
      %v5149 = vmul.u32.u64.compose %v5145, %v5140
      %v5150 = vextract.low.u32 %v5149
      %v5151 = vextract.high.u32 %v5149
      %v5152 = vmul.u32 %v5145, %v5136
      %v5153 = vadd.s32 %v5148, %v5150
      %vm5154 = vc.u32 %v5148, %v5150
      %v5155 = vadd.s32 %v5151, 1
      %v5156 = vsel %vm5154, %v5155, %v5151
      %v5157 = vadd.s32 %v5152, %v5156
      %v5158 = vadd.s32 %v5157, 536870912
      %v5159 = vshrl.u32 %v5158, 30
      %v5160 = vshll.u32 %v5159, 30
      %v5161 = vsub.s32 %v5157, %v5160
      %vm5162 = vcmp.lt.s32.totalorder %v5161, 0
      %v5163 = vsub.s32 0, %v5161
      %v5164 = vsel %vm5162, %v5163, %v5161
      %v5165 = vclz %v5164
      %v5166 = vsub.s32 %v5165, 2
      %vm5167 = vcmp.gt.s32.totalorder 0, %v5166
      %v5168 = vsel %vm5167, 0, %v5166
      %v5169 = vsub.s32 32, %v5168
      %v5170 = vshll.u32 %v5161, %v5168
      %v5171 = vshrl.u32 %v5153, %v5169
      %v5172 = vor.u32 %v5170, %v5171
      %v5173 = vsub.s32 4294967266, %v5168
      %v5174 = vadd.s32 %v5173, 127
      %v5175 = vshll.u32 %v5174, 23
      %v5176 = vor.u32 4788187, %v5175
      %v5177 = vand.u32 2147483647, %v5176
      %v5179 = vcvt.s32.f32 %v5172
      %v5180 = vmul.f32 %v5179, %v5177
      %v5181 = vxor.u32 %v5180, 2147483648
      %v5182 = vsel %vm5099, %v5181, %v5180
      %v5183 = vsub.s32 4, %v5159
      %v5184 = vsel %vm5099, %v5183, %v5159
      %v5185 = vsel %vm5098, %v3025, %v5182
      %v5186 = vsel %vm5098, 0, %v5184
      %v5187 = vcosq.f32.pop %v5185
      %v5188 = vsinq.f32.pop %v5185
      %vm5189 = vweird.f32 %v3025
      %v5190 = vand.u32 %v5186, 3
      %vm5191 = vcmp.lt.s32.totalorder %v5190, 2
      %vm5192 = vcmp.eq.s32.totalorder %v5190, 0
      %v5193 = vxor.u32 %v5188, 2147483648
      %v5194 = vsel %vm5192, %v5187, %v5193
      %vm5195 = vcmp.eq.s32.totalorder %v5190, 2
      %v5196 = vxor.u32 %v5187, 2147483648
      %v5197 = vsel %vm5195, %v5196, %v5188
      %v5198 = vsel %vm5191, %v5194, %v5197
      %v5199 = vsel %vm5189, nan, %v5198
      %v5200 = vand.u32 2147483647, %v3026
      %vm5201 = vcmp.le.f32.partialorder %v5200, 0.7853982
      %vm5202 = vcmp.lt.s32.totalorder %v3026, 0
      %v5203 = vand.u32 %v3026, 2139095040
      %v5204 = vshrl.u32 %v5203, 23
      %v5205 = vsub.s32 %v5204, 127
      %v5206 = vand.u32 2147483647, %v3026
      %v5207 = vand.u32 %v5206, 8388607
      %v5208 = vor.u32 %v5207, 8388608
      %v5209 = vsub.s32 0, %v5208
      %v5210 = vadd.s32 %v5205, 1
      %vm5211 = vcmp.gt.s32.totalorder %v5210, 0
      %v5212 = vsel %vm5211, %v5210, 0
      %v5213 = vshrl.u32 %v5212, 5
      %v5214 = vand.u32 %v5212, 31
      %v5215 = vsub.s32 32, %v5214
      %v5216 = vshrl.u32 683565275, %v5215
      %v5217 = vshll.u32 683565275, %v5214
      %v5218 = vshrl.u32 2475754826, %v5215
      %v5219 = vor.u32 %v5217, %v5218
      %v5220 = vshll.u32 2475754826, %v5214
      %v5221 = vshrl.u32 2131351028, %v5215
      %v5222 = vor.u32 %v5220, %v5221
      %v5223 = vshll.u32 2131351028, %v5214
      %v5224 = vshrl.u32 2102212464, %v5215
      %v5225 = vor.u32 %v5223, %v5224
      %v5226 = vshll.u32 2102212464, %v5214
      %v5227 = vshrl.u32 920167782, %v5215
      %v5228 = vor.u32 %v5226, %v5227
      %v5229 = vshll.u32 920167782, %v5214
      %v5230 = vshrl.u32 1326507024, %v5215
      %v5231 = vor.u32 %v5229, %v5230
      %vm5232 = vcmp.lt.s32.totalorder %v5213, 1
      %vm5233 = vcmp.lt.s32.totalorder %v5213, 2
      %vm5234 = vcmp.lt.s32.totalorder %v5213, 3
      %vm5235 = vcmp.lt.s32.totalorder %v5213, 4
      %v5236 = vsel %vm5232, %v5216, %v5219
      %v5237 = vsel %vm5235, %v5225, 2102212464
      %v5238 = vsel %vm5234, %v5222, %v5237
      %v5239 = vsel %vm5233, %v5236, %v5238
      %v5240 = vsel %vm5232, %v5219, %v5222
      %v5241 = vsel %vm5235, %v5228, 920167782
      %v5242 = vsel %vm5234, %v5225, %v5241
      %v5243 = vsel %vm5233, %v5240, %v5242
      %v5244 = vsel %vm5232, %v5222, %v5225
      %v5245 = vsel %vm5235, %v5231, 1326507024
      %v5246 = vsel %vm5234, %v5228, %v5245
      %v5247 = vsel %vm5233, %v5244, %v5246
      %v5248 = vshll.u32 %v5208, 8
      %v5249 = vmul.u32.u64.compose %v5248, %v5247
      %v5250 = vextract.low.u32 %v5249
      %v5251 = vextract.high.u32 %v5249
      %v5252 = vmul.u32.u64.compose %v5248, %v5243
      %v5253 = vextract.low.u32 %v5252
      %v5254 = vextract.high.u32 %v5252
      %v5255 = vmul.u32 %v5248, %v5239
      %v5256 = vadd.s32 %v5251, %v5253
      %vm5257 = vc.u32 %v5251, %v5253
      %v5258 = vadd.s32 %v5254, 1
      %v5259 = vsel %vm5257, %v5258, %v5254
      %v5260 = vadd.s32 %v5255, %v5259
      %v5261 = vadd.s32 %v5260, 536870912
      %v5262 = vshrl.u32 %v5261, 30
      %v5263 = vshll.u32 %v5262, 30
      %v5264 = vsub.s32 %v5260, %v5263
      %vm5265 = vcmp.lt.s32.totalorder %v5264, 0
      %v5266 = vsub.s32 0, %v5264
      %v5267 = vsel %vm5265, %v5266, %v5264
      %v5268 = vclz %v5267
      %v5269 = vsub.s32 %v5268, 2
      %vm5270 = vcmp.gt.s32.totalorder 0, %v5269
      %v5271 = vsel %vm5270, 0, %v5269
      %v5272 = vsub.s32 32, %v5271
      %v5273 = vshll.u32 %v5264, %v5271
      %v5274 = vshrl.u32 %v5256, %v5272
      %v5275 = vor.u32 %v5273, %v5274
      %v5276 = vsub.s32 4294967266, %v5271
      %v5277 = vadd.s32 %v5276, 127
      %v5278 = vshll.u32 %v5277, 23
      %v5279 = vor.u32 4788187, %v5278
      %v5280 = vand.u32 2147483647, %v5279
      %v5282 = vcvt.s32.f32 %v5275
      %v5283 = vmul.f32 %v5282, %v5280
      %v5284 = vxor.u32 %v5283, 2147483648
      %v5285 = vsel %vm5202, %v5284, %v5283
      %v5286 = vsub.s32 4, %v5262
      %v5287 = vsel %vm5202, %v5286, %v5262
      %v5288 = vsel %vm5201, %v3026, %v5285
      %v5289 = vsel %vm5201, 0, %v5287
      %v5290 = vcosq.f32.pop %v5288
      %v5291 = vsinq.f32.pop %v5288
      %vm5292 = vweird.f32 %v3026
      %v5293 = vand.u32 %v5289, 3
      %vm5294 = vcmp.lt.s32.totalorder %v5293, 2
      %vm5295 = vcmp.eq.s32.totalorder %v5293, 0
      %v5296 = vxor.u32 %v5291, 2147483648
      %v5297 = vsel %vm5295, %v5290, %v5296
      %vm5298 = vcmp.eq.s32.totalorder %v5293, 2
      %v5299 = vxor.u32 %v5290, 2147483648
      %v5300 = vsel %vm5298, %v5299, %v5291
      %v5301 = vsel %vm5294, %v5297, %v5300
      %v5302 = vsel %vm5292, nan, %v5301
      %v5303 = vand.u32 2147483647, %v3027
      %vm5304 = vcmp.le.f32.partialorder %v5303, 0.7853982
      %vm5305 = vcmp.lt.s32.totalorder %v3027, 0
      %v5306 = vand.u32 %v3027, 2139095040
      %v5307 = vshrl.u32 %v5306, 23
      %v5308 = vsub.s32 %v5307, 127
      %v5309 = vand.u32 2147483647, %v3027
      %v5310 = vand.u32 %v5309, 8388607
      %v5311 = vor.u32 %v5310, 8388608
      %v5312 = vsub.s32 0, %v5311
      %v5313 = vadd.s32 %v5308, 1
      %vm5314 = vcmp.gt.s32.totalorder %v5313, 0
      %v5315 = vsel %vm5314, %v5313, 0
      %v5316 = vshrl.u32 %v5315, 5
      %v5317 = vand.u32 %v5315, 31
      %v5318 = vsub.s32 32, %v5317
      %v5319 = vshrl.u32 683565275, %v5318
      %v5320 = vshll.u32 683565275, %v5317
      %v5321 = vshrl.u32 2475754826, %v5318
      %v5322 = vor.u32 %v5320, %v5321
      %v5323 = vshll.u32 2475754826, %v5317
      %v5324 = vshrl.u32 2131351028, %v5318
      %v5325 = vor.u32 %v5323, %v5324
      %v5326 = vshll.u32 2131351028, %v5317
      %v5327 = vshrl.u32 2102212464, %v5318
      %v5328 = vor.u32 %v5326, %v5327
      %v5329 = vshll.u32 2102212464, %v5317
      %v5330 = vshrl.u32 920167782, %v5318
      %v5331 = vor.u32 %v5329, %v5330
      %v5332 = vshll.u32 920167782, %v5317
      %v5333 = vshrl.u32 1326507024, %v5318
      %v5334 = vor.u32 %v5332, %v5333
      %vm5335 = vcmp.lt.s32.totalorder %v5316, 1
      %vm5336 = vcmp.lt.s32.totalorder %v5316, 2
      %vm5337 = vcmp.lt.s32.totalorder %v5316, 3
      %vm5338 = vcmp.lt.s32.totalorder %v5316, 4
      %v5339 = vsel %vm5335, %v5319, %v5322
      %v5340 = vsel %vm5338, %v5328, 2102212464
      %v5341 = vsel %vm5337, %v5325, %v5340
      %v5342 = vsel %vm5336, %v5339, %v5341
      %v5343 = vsel %vm5335, %v5322, %v5325
      %v5344 = vsel %vm5338, %v5331, 920167782
      %v5345 = vsel %vm5337, %v5328, %v5344
      %v5346 = vsel %vm5336, %v5343, %v5345
      %v5347 = vsel %vm5335, %v5325, %v5328
      %v5348 = vsel %vm5338, %v5334, 1326507024
      %v5349 = vsel %vm5337, %v5331, %v5348
      %v5350 = vsel %vm5336, %v5347, %v5349
      %v5351 = vshll.u32 %v5311, 8
      %v5352 = vmul.u32.u64.compose %v5351, %v5350
      %v5353 = vextract.low.u32 %v5352
      %v5354 = vextract.high.u32 %v5352
      %v5355 = vmul.u32.u64.compose %v5351, %v5346
      %v5356 = vextract.low.u32 %v5355
      %v5357 = vextract.high.u32 %v5355
      %v5358 = vmul.u32 %v5351, %v5342
      %v5359 = vadd.s32 %v5354, %v5356
      %vm5360 = vc.u32 %v5354, %v5356
      %v5361 = vadd.s32 %v5357, 1
      %v5362 = vsel %vm5360, %v5361, %v5357
      %v5363 = vadd.s32 %v5358, %v5362
      %v5364 = vadd.s32 %v5363, 536870912
      %v5365 = vshrl.u32 %v5364, 30
      %v5366 = vshll.u32 %v5365, 30
      %v5367 = vsub.s32 %v5363, %v5366
      %vm5368 = vcmp.lt.s32.totalorder %v5367, 0
      %v5369 = vsub.s32 0, %v5367
      %v5370 = vsel %vm5368, %v5369, %v5367
      %v5371 = vclz %v5370
      %v5372 = vsub.s32 %v5371, 2
      %vm5373 = vcmp.gt.s32.totalorder 0, %v5372
      %v5374 = vsel %vm5373, 0, %v5372
      %v5375 = vsub.s32 32, %v5374
      %v5376 = vshll.u32 %v5367, %v5374
      %v5377 = vshrl.u32 %v5359, %v5375
      %v5378 = vor.u32 %v5376, %v5377
      %v5379 = vsub.s32 4294967266, %v5374
      %v5380 = vadd.s32 %v5379, 127
      %v5381 = vshll.u32 %v5380, 23
      %v5382 = vor.u32 4788187, %v5381
      %v5383 = vand.u32 2147483647, %v5382
      %v5385 = vcvt.s32.f32 %v5378
      %v5386 = vmul.f32 %v5385, %v5383
      %v5387 = vxor.u32 %v5386, 2147483648
      %v5388 = vsel %vm5305, %v5387, %v5386
      %v5389 = vsub.s32 4, %v5365
      %v5390 = vsel %vm5305, %v5389, %v5365
      %v5391 = vsel %vm5304, %v3027, %v5388
      %v5392 = vsel %vm5304, 0, %v5390
      %v5393 = vcosq.f32.pop %v5391
      %v5394 = vsinq.f32.pop %v5391
      %vm5395 = vweird.f32 %v3027
      %v5396 = vand.u32 %v5392, 3
      %vm5397 = vcmp.lt.s32.totalorder %v5396, 2
      %vm5398 = vcmp.eq.s32.totalorder %v5396, 0
      %v5399 = vxor.u32 %v5394, 2147483648
      %v5400 = vsel %vm5398, %v5393, %v5399
      %vm5401 = vcmp.eq.s32.totalorder %v5396, 2
      %v5402 = vxor.u32 %v5393, 2147483648
      %v5403 = vsel %vm5401, %v5402, %v5394
      %v5404 = vsel %vm5397, %v5400, %v5403
      %v5405 = vsel %vm5395, nan, %v5404
      %v5406 = vand.u32 2147483647, %v3028
      %vm5407 = vcmp.le.f32.partialorder %v5406, 0.7853982
      %vm5408 = vcmp.lt.s32.totalorder %v3028, 0
      %v5409 = vand.u32 %v3028, 2139095040
      %v5410 = vshrl.u32 %v5409, 23
      %v5411 = vsub.s32 %v5410, 127
      %v5412 = vand.u32 2147483647, %v3028
      %v5413 = vand.u32 %v5412, 8388607
      %v5414 = vor.u32 %v5413, 8388608
      %v5415 = vsub.s32 0, %v5414
      %v5416 = vadd.s32 %v5411, 1
      %vm5417 = vcmp.gt.s32.totalorder %v5416, 0
      %v5418 = vsel %vm5417, %v5416, 0
      %v5419 = vshrl.u32 %v5418, 5
      %v5420 = vand.u32 %v5418, 31
      %v5421 = vsub.s32 32, %v5420
      %v5422 = vshrl.u32 683565275, %v5421
      %v5423 = vshll.u32 683565275, %v5420
      %v5424 = vshrl.u32 2475754826, %v5421
      %v5425 = vor.u32 %v5423, %v5424
      %v5426 = vshll.u32 2475754826, %v5420
      %v5427 = vshrl.u32 2131351028, %v5421
      %v5428 = vor.u32 %v5426, %v5427
      %v5429 = vshll.u32 2131351028, %v5420
      %v5430 = vshrl.u32 2102212464, %v5421
      %v5431 = vor.u32 %v5429, %v5430
      %v5432 = vshll.u32 2102212464, %v5420
      %v5433 = vshrl.u32 920167782, %v5421
      %v5434 = vor.u32 %v5432, %v5433
      %v5435 = vshll.u32 920167782, %v5420
      %v5436 = vshrl.u32 1326507024, %v5421
      %v5437 = vor.u32 %v5435, %v5436
      %vm5438 = vcmp.lt.s32.totalorder %v5419, 1
      %vm5439 = vcmp.lt.s32.totalorder %v5419, 2
      %vm5440 = vcmp.lt.s32.totalorder %v5419, 3
      %vm5441 = vcmp.lt.s32.totalorder %v5419, 4
      %v5442 = vsel %vm5438, %v5422, %v5425
      %v5443 = vsel %vm5441, %v5431, 2102212464
      %v5444 = vsel %vm5440, %v5428, %v5443
      %v5445 = vsel %vm5439, %v5442, %v5444
      %v5446 = vsel %vm5438, %v5425, %v5428
      %v5447 = vsel %vm5441, %v5434, 920167782
      %v5448 = vsel %vm5440, %v5431, %v5447
      %v5449 = vsel %vm5439, %v5446, %v5448
      %v5450 = vsel %vm5438, %v5428, %v5431
      %v5451 = vsel %vm5441, %v5437, 1326507024
      %v5452 = vsel %vm5440, %v5434, %v5451
      %v5453 = vsel %vm5439, %v5450, %v5452
      %v5454 = vshll.u32 %v5414, 8
      %v5455 = vmul.u32.u64.compose %v5454, %v5453
      %v5456 = vextract.low.u32 %v5455
      %v5457 = vextract.high.u32 %v5455
      %v5458 = vmul.u32.u64.compose %v5454, %v5449
      %v5459 = vextract.low.u32 %v5458
      %v5460 = vextract.high.u32 %v5458
      %v5461 = vmul.u32 %v5454, %v5445
      %v5462 = vadd.s32 %v5457, %v5459
      %vm5463 = vc.u32 %v5457, %v5459
      %v5464 = vadd.s32 %v5460, 1
      %v5465 = vsel %vm5463, %v5464, %v5460
      %v5466 = vadd.s32 %v5461, %v5465
      %v5467 = vadd.s32 %v5466, 536870912
      %v5468 = vshrl.u32 %v5467, 30
      %v5469 = vshll.u32 %v5468, 30
      %v5470 = vsub.s32 %v5466, %v5469
      %vm5471 = vcmp.lt.s32.totalorder %v5470, 0
      %v5472 = vsub.s32 0, %v5470
      %v5473 = vsel %vm5471, %v5472, %v5470
      %v5474 = vclz %v5473
      %v5475 = vsub.s32 %v5474, 2
      %vm5476 = vcmp.gt.s32.totalorder 0, %v5475
      %v5477 = vsel %vm5476, 0, %v5475
      %v5478 = vsub.s32 32, %v5477
      %v5479 = vshll.u32 %v5470, %v5477
      %v5480 = vshrl.u32 %v5462, %v5478
      %v5481 = vor.u32 %v5479, %v5480
      %v5482 = vsub.s32 4294967266, %v5477
      %v5483 = vadd.s32 %v5482, 127
      %v5484 = vshll.u32 %v5483, 23
      %v5485 = vor.u32 4788187, %v5484
      %v5486 = vand.u32 2147483647, %v5485
      %v5488 = vcvt.s32.f32 %v5481
      %v5489 = vmul.f32 %v5488, %v5486
      %v5490 = vxor.u32 %v5489, 2147483648
      %v5491 = vsel %vm5408, %v5490, %v5489
      %v5492 = vsub.s32 4, %v5468
      %v5493 = vsel %vm5408, %v5492, %v5468
      %v5494 = vsel %vm5407, %v3028, %v5491
      %v5495 = vsel %vm5407, 0, %v5493
      %v5496 = vcosq.f32.pop %v5494
      %v5497 = vsinq.f32.pop %v5494
      %vm5498 = vweird.f32 %v3028
      %v5499 = vand.u32 %v5495, 3
      %vm5500 = vcmp.lt.s32.totalorder %v5499, 2
      %vm5501 = vcmp.eq.s32.totalorder %v5499, 0
      %v5502 = vxor.u32 %v5497, 2147483648
      %v5503 = vsel %vm5501, %v5496, %v5502
      %vm5504 = vcmp.eq.s32.totalorder %v5499, 2
      %v5505 = vxor.u32 %v5496, 2147483648
      %v5506 = vsel %vm5504, %v5505, %v5497
      %v5507 = vsel %vm5500, %v5503, %v5506
      %v5508 = vsel %vm5498, nan, %v5507
      %v5509 = vand.u32 2147483647, %v3029
      %vm5510 = vcmp.le.f32.partialorder %v5509, 0.7853982
      %vm5511 = vcmp.lt.s32.totalorder %v3029, 0
      %v5512 = vand.u32 %v3029, 2139095040
      %v5513 = vshrl.u32 %v5512, 23
      %v5514 = vsub.s32 %v5513, 127
      %v5515 = vand.u32 2147483647, %v3029
      %v5516 = vand.u32 %v5515, 8388607
      %v5517 = vor.u32 %v5516, 8388608
      %v5518 = vsub.s32 0, %v5517
      %v5519 = vadd.s32 %v5514, 1
      %vm5520 = vcmp.gt.s32.totalorder %v5519, 0
      %v5521 = vsel %vm5520, %v5519, 0
      %v5522 = vshrl.u32 %v5521, 5
      %v5523 = vand.u32 %v5521, 31
      %v5524 = vsub.s32 32, %v5523
      %v5525 = vshrl.u32 683565275, %v5524
      %v5526 = vshll.u32 683565275, %v5523
      %v5527 = vshrl.u32 2475754826, %v5524
      %v5528 = vor.u32 %v5526, %v5527
      %v5529 = vshll.u32 2475754826, %v5523
      %v5530 = vshrl.u32 2131351028, %v5524
      %v5531 = vor.u32 %v5529, %v5530
      %v5532 = vshll.u32 2131351028, %v5523
      %v5533 = vshrl.u32 2102212464, %v5524
      %v5534 = vor.u32 %v5532, %v5533
      %v5535 = vshll.u32 2102212464, %v5523
      %v5536 = vshrl.u32 920167782, %v5524
      %v5537 = vor.u32 %v5535, %v5536
      %v5538 = vshll.u32 920167782, %v5523
      %v5539 = vshrl.u32 1326507024, %v5524
      %v5540 = vor.u32 %v5538, %v5539
      %vm5541 = vcmp.lt.s32.totalorder %v5522, 1
      %vm5542 = vcmp.lt.s32.totalorder %v5522, 2
      %vm5543 = vcmp.lt.s32.totalorder %v5522, 3
      %vm5544 = vcmp.lt.s32.totalorder %v5522, 4
      %v5545 = vsel %vm5541, %v5525, %v5528
      %v5546 = vsel %vm5544, %v5534, 2102212464
      %v5547 = vsel %vm5543, %v5531, %v5546
      %v5548 = vsel %vm5542, %v5545, %v5547
      %v5549 = vsel %vm5541, %v5528, %v5531
      %v5550 = vsel %vm5544, %v5537, 920167782
      %v5551 = vsel %vm5543, %v5534, %v5550
      %v5552 = vsel %vm5542, %v5549, %v5551
      %v5553 = vsel %vm5541, %v5531, %v5534
      %v5554 = vsel %vm5544, %v5540, 1326507024
      %v5555 = vsel %vm5543, %v5537, %v5554
      %v5556 = vsel %vm5542, %v5553, %v5555
      %v5557 = vshll.u32 %v5517, 8
      %v5558 = vmul.u32.u64.compose %v5557, %v5556
      %v5559 = vextract.low.u32 %v5558
      %v5560 = vextract.high.u32 %v5558
      %v5561 = vmul.u32.u64.compose %v5557, %v5552
      %v5562 = vextract.low.u32 %v5561
      %v5563 = vextract.high.u32 %v5561
      %v5564 = vmul.u32 %v5557, %v5548
      %v5565 = vadd.s32 %v5560, %v5562
      %vm5566 = vc.u32 %v5560, %v5562
      %v5567 = vadd.s32 %v5563, 1
      %v5568 = vsel %vm5566, %v5567, %v5563
      %v5569 = vadd.s32 %v5564, %v5568
      %v5570 = vadd.s32 %v5569, 536870912
      %v5571 = vshrl.u32 %v5570, 30
      %v5572 = vshll.u32 %v5571, 30
      %v5573 = vsub.s32 %v5569, %v5572
      %vm5574 = vcmp.lt.s32.totalorder %v5573, 0
      %v5575 = vsub.s32 0, %v5573
      %v5576 = vsel %vm5574, %v5575, %v5573
      %v5577 = vclz %v5576
      %v5578 = vsub.s32 %v5577, 2
      %vm5579 = vcmp.gt.s32.totalorder 0, %v5578
      %v5580 = vsel %vm5579, 0, %v5578
      %v5581 = vsub.s32 32, %v5580
      %v5582 = vshll.u32 %v5573, %v5580
      %v5583 = vshrl.u32 %v5565, %v5581
      %v5584 = vor.u32 %v5582, %v5583
      %v5585 = vsub.s32 4294967266, %v5580
      %v5586 = vadd.s32 %v5585, 127
      %v5587 = vshll.u32 %v5586, 23
      %v5588 = vor.u32 4788187, %v5587
      %v5589 = vand.u32 2147483647, %v5588
      %v5591 = vcvt.s32.f32 %v5584
      %v5592 = vmul.f32 %v5591, %v5589
      %v5593 = vxor.u32 %v5592, 2147483648
      %v5594 = vsel %vm5511, %v5593, %v5592
      %v5595 = vsub.s32 4, %v5571
      %v5596 = vsel %vm5511, %v5595, %v5571
      %v5597 = vsel %vm5510, %v3029, %v5594
      %v5598 = vsel %vm5510, 0, %v5596
      %v5599 = vcosq.f32.pop %v5597
      %v5600 = vsinq.f32.pop %v5597
      %vm5601 = vweird.f32 %v3029
      %v5602 = vand.u32 %v5598, 3
      %vm5603 = vcmp.lt.s32.totalorder %v5602, 2
      %vm5604 = vcmp.eq.s32.totalorder %v5602, 0
      %v5605 = vxor.u32 %v5600, 2147483648
      %v5606 = vsel %vm5604, %v5599, %v5605
      %vm5607 = vcmp.eq.s32.totalorder %v5602, 2
      %v5608 = vxor.u32 %v5599, 2147483648
      %v5609 = vsel %vm5607, %v5608, %v5600
      %v5610 = vsel %vm5603, %v5606, %v5609
      %v5611 = vsel %vm5601, nan, %v5610
      %v5612 = vand.u32 2147483647, %v3030
      %vm5613 = vcmp.le.f32.partialorder %v5612, 0.7853982
      %vm5614 = vcmp.lt.s32.totalorder %v3030, 0
      %v5615 = vand.u32 %v3030, 2139095040
      %v5616 = vshrl.u32 %v5615, 23
      %v5617 = vsub.s32 %v5616, 127
      %v5618 = vand.u32 2147483647, %v3030
      %v5619 = vand.u32 %v5618, 8388607
      %v5620 = vor.u32 %v5619, 8388608
      %v5621 = vsub.s32 0, %v5620
      %v5622 = vadd.s32 %v5617, 1
      %vm5623 = vcmp.gt.s32.totalorder %v5622, 0
      %v5624 = vsel %vm5623, %v5622, 0
      %v5625 = vshrl.u32 %v5624, 5
      %v5626 = vand.u32 %v5624, 31
      %v5627 = vsub.s32 32, %v5626
      %v5628 = vshrl.u32 683565275, %v5627
      %v5629 = vshll.u32 683565275, %v5626
      %v5630 = vshrl.u32 2475754826, %v5627
      %v5631 = vor.u32 %v5629, %v5630
      %v5632 = vshll.u32 2475754826, %v5626
      %v5633 = vshrl.u32 2131351028, %v5627
      %v5634 = vor.u32 %v5632, %v5633
      %v5635 = vshll.u32 2131351028, %v5626
      %v5636 = vshrl.u32 2102212464, %v5627
      %v5637 = vor.u32 %v5635, %v5636
      %v5638 = vshll.u32 2102212464, %v5626
      %v5639 = vshrl.u32 920167782, %v5627
      %v5640 = vor.u32 %v5638, %v5639
      %v5641 = vshll.u32 920167782, %v5626
      %v5642 = vshrl.u32 1326507024, %v5627
      %v5643 = vor.u32 %v5641, %v5642
      %vm5644 = vcmp.lt.s32.totalorder %v5625, 1
      %vm5645 = vcmp.lt.s32.totalorder %v5625, 2
      %vm5646 = vcmp.lt.s32.totalorder %v5625, 3
      %vm5647 = vcmp.lt.s32.totalorder %v5625, 4
      %v5648 = vsel %vm5644, %v5628, %v5631
      %v5649 = vsel %vm5647, %v5637, 2102212464
      %v5650 = vsel %vm5646, %v5634, %v5649
      %v5651 = vsel %vm5645, %v5648, %v5650
      %v5652 = vsel %vm5644, %v5631, %v5634
      %v5653 = vsel %vm5647, %v5640, 920167782
      %v5654 = vsel %vm5646, %v5637, %v5653
      %v5655 = vsel %vm5645, %v5652, %v5654
      %v5656 = vsel %vm5644, %v5634, %v5637
      %v5657 = vsel %vm5647, %v5643, 1326507024
      %v5658 = vsel %vm5646, %v5640, %v5657
      %v5659 = vsel %vm5645, %v5656, %v5658
      %v5660 = vshll.u32 %v5620, 8
      %v5661 = vmul.u32.u64.compose %v5660, %v5659
      %v5662 = vextract.low.u32 %v5661
      %v5663 = vextract.high.u32 %v5661
      %v5664 = vmul.u32.u64.compose %v5660, %v5655
      %v5665 = vextract.low.u32 %v5664
      %v5666 = vextract.high.u32 %v5664
      %v5667 = vmul.u32 %v5660, %v5651
      %v5668 = vadd.s32 %v5663, %v5665
      %vm5669 = vc.u32 %v5663, %v5665
      %v5670 = vadd.s32 %v5666, 1
      %v5671 = vsel %vm5669, %v5670, %v5666
      %v5672 = vadd.s32 %v5667, %v5671
      %v5673 = vadd.s32 %v5672, 536870912
      %v5674 = vshrl.u32 %v5673, 30
      %v5675 = vshll.u32 %v5674, 30
      %v5676 = vsub.s32 %v5672, %v5675
      %vm5677 = vcmp.lt.s32.totalorder %v5676, 0
      %v5678 = vsub.s32 0, %v5676
      %v5679 = vsel %vm5677, %v5678, %v5676
      %v5680 = vclz %v5679
      %v5681 = vsub.s32 %v5680, 2
      %vm5682 = vcmp.gt.s32.totalorder 0, %v5681
      %v5683 = vsel %vm5682, 0, %v5681
      %v5684 = vsub.s32 32, %v5683
      %v5685 = vshll.u32 %v5676, %v5683
      %v5686 = vshrl.u32 %v5668, %v5684
      %v5687 = vor.u32 %v5685, %v5686
      %v5688 = vsub.s32 4294967266, %v5683
      %v5689 = vadd.s32 %v5688, 127
      %v5690 = vshll.u32 %v5689, 23
      %v5691 = vor.u32 4788187, %v5690
      %v5692 = vand.u32 2147483647, %v5691
      %v5694 = vcvt.s32.f32 %v5687
      %v5695 = vmul.f32 %v5694, %v5692
      %v5696 = vxor.u32 %v5695, 2147483648
      %v5697 = vsel %vm5614, %v5696, %v5695
      %v5698 = vsub.s32 4, %v5674
      %v5699 = vsel %vm5614, %v5698, %v5674
      %v5700 = vsel %vm5613, %v3030, %v5697
      %v5701 = vsel %vm5613, 0, %v5699
      %v5702 = vcosq.f32.pop %v5700
      %v5703 = vsinq.f32.pop %v5700
      %vm5704 = vweird.f32 %v3030
      %v5705 = vand.u32 %v5701, 3
      %vm5706 = vcmp.lt.s32.totalorder %v5705, 2
      %vm5707 = vcmp.eq.s32.totalorder %v5705, 0
      %v5708 = vxor.u32 %v5703, 2147483648
      %v5709 = vsel %vm5707, %v5702, %v5708
      %vm5710 = vcmp.eq.s32.totalorder %v5705, 2
      %v5711 = vxor.u32 %v5702, 2147483648
      %v5712 = vsel %vm5710, %v5711, %v5703
      %v5713 = vsel %vm5706, %v5709, %v5712
      %v5714 = vsel %vm5704, nan, %v5713
      %v5715 = vand.u32 2147483647, %v3031
      %vm5716 = vcmp.le.f32.partialorder %v5715, 0.7853982
      %vm5717 = vcmp.lt.s32.totalorder %v3031, 0
      %v5718 = vand.u32 %v3031, 2139095040
      %v5719 = vshrl.u32 %v5718, 23
      %v5720 = vsub.s32 %v5719, 127
      %v5721 = vand.u32 2147483647, %v3031
      %v5722 = vand.u32 %v5721, 8388607
      %v5723 = vor.u32 %v5722, 8388608
      %v5724 = vsub.s32 0, %v5723
      %v5725 = vadd.s32 %v5720, 1
      %vm5726 = vcmp.gt.s32.totalorder %v5725, 0
      %v5727 = vsel %vm5726, %v5725, 0
      %v5728 = vshrl.u32 %v5727, 5
      %v5729 = vand.u32 %v5727, 31
      %v5730 = vsub.s32 32, %v5729
      %v5731 = vshrl.u32 683565275, %v5730
      %v5732 = vshll.u32 683565275, %v5729
      %v5733 = vshrl.u32 2475754826, %v5730
      %v5734 = vor.u32 %v5732, %v5733
      %v5735 = vshll.u32 2475754826, %v5729
      %v5736 = vshrl.u32 2131351028, %v5730
      %v5737 = vor.u32 %v5735, %v5736
      %v5738 = vshll.u32 2131351028, %v5729
      %v5739 = vshrl.u32 2102212464, %v5730
      %v5740 = vor.u32 %v5738, %v5739
      %v5741 = vshll.u32 2102212464, %v5729
      %v5742 = vshrl.u32 920167782, %v5730
      %v5743 = vor.u32 %v5741, %v5742
      %v5744 = vshll.u32 920167782, %v5729
      %v5745 = vshrl.u32 1326507024, %v5730
      %v5746 = vor.u32 %v5744, %v5745
      %vm5747 = vcmp.lt.s32.totalorder %v5728, 1
      %vm5748 = vcmp.lt.s32.totalorder %v5728, 2
      %vm5749 = vcmp.lt.s32.totalorder %v5728, 3
      %vm5750 = vcmp.lt.s32.totalorder %v5728, 4
      %v5751 = vsel %vm5747, %v5731, %v5734
      %v5752 = vsel %vm5750, %v5740, 2102212464
      %v5753 = vsel %vm5749, %v5737, %v5752
      %v5754 = vsel %vm5748, %v5751, %v5753
      %v5755 = vsel %vm5747, %v5734, %v5737
      %v5756 = vsel %vm5750, %v5743, 920167782
      %v5757 = vsel %vm5749, %v5740, %v5756
      %v5758 = vsel %vm5748, %v5755, %v5757
      %v5759 = vsel %vm5747, %v5737, %v5740
      %v5760 = vsel %vm5750, %v5746, 1326507024
      %v5761 = vsel %vm5749, %v5743, %v5760
      %v5762 = vsel %vm5748, %v5759, %v5761
      %v5763 = vshll.u32 %v5723, 8
      %v5764 = vmul.u32.u64.compose %v5763, %v5762
      %v5765 = vextract.low.u32 %v5764
      %v5766 = vextract.high.u32 %v5764
      %v5767 = vmul.u32.u64.compose %v5763, %v5758
      %v5768 = vextract.low.u32 %v5767
      %v5769 = vextract.high.u32 %v5767
      %v5770 = vmul.u32 %v5763, %v5754
      %v5771 = vadd.s32 %v5766, %v5768
      %vm5772 = vc.u32 %v5766, %v5768
      %v5773 = vadd.s32 %v5769, 1
      %v5774 = vsel %vm5772, %v5773, %v5769
      %v5775 = vadd.s32 %v5770, %v5774
      %v5776 = vadd.s32 %v5775, 536870912
      %v5777 = vshrl.u32 %v5776, 30
      %v5778 = vshll.u32 %v5777, 30
      %v5779 = vsub.s32 %v5775, %v5778
      %vm5780 = vcmp.lt.s32.totalorder %v5779, 0
      %v5781 = vsub.s32 0, %v5779
      %v5782 = vsel %vm5780, %v5781, %v5779
      %v5783 = vclz %v5782
      %v5784 = vsub.s32 %v5783, 2
      %vm5785 = vcmp.gt.s32.totalorder 0, %v5784
      %v5786 = vsel %vm5785, 0, %v5784
      %v5787 = vsub.s32 32, %v5786
      %v5788 = vshll.u32 %v5779, %v5786
      %v5789 = vshrl.u32 %v5771, %v5787
      %v5790 = vor.u32 %v5788, %v5789
      %v5791 = vsub.s32 4294967266, %v5786
      %v5792 = vadd.s32 %v5791, 127
      %v5793 = vshll.u32 %v5792, 23
      %v5794 = vor.u32 4788187, %v5793
      %v5795 = vand.u32 2147483647, %v5794
      %v5797 = vcvt.s32.f32 %v5790
      %v5798 = vmul.f32 %v5797, %v5795
      %v5799 = vxor.u32 %v5798, 2147483648
      %v5800 = vsel %vm5717, %v5799, %v5798
      %v5801 = vsub.s32 4, %v5777
      %v5802 = vsel %vm5717, %v5801, %v5777
      %v5803 = vsel %vm5716, %v3031, %v5800
      %v5804 = vsel %vm5716, 0, %v5802
      %v5805 = vcosq.f32.pop %v5803
      %v5806 = vsinq.f32.pop %v5803
      %vm5807 = vweird.f32 %v3031
      %v5808 = vand.u32 %v5804, 3
      %vm5809 = vcmp.lt.s32.totalorder %v5808, 2
      %vm5810 = vcmp.eq.s32.totalorder %v5808, 0
      %v5811 = vxor.u32 %v5806, 2147483648
      %v5812 = vsel %vm5810, %v5805, %v5811
      %vm5813 = vcmp.eq.s32.totalorder %v5808, 2
      %v5814 = vxor.u32 %v5805, 2147483648
      %v5815 = vsel %vm5813, %v5814, %v5806
      %v5816 = vsel %vm5809, %v5812, %v5815
      %v5817 = vsel %vm5807, nan, %v5816
      %v5818 = vand.u32 2147483647, %v3032
      %vm5819 = vcmp.le.f32.partialorder %v5818, 0.7853982
      %vm5820 = vcmp.lt.s32.totalorder %v3032, 0
      %v5821 = vand.u32 %v3032, 2139095040
      %v5822 = vshrl.u32 %v5821, 23
      %v5823 = vsub.s32 %v5822, 127
      %v5824 = vand.u32 2147483647, %v3032
      %v5825 = vand.u32 %v5824, 8388607
      %v5826 = vor.u32 %v5825, 8388608
      %v5827 = vsub.s32 0, %v5826
      %v5828 = vadd.s32 %v5823, 1
      %vm5829 = vcmp.gt.s32.totalorder %v5828, 0
      %v5830 = vsel %vm5829, %v5828, 0
      %v5831 = vshrl.u32 %v5830, 5
      %v5832 = vand.u32 %v5830, 31
      %v5833 = vsub.s32 32, %v5832
      %v5834 = vshrl.u32 683565275, %v5833
      %v5835 = vshll.u32 683565275, %v5832
      %v5836 = vshrl.u32 2475754826, %v5833
      %v5837 = vor.u32 %v5835, %v5836
      %v5838 = vshll.u32 2475754826, %v5832
      %v5839 = vshrl.u32 2131351028, %v5833
      %v5840 = vor.u32 %v5838, %v5839
      %v5841 = vshll.u32 2131351028, %v5832
      %v5842 = vshrl.u32 2102212464, %v5833
      %v5843 = vor.u32 %v5841, %v5842
      %v5844 = vshll.u32 2102212464, %v5832
      %v5845 = vshrl.u32 920167782, %v5833
      %v5846 = vor.u32 %v5844, %v5845
      %v5847 = vshll.u32 920167782, %v5832
      %v5848 = vshrl.u32 1326507024, %v5833
      %v5849 = vor.u32 %v5847, %v5848
      %vm5850 = vcmp.lt.s32.totalorder %v5831, 1
      %vm5851 = vcmp.lt.s32.totalorder %v5831, 2
      %vm5852 = vcmp.lt.s32.totalorder %v5831, 3
      %vm5853 = vcmp.lt.s32.totalorder %v5831, 4
      %v5854 = vsel %vm5850, %v5834, %v5837
      %v5855 = vsel %vm5853, %v5843, 2102212464
      %v5856 = vsel %vm5852, %v5840, %v5855
      %v5857 = vsel %vm5851, %v5854, %v5856
      %v5858 = vsel %vm5850, %v5837, %v5840
      %v5859 = vsel %vm5853, %v5846, 920167782
      %v5860 = vsel %vm5852, %v5843, %v5859
      %v5861 = vsel %vm5851, %v5858, %v5860
      %v5862 = vsel %vm5850, %v5840, %v5843
      %v5863 = vsel %vm5853, %v5849, 1326507024
      %v5864 = vsel %vm5852, %v5846, %v5863
      %v5865 = vsel %vm5851, %v5862, %v5864
      %v5866 = vshll.u32 %v5826, 8
      %v5867 = vmul.u32.u64.compose %v5866, %v5865
      %v5868 = vextract.low.u32 %v5867
      %v5869 = vextract.high.u32 %v5867
      %v5870 = vmul.u32.u64.compose %v5866, %v5861
      %v5871 = vextract.low.u32 %v5870
      %v5872 = vextract.high.u32 %v5870
      %v5873 = vmul.u32 %v5866, %v5857
      %v5874 = vadd.s32 %v5869, %v5871
      %vm5875 = vc.u32 %v5869, %v5871
      %v5876 = vadd.s32 %v5872, 1
      %v5877 = vsel %vm5875, %v5876, %v5872
      %v5878 = vadd.s32 %v5873, %v5877
      %v5879 = vadd.s32 %v5878, 536870912
      %v5880 = vshrl.u32 %v5879, 30
      %v5881 = vshll.u32 %v5880, 30
      %v5882 = vsub.s32 %v5878, %v5881
      %vm5883 = vcmp.lt.s32.totalorder %v5882, 0
      %v5884 = vsub.s32 0, %v5882
      %v5885 = vsel %vm5883, %v5884, %v5882
      %v5886 = vclz %v5885
      %v5887 = vsub.s32 %v5886, 2
      %vm5888 = vcmp.gt.s32.totalorder 0, %v5887
      %v5889 = vsel %vm5888, 0, %v5887
      %v5890 = vsub.s32 32, %v5889
      %v5891 = vshll.u32 %v5882, %v5889
      %v5892 = vshrl.u32 %v5874, %v5890
      %v5893 = vor.u32 %v5891, %v5892
      %v5894 = vsub.s32 4294967266, %v5889
      %v5895 = vadd.s32 %v5894, 127
      %v5896 = vshll.u32 %v5895, 23
      %v5897 = vor.u32 4788187, %v5896
      %v5898 = vand.u32 2147483647, %v5897
      %v5900 = vcvt.s32.f32 %v5893
      %v5901 = vmul.f32 %v5900, %v5898
      %v5902 = vxor.u32 %v5901, 2147483648
      %v5903 = vsel %vm5820, %v5902, %v5901
      %v5904 = vsub.s32 4, %v5880
      %v5905 = vsel %vm5820, %v5904, %v5880
      %v5906 = vsel %vm5819, %v3032, %v5903
      %v5907 = vsel %vm5819, 0, %v5905
      %v5908 = vcosq.f32.pop %v5906
      %v5909 = vsinq.f32.pop %v5906
      %vm5910 = vweird.f32 %v3032
      %v5911 = vand.u32 %v5907, 3
      %vm5912 = vcmp.lt.s32.totalorder %v5911, 2
      %vm5913 = vcmp.eq.s32.totalorder %v5911, 0
      %v5914 = vxor.u32 %v5909, 2147483648
      %v5915 = vsel %vm5913, %v5908, %v5914
      %vm5916 = vcmp.eq.s32.totalorder %v5911, 2
      %v5917 = vxor.u32 %v5908, 2147483648
      %v5918 = vsel %vm5916, %v5917, %v5909
      %v5919 = vsel %vm5912, %v5915, %v5918
      %v5920 = vsel %vm5910, nan, %v5919
      %v5921 = vand.u32 2147483647, %v3033
      %vm5922 = vcmp.le.f32.partialorder %v5921, 0.7853982
      %vm5923 = vcmp.lt.s32.totalorder %v3033, 0
      %v5924 = vand.u32 %v3033, 2139095040
      %v5925 = vshrl.u32 %v5924, 23
      %v5926 = vsub.s32 %v5925, 127
      %v5927 = vand.u32 2147483647, %v3033
      %v5928 = vand.u32 %v5927, 8388607
      %v5929 = vor.u32 %v5928, 8388608
      %v5930 = vsub.s32 0, %v5929
      %v5931 = vadd.s32 %v5926, 1
      %vm5932 = vcmp.gt.s32.totalorder %v5931, 0
      %v5933 = vsel %vm5932, %v5931, 0
      %v5934 = vshrl.u32 %v5933, 5
      %v5935 = vand.u32 %v5933, 31
      %v5936 = vsub.s32 32, %v5935
      %v5937 = vshrl.u32 683565275, %v5936
      %v5938 = vshll.u32 683565275, %v5935
      %v5939 = vshrl.u32 2475754826, %v5936
      %v5940 = vor.u32 %v5938, %v5939
      %v5941 = vshll.u32 2475754826, %v5935
      %v5942 = vshrl.u32 2131351028, %v5936
      %v5943 = vor.u32 %v5941, %v5942
      %v5944 = vshll.u32 2131351028, %v5935
      %v5945 = vshrl.u32 2102212464, %v5936
      %v5946 = vor.u32 %v5944, %v5945
      %v5947 = vshll.u32 2102212464, %v5935
      %v5948 = vshrl.u32 920167782, %v5936
      %v5949 = vor.u32 %v5947, %v5948
      %v5950 = vshll.u32 920167782, %v5935
      %v5951 = vshrl.u32 1326507024, %v5936
      %v5952 = vor.u32 %v5950, %v5951
      %vm5953 = vcmp.lt.s32.totalorder %v5934, 1
      %vm5954 = vcmp.lt.s32.totalorder %v5934, 2
      %vm5955 = vcmp.lt.s32.totalorder %v5934, 3
      %vm5956 = vcmp.lt.s32.totalorder %v5934, 4
      %v5957 = vsel %vm5953, %v5937, %v5940
      %v5958 = vsel %vm5956, %v5946, 2102212464
      %v5959 = vsel %vm5955, %v5943, %v5958
      %v5960 = vsel %vm5954, %v5957, %v5959
      %v5961 = vsel %vm5953, %v5940, %v5943
      %v5962 = vsel %vm5956, %v5949, 920167782
      %v5963 = vsel %vm5955, %v5946, %v5962
      %v5964 = vsel %vm5954, %v5961, %v5963
      %v5965 = vsel %vm5953, %v5943, %v5946
      %v5966 = vsel %vm5956, %v5952, 1326507024
      %v5967 = vsel %vm5955, %v5949, %v5966
      %v5968 = vsel %vm5954, %v5965, %v5967
      %v5969 = vshll.u32 %v5929, 8
      %v5970 = vmul.u32.u64.compose %v5969, %v5968
      %v5971 = vextract.low.u32 %v5970
      %v5972 = vextract.high.u32 %v5970
      %v5973 = vmul.u32.u64.compose %v5969, %v5964
      %v5974 = vextract.low.u32 %v5973
      %v5975 = vextract.high.u32 %v5973
      %v5976 = vmul.u32 %v5969, %v5960
      %v5977 = vadd.s32 %v5972, %v5974
      %vm5978 = vc.u32 %v5972, %v5974
      %v5979 = vadd.s32 %v5975, 1
      %v5980 = vsel %vm5978, %v5979, %v5975
      %v5981 = vadd.s32 %v5976, %v5980
      %v5982 = vadd.s32 %v5981, 536870912
      %v5983 = vshrl.u32 %v5982, 30
      %v5984 = vshll.u32 %v5983, 30
      %v5985 = vsub.s32 %v5981, %v5984
      %vm5986 = vcmp.lt.s32.totalorder %v5985, 0
      %v5987 = vsub.s32 0, %v5985
      %v5988 = vsel %vm5986, %v5987, %v5985
      %v5989 = vclz %v5988
      %v5990 = vsub.s32 %v5989, 2
      %vm5991 = vcmp.gt.s32.totalorder 0, %v5990
      %v5992 = vsel %vm5991, 0, %v5990
      %v5993 = vsub.s32 32, %v5992
      %v5994 = vshll.u32 %v5985, %v5992
      %v5995 = vshrl.u32 %v5977, %v5993
      %v5996 = vor.u32 %v5994, %v5995
      %v5997 = vsub.s32 4294967266, %v5992
      %v5998 = vadd.s32 %v5997, 127
      %v5999 = vshll.u32 %v5998, 23
      %v6000 = vor.u32 4788187, %v5999
      %v6001 = vand.u32 2147483647, %v6000
      %v6003 = vcvt.s32.f32 %v5996
      %v6004 = vmul.f32 %v6003, %v6001
      %v6005 = vxor.u32 %v6004, 2147483648
      %v6006 = vsel %vm5923, %v6005, %v6004
      %v6007 = vsub.s32 4, %v5983
      %v6008 = vsel %vm5923, %v6007, %v5983
      %v6009 = vsel %vm5922, %v3033, %v6006
      %v6010 = vsel %vm5922, 0, %v6008
      %v6011 = vcosq.f32.pop %v6009
      %v6012 = vsinq.f32.pop %v6009
      %vm6013 = vweird.f32 %v3033
      %v6014 = vand.u32 %v6010, 3
      %vm6015 = vcmp.lt.s32.totalorder %v6014, 2
      %vm6016 = vcmp.eq.s32.totalorder %v6014, 0
      %v6017 = vxor.u32 %v6012, 2147483648
      %v6018 = vsel %vm6016, %v6011, %v6017
      %vm6019 = vcmp.eq.s32.totalorder %v6014, 2
      %v6020 = vxor.u32 %v6011, 2147483648
      %v6021 = vsel %vm6019, %v6020, %v6012
      %v6022 = vsel %vm6015, %v6018, %v6021
      %v6023 = vsel %vm6013, nan, %v6022
      %v6024 = vand.u32 2147483647, %v3034
      %vm6025 = vcmp.le.f32.partialorder %v6024, 0.7853982
      %vm6026 = vcmp.lt.s32.totalorder %v3034, 0
      %v6027 = vand.u32 %v3034, 2139095040
      %v6028 = vshrl.u32 %v6027, 23
      %v6029 = vsub.s32 %v6028, 127
      %v6030 = vand.u32 2147483647, %v3034
      %v6031 = vand.u32 %v6030, 8388607
      %v6032 = vor.u32 %v6031, 8388608
      %v6033 = vsub.s32 0, %v6032
      %v6034 = vadd.s32 %v6029, 1
      %vm6035 = vcmp.gt.s32.totalorder %v6034, 0
      %v6036 = vsel %vm6035, %v6034, 0
      %v6037 = vshrl.u32 %v6036, 5
      %v6038 = vand.u32 %v6036, 31
      %v6039 = vsub.s32 32, %v6038
      %v6040 = vshrl.u32 683565275, %v6039
      %v6041 = vshll.u32 683565275, %v6038
      %v6042 = vshrl.u32 2475754826, %v6039
      %v6043 = vor.u32 %v6041, %v6042
      %v6044 = vshll.u32 2475754826, %v6038
      %v6045 = vshrl.u32 2131351028, %v6039
      %v6046 = vor.u32 %v6044, %v6045
      %v6047 = vshll.u32 2131351028, %v6038
      %v6048 = vshrl.u32 2102212464, %v6039
      %v6049 = vor.u32 %v6047, %v6048
      %v6050 = vshll.u32 2102212464, %v6038
      %v6051 = vshrl.u32 920167782, %v6039
      %v6052 = vor.u32 %v6050, %v6051
      %v6053 = vshll.u32 920167782, %v6038
      %v6054 = vshrl.u32 1326507024, %v6039
      %v6055 = vor.u32 %v6053, %v6054
      %vm6056 = vcmp.lt.s32.totalorder %v6037, 1
      %vm6057 = vcmp.lt.s32.totalorder %v6037, 2
      %vm6058 = vcmp.lt.s32.totalorder %v6037, 3
      %vm6059 = vcmp.lt.s32.totalorder %v6037, 4
      %v6060 = vsel %vm6056, %v6040, %v6043
      %v6061 = vsel %vm6059, %v6049, 2102212464
      %v6062 = vsel %vm6058, %v6046, %v6061
      %v6063 = vsel %vm6057, %v6060, %v6062
      %v6064 = vsel %vm6056, %v6043, %v6046
      %v6065 = vsel %vm6059, %v6052, 920167782
      %v6066 = vsel %vm6058, %v6049, %v6065
      %v6067 = vsel %vm6057, %v6064, %v6066
      %v6068 = vsel %vm6056, %v6046, %v6049
      %v6069 = vsel %vm6059, %v6055, 1326507024
      %v6070 = vsel %vm6058, %v6052, %v6069
      %v6071 = vsel %vm6057, %v6068, %v6070
      %v6072 = vshll.u32 %v6032, 8
      %v6073 = vmul.u32.u64.compose %v6072, %v6071
      %v6074 = vextract.low.u32 %v6073
      %v6075 = vextract.high.u32 %v6073
      %v6076 = vmul.u32.u64.compose %v6072, %v6067
      %v6077 = vextract.low.u32 %v6076
      %v6078 = vextract.high.u32 %v6076
      %v6079 = vmul.u32 %v6072, %v6063
      %v6080 = vadd.s32 %v6075, %v6077
      %vm6081 = vc.u32 %v6075, %v6077
      %v6082 = vadd.s32 %v6078, 1
      %v6083 = vsel %vm6081, %v6082, %v6078
      %v6084 = vadd.s32 %v6079, %v6083
      %v6085 = vadd.s32 %v6084, 536870912
      %v6086 = vshrl.u32 %v6085, 30
      %v6087 = vshll.u32 %v6086, 30
      %v6088 = vsub.s32 %v6084, %v6087
      %vm6089 = vcmp.lt.s32.totalorder %v6088, 0
      %v6090 = vsub.s32 0, %v6088
      %v6091 = vsel %vm6089, %v6090, %v6088
      %v6092 = vclz %v6091
      %v6093 = vsub.s32 %v6092, 2
      %vm6094 = vcmp.gt.s32.totalorder 0, %v6093
      %v6095 = vsel %vm6094, 0, %v6093
      %v6096 = vsub.s32 32, %v6095
      %v6097 = vshll.u32 %v6088, %v6095
      %v6098 = vshrl.u32 %v6080, %v6096
      %v6099 = vor.u32 %v6097, %v6098
      %v6100 = vsub.s32 4294967266, %v6095
      %v6101 = vadd.s32 %v6100, 127
      %v6102 = vshll.u32 %v6101, 23
      %v6103 = vor.u32 4788187, %v6102
      %v6104 = vand.u32 2147483647, %v6103
      %v6106 = vcvt.s32.f32 %v6099
      %v6107 = vmul.f32 %v6106, %v6104
      %v6108 = vxor.u32 %v6107, 2147483648
      %v6109 = vsel %vm6026, %v6108, %v6107
      %v6110 = vsub.s32 4, %v6086
      %v6111 = vsel %vm6026, %v6110, %v6086
      %v6112 = vsel %vm6025, %v3034, %v6109
      %v6113 = vsel %vm6025, 0, %v6111
      %v6114 = vcosq.f32.pop %v6112
      %v6115 = vsinq.f32.pop %v6112
      %vm6116 = vweird.f32 %v3034
      %v6117 = vand.u32 %v6113, 3
      %vm6118 = vcmp.lt.s32.totalorder %v6117, 2
      %vm6119 = vcmp.eq.s32.totalorder %v6117, 0
      %v6120 = vxor.u32 %v6115, 2147483648
      %v6121 = vsel %vm6119, %v6114, %v6120
      %vm6122 = vcmp.eq.s32.totalorder %v6117, 2
      %v6123 = vxor.u32 %v6114, 2147483648
      %v6124 = vsel %vm6122, %v6123, %v6115
      %v6125 = vsel %vm6118, %v6121, %v6124
      %v6126 = vsel %vm6116, nan, %v6125
      %v6127 = vand.u32 2147483647, %v3035
      %vm6128 = vcmp.le.f32.partialorder %v6127, 0.7853982
      %vm6129 = vcmp.lt.s32.totalorder %v3035, 0
      %v6130 = vand.u32 %v3035, 2139095040
      %v6131 = vshrl.u32 %v6130, 23
      %v6132 = vsub.s32 %v6131, 127
      %v6133 = vand.u32 2147483647, %v3035
      %v6134 = vand.u32 %v6133, 8388607
      %v6135 = vor.u32 %v6134, 8388608
      %v6136 = vsub.s32 0, %v6135
      %v6137 = vadd.s32 %v6132, 1
      %vm6138 = vcmp.gt.s32.totalorder %v6137, 0
      %v6139 = vsel %vm6138, %v6137, 0
      %v6140 = vshrl.u32 %v6139, 5
      %v6141 = vand.u32 %v6139, 31
      %v6142 = vsub.s32 32, %v6141
      %v6143 = vshrl.u32 683565275, %v6142
      %v6144 = vshll.u32 683565275, %v6141
      %v6145 = vshrl.u32 2475754826, %v6142
      %v6146 = vor.u32 %v6144, %v6145
      %v6147 = vshll.u32 2475754826, %v6141
      %v6148 = vshrl.u32 2131351028, %v6142
      %v6149 = vor.u32 %v6147, %v6148
      %v6150 = vshll.u32 2131351028, %v6141
      %v6151 = vshrl.u32 2102212464, %v6142
      %v6152 = vor.u32 %v6150, %v6151
      %v6153 = vshll.u32 2102212464, %v6141
      %v6154 = vshrl.u32 920167782, %v6142
      %v6155 = vor.u32 %v6153, %v6154
      %v6156 = vshll.u32 920167782, %v6141
      %v6157 = vshrl.u32 1326507024, %v6142
      %v6158 = vor.u32 %v6156, %v6157
      %vm6159 = vcmp.lt.s32.totalorder %v6140, 1
      %vm6160 = vcmp.lt.s32.totalorder %v6140, 2
      %vm6161 = vcmp.lt.s32.totalorder %v6140, 3
      %vm6162 = vcmp.lt.s32.totalorder %v6140, 4
      %v6163 = vsel %vm6159, %v6143, %v6146
      %v6164 = vsel %vm6162, %v6152, 2102212464
      %v6165 = vsel %vm6161, %v6149, %v6164
      %v6166 = vsel %vm6160, %v6163, %v6165
      %v6167 = vsel %vm6159, %v6146, %v6149
      %v6168 = vsel %vm6162, %v6155, 920167782
      %v6169 = vsel %vm6161, %v6152, %v6168
      %v6170 = vsel %vm6160, %v6167, %v6169
      %v6171 = vsel %vm6159, %v6149, %v6152
      %v6172 = vsel %vm6162, %v6158, 1326507024
      %v6173 = vsel %vm6161, %v6155, %v6172
      %v6174 = vsel %vm6160, %v6171, %v6173
      %v6175 = vshll.u32 %v6135, 8
      %v6176 = vmul.u32.u64.compose %v6175, %v6174
      %v6177 = vextract.low.u32 %v6176
      %v6178 = vextract.high.u32 %v6176
      %v6179 = vmul.u32.u64.compose %v6175, %v6170
      %v6180 = vextract.low.u32 %v6179
      %v6181 = vextract.high.u32 %v6179
      %v6182 = vmul.u32 %v6175, %v6166
      %v6183 = vadd.s32 %v6178, %v6180
      %vm6184 = vc.u32 %v6178, %v6180
      %v6185 = vadd.s32 %v6181, 1
      %v6186 = vsel %vm6184, %v6185, %v6181
      %v6187 = vadd.s32 %v6182, %v6186
      %v6188 = vadd.s32 %v6187, 536870912
      %v6189 = vshrl.u32 %v6188, 30
      %v6190 = vshll.u32 %v6189, 30
      %v6191 = vsub.s32 %v6187, %v6190
      %vm6192 = vcmp.lt.s32.totalorder %v6191, 0
      %v6193 = vsub.s32 0, %v6191
      %v6194 = vsel %vm6192, %v6193, %v6191
      %v6195 = vclz %v6194
      %v6196 = vsub.s32 %v6195, 2
      %vm6197 = vcmp.gt.s32.totalorder 0, %v6196
      %v6198 = vsel %vm6197, 0, %v6196
      %v6199 = vsub.s32 32, %v6198
      %v6200 = vshll.u32 %v6191, %v6198
      %v6201 = vshrl.u32 %v6183, %v6199
      %v6202 = vor.u32 %v6200, %v6201
      %v6203 = vsub.s32 4294967266, %v6198
      %v6204 = vadd.s32 %v6203, 127
      %v6205 = vshll.u32 %v6204, 23
      %v6206 = vor.u32 4788187, %v6205
      %v6207 = vand.u32 2147483647, %v6206
      %v6209 = vcvt.s32.f32 %v6202
      %v6210 = vmul.f32 %v6209, %v6207
      %v6211 = vxor.u32 %v6210, 2147483648
      %v6212 = vsel %vm6129, %v6211, %v6210
      %v6213 = vsub.s32 4, %v6189
      %v6214 = vsel %vm6129, %v6213, %v6189
      %v6215 = vsel %vm6128, %v3035, %v6212
      %v6216 = vsel %vm6128, 0, %v6214
      %v6217 = vcosq.f32.pop %v6215
      %v6218 = vsinq.f32.pop %v6215
      %vm6219 = vweird.f32 %v3035
      %v6220 = vand.u32 %v6216, 3
      %vm6221 = vcmp.lt.s32.totalorder %v6220, 2
      %vm6222 = vcmp.eq.s32.totalorder %v6220, 0
      %v6223 = vxor.u32 %v6218, 2147483648
      %v6224 = vsel %vm6222, %v6217, %v6223
      %vm6225 = vcmp.eq.s32.totalorder %v6220, 2
      %v6226 = vxor.u32 %v6217, 2147483648
      %v6227 = vsel %vm6225, %v6226, %v6218
      %v6228 = vsel %vm6221, %v6224, %v6227
      %v6229 = vsel %vm6219, nan, %v6228
      %v6230 = vand.u32 2147483647, %v3036
      %vm6231 = vcmp.le.f32.partialorder %v6230, 0.7853982
      %vm6232 = vcmp.lt.s32.totalorder %v3036, 0
      %v6233 = vand.u32 %v3036, 2139095040
      %v6234 = vshrl.u32 %v6233, 23
      %v6235 = vsub.s32 %v6234, 127
      %v6236 = vand.u32 2147483647, %v3036
      %v6237 = vand.u32 %v6236, 8388607
      %v6238 = vor.u32 %v6237, 8388608
      %v6239 = vsub.s32 0, %v6238
      %v6240 = vadd.s32 %v6235, 1
      %vm6241 = vcmp.gt.s32.totalorder %v6240, 0
      %v6242 = vsel %vm6241, %v6240, 0
      %v6243 = vshrl.u32 %v6242, 5
      %v6244 = vand.u32 %v6242, 31
      %v6245 = vsub.s32 32, %v6244
      %v6246 = vshrl.u32 683565275, %v6245
      %v6247 = vshll.u32 683565275, %v6244
      %v6248 = vshrl.u32 2475754826, %v6245
      %v6249 = vor.u32 %v6247, %v6248
      %v6250 = vshll.u32 2475754826, %v6244
      %v6251 = vshrl.u32 2131351028, %v6245
      %v6252 = vor.u32 %v6250, %v6251
      %v6253 = vshll.u32 2131351028, %v6244
      %v6254 = vshrl.u32 2102212464, %v6245
      %v6255 = vor.u32 %v6253, %v6254
      %v6256 = vshll.u32 2102212464, %v6244
      %v6257 = vshrl.u32 920167782, %v6245
      %v6258 = vor.u32 %v6256, %v6257
      %v6259 = vshll.u32 920167782, %v6244
      %v6260 = vshrl.u32 1326507024, %v6245
      %v6261 = vor.u32 %v6259, %v6260
      %vm6262 = vcmp.lt.s32.totalorder %v6243, 1
      %vm6263 = vcmp.lt.s32.totalorder %v6243, 2
      %vm6264 = vcmp.lt.s32.totalorder %v6243, 3
      %vm6265 = vcmp.lt.s32.totalorder %v6243, 4
      %v6266 = vsel %vm6262, %v6246, %v6249
      %v6267 = vsel %vm6265, %v6255, 2102212464
      %v6268 = vsel %vm6264, %v6252, %v6267
      %v6269 = vsel %vm6263, %v6266, %v6268
      %v6270 = vsel %vm6262, %v6249, %v6252
      %v6271 = vsel %vm6265, %v6258, 920167782
      %v6272 = vsel %vm6264, %v6255, %v6271
      %v6273 = vsel %vm6263, %v6270, %v6272
      %v6274 = vsel %vm6262, %v6252, %v6255
      %v6275 = vsel %vm6265, %v6261, 1326507024
      %v6276 = vsel %vm6264, %v6258, %v6275
      %v6277 = vsel %vm6263, %v6274, %v6276
      %v6278 = vshll.u32 %v6238, 8
      %v6279 = vmul.u32.u64.compose %v6278, %v6277
      %v6280 = vextract.low.u32 %v6279
      %v6281 = vextract.high.u32 %v6279
      %v6282 = vmul.u32.u64.compose %v6278, %v6273
      %v6283 = vextract.low.u32 %v6282
      %v6284 = vextract.high.u32 %v6282
      %v6285 = vmul.u32 %v6278, %v6269
      %v6286 = vadd.s32 %v6281, %v6283
      %vm6287 = vc.u32 %v6281, %v6283
      %v6288 = vadd.s32 %v6284, 1
      %v6289 = vsel %vm6287, %v6288, %v6284
      %v6290 = vadd.s32 %v6285, %v6289
      %v6291 = vadd.s32 %v6290, 536870912
      %v6292 = vshrl.u32 %v6291, 30
      %v6293 = vshll.u32 %v6292, 30
      %v6294 = vsub.s32 %v6290, %v6293
      %vm6295 = vcmp.lt.s32.totalorder %v6294, 0
      %v6296 = vsub.s32 0, %v6294
      %v6297 = vsel %vm6295, %v6296, %v6294
      %v6298 = vclz %v6297
      %v6299 = vsub.s32 %v6298, 2
      %vm6300 = vcmp.gt.s32.totalorder 0, %v6299
      %v6301 = vsel %vm6300, 0, %v6299
      %v6302 = vsub.s32 32, %v6301
      %v6303 = vshll.u32 %v6294, %v6301
      %v6304 = vshrl.u32 %v6286, %v6302
      %v6305 = vor.u32 %v6303, %v6304
      %v6306 = vsub.s32 4294967266, %v6301
      %v6307 = vadd.s32 %v6306, 127
      %v6308 = vshll.u32 %v6307, 23
      %v6309 = vor.u32 4788187, %v6308
      %v6310 = vand.u32 2147483647, %v6309
      %v6312 = vcvt.s32.f32 %v6305
      %v6313 = vmul.f32 %v6312, %v6310
      %v6314 = vxor.u32 %v6313, 2147483648
      %v6315 = vsel %vm6232, %v6314, %v6313
      %v6316 = vsub.s32 4, %v6292
      %v6317 = vsel %vm6232, %v6316, %v6292
      %v6318 = vsel %vm6231, %v3036, %v6315
      %v6319 = vsel %vm6231, 0, %v6317
      %v6320 = vcosq.f32.pop %v6318
      %v6321 = vsinq.f32.pop %v6318
      %vm6322 = vweird.f32 %v3036
      %v6323 = vand.u32 %v6319, 3
      %vm6324 = vcmp.lt.s32.totalorder %v6323, 2
      %vm6325 = vcmp.eq.s32.totalorder %v6323, 0
      %v6326 = vxor.u32 %v6321, 2147483648
      %v6327 = vsel %vm6325, %v6320, %v6326
      %vm6328 = vcmp.eq.s32.totalorder %v6323, 2
      %v6329 = vxor.u32 %v6320, 2147483648
      %v6330 = vsel %vm6328, %v6329, %v6321
      %v6331 = vsel %vm6324, %v6327, %v6330
      %v6332 = vsel %vm6322, nan, %v6331
      %v6333 = vsub.f32 1.0, %v3139
      %v6334 = vsub.f32 1.0, %v3242
      %v6335 = vsub.f32 1.0, %v3345
      %v6336 = vsub.f32 1.0, %v3448
      %v6337 = vsub.f32 1.0, %v3551
      %v6338 = vsub.f32 1.0, %v3654
      %v6339 = vsub.f32 1.0, %v3757
      %v6340 = vsub.f32 1.0, %v3860
      %v6341 = vsub.f32 1.0, %v3963
      %v6342 = vsub.f32 1.0, %v4066
      %v6343 = vsub.f32 1.0, %v4169
      %v6344 = vsub.f32 1.0, %v4272
      %v6345 = vsub.f32 1.0, %v4375
      %v6346 = vsub.f32 1.0, %v4478
      %v6347 = vsub.f32 1.0, %v4581
      %v6348 = vsub.f32 1.0, %v4684
      %v6349 = vsub.f32 1.0, %v4787
      %v6350 = vsub.f32 1.0, %v4890
      %v6351 = vsub.f32 1.0, %v4993
      %v6352 = vsub.f32 1.0, %v5096
      %v6353 = vsub.f32 1.0, %v5199
      %v6354 = vsub.f32 1.0, %v5302
      %v6355 = vsub.f32 1.0, %v5405
      %v6356 = vsub.f32 1.0, %v5508
      %v6357 = vsub.f32 1.0, %v5611
      %v6358 = vsub.f32 1.0, %v5714
      %v6359 = vsub.f32 1.0, %v5817
      %v6360 = vsub.f32 1.0, %v5920
      %v6361 = vsub.f32 1.0, %v6023
      %v6362 = vsub.f32 1.0, %v6126
      %v6363 = vsub.f32 1.0, %v6229
      %v6364 = vsub.f32 1.0, %v6332
      %v6365 = vmul.f32 %v6333, 0.5
      %v6366 = vmul.f32 %v6334, 0.5
      %v6367 = vmul.f32 %v6335, 0.5
      %v6368 = vmul.f32 %v6336, 0.5
      %v6369 = vmul.f32 %v6337, 0.5
      %v6370 = vmul.f32 %v6338, 0.5
      %v6371 = vmul.f32 %v6339, 0.5
      %v6372 = vmul.f32 %v6340, 0.5
      %v6373 = vmul.f32 %v6341, 0.5
      %v6374 = vmul.f32 %v6342, 0.5
      %v6375 = vmul.f32 %v6343, 0.5
      %v6376 = vmul.f32 %v6344, 0.5
      %v6377 = vmul.f32 %v6345, 0.5
      %v6378 = vmul.f32 %v6346, 0.5
      %v6379 = vmul.f32 %v6347, 0.5
      %v6380 = vmul.f32 %v6348, 0.5
      %v6381 = vmul.f32 %v6349, 0.5
      %v6382 = vmul.f32 %v6350, 0.5
      %v6383 = vmul.f32 %v6351, 0.5
      %v6384 = vmul.f32 %v6352, 0.5
      %v6385 = vmul.f32 %v6353, 0.5
      %v6386 = vmul.f32 %v6354, 0.5
      %v6387 = vmul.f32 %v6355, 0.5
      %v6388 = vmul.f32 %v6356, 0.5
      %v6389 = vmul.f32 %v6357, 0.5
      %v6390 = vmul.f32 %v6358, 0.5
      %v6391 = vmul.f32 %v6359, 0.5
      %v6392 = vmul.f32 %v6360, 0.5
      %v6393 = vmul.f32 %v6361, 0.5
      %v6394 = vmul.f32 %v6362, 0.5
      %v6395 = vmul.f32 %v6363, 0.5
      %v6396 = vmul.f32 %v6364, 0.5
      %6397 = vst [vmem:[%s309] sm:$0xff] %v6365
      %6398 = vst [vmem:[%s309 + $0x8] sm:$0xff] %v6366
      %6399 = vst [vmem:[%s309 + $0x10] sm:$0xff] %v6367
      %6400 = vst [vmem:[%s309 + $0x18] sm:$0xff] %v6368
      %6401 = vst [vmem:[%s309 + $0x20] sm:$0xff] %v6369
      %6402 = vst [vmem:[%s309 + $0x28] sm:$0xff] %v6370
      %6403 = vst [vmem:[%s309 + $0x30] sm:$0xff] %v6371
      %6404 = vst [vmem:[%s309 + $0x38] sm:$0xff] %v6372
      %6405 = vst [vmem:[%s309 + $0x40] sm:$0xff] %v6373
      %6406 = vst [vmem:[%s309 + $0x48] sm:$0xff] %v6374
      %6407 = vst [vmem:[%s309 + $0x50] sm:$0xff] %v6375
      %6408 = vst [vmem:[%s309 + $0x58] sm:$0xff] %v6376
      %6409 = vst [vmem:[%s309 + $0x60] sm:$0xff] %v6377
      %6410 = vst [vmem:[%s309 + $0x68] sm:$0xff] %v6378
      %6411 = vst [vmem:[%s309 + $0x70] sm:$0xff] %v6379
      %6412 = vst [vmem:[%s309 + $0x78] sm:$0xff] %v6380
      %6413 = vst [vmem:[%s309 + $0x80] sm:$0xff] %v6381
      %6414 = vst [vmem:[%s309 + $0x88] sm:$0xff] %v6382
      %6415 = vst [vmem:[%s309 + $0x90] sm:$0xff] %v6383
      %6416 = vst [vmem:[%s309 + $0x98] sm:$0xff] %v6384
      %6417 = vst [vmem:[%s309 + $0xa0] sm:$0xff] %v6385
      %6418 = vst [vmem:[%s309 + $0xa8] sm:$0xff] %v6386
      %6419 = vst [vmem:[%s309 + $0xb0] sm:$0xff] %v6387
      %6420 = vst [vmem:[%s309 + $0xb8] sm:$0xff] %v6388
      %6421 = vst [vmem:[%s309 + $0xc0] sm:$0xff] %v6389
      %6422 = vst [vmem:[%s309 + $0xc8] sm:$0xff] %v6390
      %6423 = vst [vmem:[%s309 + $0xd0] sm:$0xff] %v6391
      %6424 = vst [vmem:[%s309 + $0xd8] sm:$0xff] %v6392
      %6425 = vst [vmem:[%s309 + $0xe0] sm:$0xff] %v6393
      %6426 = vst [vmem:[%s309 + $0xe8] sm:$0xff] %v6394
      %6427 = vst [vmem:[%s309 + $0xf0] sm:$0xff] %v6395
      %6428 = vst [vmem:[%s309 + $0xf8] sm:$0xff] %v6396
      %s6429 = smul.u32 32, %s21
      %p6430 = scmp.lt.s32.totalorder %s6429, 127
      %s6431 = scalar_select %p6430, %s6429, 127
      %s6432 = smul.addr %s6431, 8
      %s6433 = scalar_lea.vmem %s8, %s6432
      // Predicated region
      $region53: #{keyholder_forward.1} parent=51 // pred_check
        %p6434 = pneg %p212
      $region54: #{keyholder_forward.1} parent=51 // pred_check_branch
        %6436 = sbr.rel (%p6434) target = $region56
      $region55: #{keyholder_forward.1} parent=51 // pred_region
        %s6437 = smul.u32 32, %s21
      $region56: #{keyholder_forward.1} parent=51 // pred_fallthru
        _
    $region52: #{keyholder_forward.1} parent=5 // pred_fallthru
      _
    %p6438 = scmp.le.s32.totalorder 2, %s16
    // Predicated region
    $region57: #{keyholder_forward.1} parent=5 // pred_check
      %p6439 = pneg %p6438
    $region58: #{keyholder_forward.1} parent=5 // pred_check_branch
      %6441 = sbr.rel (%p6439) target = $region60
    $region59: #{keyholder_forward.1} parent=5 // pred_region
      %s6442 = ssub.s32 %s16, 2
      // Predicated region
      $region61: #{keyholder_forward.1} parent=59 // pred_check
        %p6443 = pneg %p218
      $region62: #{keyholder_forward.1} parent=59 // pred_check_branch
        %6445 = sbr.rel (%p6443) target = $region64
      $region63: #{keyholder_forward.1} parent=59 // pred_region
        %s6446 = smul.u32 32, %s22
        %p6447 = scmp.lt.s32.totalorder %s6446, 127
        %s6448 = scalar_select %p6447, %s6446, 127
        %s6449 = smul.addr %s6448, 8
        %s6450 = scalar_lea.vmem %s8, %s6449
      $region64: #{keyholder_forward.1} parent=59 // pred_fallthru
        _
    $region60: #{keyholder_forward.1} parent=5 // pred_fallthru
      _
  $region6: #{keyholder_forward.1} parent=0 // loop_footer
    %s20 = sadd.s32 1, %s16
  $region7: #{keyholder_forward.1} parent=0 // loop_footer_branch
    %15 = sbr.rel target = $region3
  $region8: #{keyholder_forward.1} parent=0 // loop_exit
    _

</llo_original>
